<compile_context>
chip_gen: v6e
topology: v6e:2x2x1
jax: 0.10.0
libtpu: 0.0.40
codegen_flags: <defaults>
</compile_context>

<pallas_src>
import functools
import math

import numpy as np
import jax
import jax.numpy as jnp
from jax.experimental import pallas as pl
from jax.experimental.pallas import tpu as pltpu

SIZE_P = 7
CHANNELS = 4
CHANGE = 0.1
BN_EPS = 1e-5


# ----------------------------------------------------------------------------
# GetBasis (plain JAX glue): rotated Fourier basis, s_w = s_l = 1
# ----------------------------------------------------------------------------
def get_basis(theta, sizeP):
    """theta: (B, 1) -> Basis (B, sizeP, sizeP, 2 * sizeP * sizeP)."""
    B = theta.shape[0]
    P = sizeP
    inP = sizeP
    p = (P - 1) / 2.0
    x = jnp.arange(-p, p + 1, dtype=jnp.float32) / p
    gX, gY = jnp.meshgrid(x, x)                      # 'xy' indexing == np.meshgrid
    th = theta.reshape(B, 1, 1).astype(jnp.float32)
    X = jnp.cos(th) * gX - jnp.sin(th) * gY          # (B, P, P)
    Y = jnp.sin(th) * gX + jnp.cos(th) * gY
    mask = jnp.exp(-jnp.maximum(X * X + Y * Y - 1.0, 0.0) / 0.2)

    v = np.pi / inP * (inP - 1)
    half = inP / 2.0
    k = jnp.arange(inP, dtype=jnp.float32).reshape(inP, 1)
    l = jnp.arange(inP, dtype=jnp.float32).reshape(1, inP)
    fk = (k - inP * (k > half).astype(jnp.float32)) * v       # (inP, 1)
    fl = (l - inP * (l > half).astype(jnp.float32)) * v       # (1, inP)

    arg = (fk[None, None, None] * X[..., None, None]
           + fl[None, None, None] * Y[..., None, None])       # (B, P, P, inP, inP)
    basis_c = (jnp.cos(arg) * mask[..., None, None]).reshape(B, P, P, inP * inP)
    basis_s = (jnp.sin(arg) * mask[..., None, None]).reshape(B, P, P, inP * inP)
    return jnp.concatenate([basis_c, basis_s], axis=-1)        # (B, P, P, 2*inP*inP)


# ----------------------------------------------------------------------------
# Fused Pallas kernel: conv1 + BN1 + ReLU + conv2 + BN2*change + residual
# ----------------------------------------------------------------------------
def _fused_block_kernel(x0_ref, w1_ref, w2_ref, c1_ref, c2_ref, mask_ref,
                        o_ref, pad0_ref, pad1_ref, col_ref,
                        *, n_batch, n_chan, height, width, wp, sizeP, change):
    BC = n_batch * n_chan
    Q = height * wp                        # flat "q-space": q = h * wp + w  (128-mult)
    OFF = (sizeP // 2) * wp + sizeP // 2   # q-space -> padded-flat offset
    n_valid = float(n_batch * height * width)

    maskv = mask_ref[...]                  # (1, Q): 1.0 where (q % wp) < width

    def conv(pad_ref, w_ref, c_ref):
        # im2col: one (BC, Q) slab per tap; a tap is just a static lane shift
        # s = kh*wp + kw in the flat padded layout.  Slabs land on sublane-aligned
        # rows of the VMEM scratch; slab length Q is a 128-lane multiple.
        for kh in range(sizeP):
            for kw in range(sizeP):
                tap = kh * sizeP + kw
                s = kh * wp + kw
                col_ref[tap * BC:(tap + 1) * BC, :] = pad_ref[:, s:s + Q]
        # One MXU matmul per conv covering the whole batch (block-diagonal
        # per-batch filters).  Default precision = bf16 MXU passes, f32 accum.
        out = jnp.dot(w_ref[...], col_ref[...],
                      preferred_element_type=jnp.float32)      # (BC, Q)
        return out + c_ref[...]            # per-channel bias, broadcast over lanes

    def group_sum(v):
        # (BC, 1) -> (BC, 1): every row receives the sum over the batch
        # replicas of its channel (rows are ordered b*C + c).  pltpu.roll is an
        # XLU sublane rotation -> free w.r.t. the VPU slots.
        total = v
        for b in range(1, n_batch):
            total = total + pltpu.roll(v, shift=b * n_chan, axis=0)
        return total

    def chan_stats(x):
        # Training-mode BatchNorm2d statistics (biased variance), computed
        # per channel across the whole batch, valid lanes only.
        xm = x * maskv
        rsum = jnp.sum(xm, axis=1, keepdims=True)              # (BC, 1)
        mean = group_sum(rsum) * (1.0 / n_valid)               # (BC, 1)
        cent = (x - mean) * maskv
        vsum = jnp.sum(cent * cent, axis=1, keepdims=True)     # (BC, 1)
        var = group_sum(vsum) * (1.0 / n_valid)
        inv = jax.lax.rsqrt(var + BN_EPS)
        return mean, inv

    # ---- conv1 input: zero-pad x0 into the flat padded layout, in VMEM ----
    pad0_ref[...] = jnp.zeros(pad0_ref.shape, jnp.float32)
    for h in range(height):
        pad0_ref[:, OFF + h * wp: OFF + h * wp + width] = \
            x0_ref[:, h * width:(h + 1) * width]

    x1 = conv(pad0_ref, w1_ref, c1_ref)                        # (BC, Q)
    m1, i1 = chan_stats(x1)
    x1 = jnp.maximum((x1 - m1) * i1, 0.0) * maskv              # BN1 + ReLU, pad lanes -> 0

    # ---- conv2 input: q-space drops straight into the padded layout at OFF ----
    pad1_ref[...] = jnp.zeros(pad1_ref.shape, jnp.float32)
    pad1_ref[:, OFF:OFF + Q] = x1

    x2 = conv(pad1_ref, w2_ref, c2_ref)                        # (BC, Q)
    m2, i2 = chan_stats(x2)
    y2 = (x2 - m2) * i2                                        # BN2

    x0q = pad0_ref[:, OFF:OFF + Q]                             # residual (pad lanes = 0)
    o_ref[...] = y2 * change + x0q                             # full unmasked lane store


# ----------------------------------------------------------------------------
# Wrapper: filter synthesis (tiny einsum) + one fused pallas_call
# ----------------------------------------------------------------------------
def _filter_matrix(basis, w):
    """basis (B,P,P,2P^2), weights (Cout,2P^2,Cin) ->
       block-diagonal matrix (B*Cout, P*P*B*Cin), columns ordered (tap, b, cin)."""
    B, P = basis.shape[0], basis.shape[1]
    Cout, _, Cin = w.shape
    ck = jnp.einsum('bijk,nkm->bnijm', basis, w)       # (B, Cout, P, P, Cin)
    ck = ck.reshape(B, Cout, P * P, Cin)               # (B, Cout, T, Cin)
    eye = jnp.eye(B, dtype=ck.dtype)
    wbig = jnp.einsum('bntm,bc->bntcm', ck, eye)       # (B, Cout, T, B, Cin)
    return wbig.reshape(B * Cout, P * P * B * Cin)


def init_params(key, channels, sizeP):
    k1, k2 = jax.random.split(key)
    scale = 1.0 / sizeP / sizeP / 100.0
    w1 = jax.random.normal(k1, (channels, 2 * sizeP * sizeP, channels), jnp.float32) * scale
    w2 = jax.random.normal(k2, (channels, 2 * sizeP * sizeP, channels), jnp.float32) * scale
    return dict(w1=w1, c1=jnp.zeros((channels,), jnp.float32),
                w2=w2, c2=jnp.zeros((channels,), jnp.float32))


def _round_up(x, m):
    return -(-x // m) * m


def rot_res_block(x0_nchw, theta, params, sizeP=SIZE_P, change=CHANGE):
    B, C, H, W = x0_nchw.shape
    BC = B * C

    # Row pitch of the flat q-space.  Minimum is W + P - 1 (so every 7x7 tap window
    # stays inside one flat slice); round up so Q = H*Wp is a 128-lane multiple
    # (lane-dense stores everywhere).  Fall back to the minimum if rounding would
    # blow up the lane count (e.g. H not a power-of-two friendly value).
    wp_min = W + sizeP - 1
    g = 128 // math.gcd(H, 128)
    Wp = _round_up(wp_min, g)
    if Wp > wp_min + 32:
        Wp = wp_min
    Q = H * Wp
    KDIM = sizeP * sizeP * BC
    # Padded flat buffer must cover reads [s, s+Q) with s up to (P-1)*(Wp+1);
    # round to a 128-lane multiple so the zero-fill store is unmasked.
    PADLEN = _round_up(Q + (sizeP - 1) * Wp + sizeP, 128)

    basis = get_basis(theta, sizeP)                    # (B, P, P, 2*P*P)
    w1 = _filter_matrix(basis, params['w1'])           # (BC, KDIM)
    w2 = _filter_matrix(basis, params['w2'])
    c1 = jnp.tile(params['c1'].reshape(1, C), (B, 1)).reshape(BC, 1)
    c2 = jnp.tile(params['c2'].reshape(1, C), (B, 1)).reshape(BC, 1)
    # valid-lane mask for q-space (static, built at trace time)
    mask = jnp.asarray((np.arange(Q) % Wp < W).astype(np.float32).reshape(1, Q))
    x0_flat = x0_nchw.reshape(BC, H * W)               # free metadata reshape

    kernel = functools.partial(
        _fused_block_kernel, n_batch=B, n_chan=C, height=H, width=W,
        wp=Wp, sizeP=sizeP, change=change)

    out_q = pl.pallas_call(
        kernel,
        out_shape=jax.ShapeDtypeStruct((BC, Q), jnp.float32),
        grid=(1,),
        in_specs=[
            pl.BlockSpec((BC, H * W), lambda i: (0, 0)),
            pl.BlockSpec((BC, KDIM), lambda i: (0, 0)),
            pl.BlockSpec((BC, KDIM), lambda i: (0, 0)),
            pl.BlockSpec((BC, 1), lambda i: (0, 0)),
            pl.BlockSpec((BC, 1), lambda i: (0, 0)),
            pl.BlockSpec((1, Q), lambda i: (0, 0)),
        ],
        out_specs=pl.BlockSpec((BC, Q), lambda i: (0, 0)),
        scratch_shapes=[
            pltpu.VMEM((BC, PADLEN), jnp.float32),     # padded x0 (flat)
            pltpu.VMEM((BC, PADLEN), jnp.float32),     # padded x1 (flat)
            pltpu.VMEM((KDIM, Q), jnp.float32),        # im2col matrix (reused)
        ],
        compiler_params=pltpu.CompilerParams(
            dimension_semantics=("arbitrary",)),
    )(x0_flat, w1, w2, c1, c2, mask)

    # (BC, H*Wp) -> (B, C, H, Wp) is a free reshape; drop the Wp-W garbage lanes.
    return out_q.reshape(B, C, H, Wp)[:, :, :, :W]


# ----------------------------------------------------------------------------
# Pure-JAX reference (for correctness check)
# ----------------------------------------------------------------------------
def batch_norm_stats(x_nhwc):
    mean = jnp.mean(x_nhwc, axis=(0, 1, 2))
    var = jnp.var(x_nhwc, axis=(0, 1, 2))
    return mean, 1.0 / jnp.sqrt(var + BN_EPS)


def _ref_conv(x_nhwc, filt, bias):
    outs = []
    for b in range(x_nhwc.shape[0]):
        o = jax.lax.conv_general_dilated(
            x_nhwc[b:b + 1], filt[b], window_strides=(1, 1), padding='SAME',
            dimension_numbers=('NHWC', 'HWIO', 'NHWC'),
            precision=jax.lax.Precision.HIGHEST)
        outs.append(o)
    return jnp.concatenate(outs, axis=0) + bias.reshape(1, 1, 1, -1)


def rot_res_block_ref(x0_nchw, theta, params, sizeP=SIZE_P, change=CHANGE):
    x0 = jnp.transpose(x0_nchw, (0, 2, 3, 1))
    basis = get_basis(theta, sizeP)
    ck1 = jnp.einsum('bijk,nkm->bijmn', basis, params['w1'])
    ck2 = jnp.einsum('bijk,nkm->bijmn', basis, params['w2'])
    x1 = _ref_conv(x0, ck1, params['c1'])
    m1, i1 = batch_norm_stats(x1)
    x1 = jnp.maximum((x1 - m1) * i1, 0.0)
    x2 = _ref_conv(x1, ck2, params['c2'])
    m2, i2 = batch_norm_stats(x2)
    out = ((x2 - m2) * i2) * change + x0
    return jnp.transpose(out, (0, 3, 1, 2))


if __name__ == "__main__":
    key = jax.random.PRNGKey(0)
    kx, kt, kp = jax.random.split(key, 3)
    B, C, H, W = 2, CHANNELS, 16, 16
    x0 = jax.random.normal(kx, (B, C, H, W), jnp.float32)            # NCHW input
    theta = jax.random.uniform(kt, (B, 1), jnp.float32, 0.0, 2.0 * np.pi)
    params = init_params(kp, C, SIZE_P)

    fwd = jax.jit(rot_res_block)
    out = jax.block_until_ready(fwd(x0, theta, params))
    ref = jax.block_until_ready(rot_res_block_ref(x0, theta, params))
    # Kernel uses default (bf16-pass) MXU precision; reference uses HIGHEST,
    # hence the slightly relaxed atol.
    np.testing.assert_allclose(np.asarray(out), np.asarray(ref), rtol=1e-2, atol=5e-3)
    print("KERNEL_OK")
</pallas_src>

<mosaic_0001>
module attributes {stable_mosaic.version = 11 : i64} {
  func.func @_fused_block_kernel(%arg0: i32, %arg1: memref<8x256xf32, #tpu.memory_space<vmem>>, %arg2: memref<8x392xf32, #tpu.memory_space<vmem>>, %arg3: memref<8x392xf32, #tpu.memory_space<vmem>>, %arg4: memref<8x1xf32, #tpu.memory_space<vmem>>, %arg5: memref<8x1xf32, #tpu.memory_space<vmem>>, %arg6: memref<1x384xf32, #tpu.memory_space<vmem>>, %arg7: memref<8x384xf32, #tpu.memory_space<vmem>>, %arg8: memref<8x640xf32, #tpu.memory_space<vmem>>, %arg9: memref<8x640xf32, #tpu.memory_space<vmem>>, %arg10: memref<392x384xf32, #tpu.memory_space<vmem>>) attributes {dimension_semantics = [#tpu.dimension_semantics<arbitrary>], iteration_bounds = array<i64: 1>, scalar_prefetch = 0 : i64, scratch_operands = 3 : i64, tpu.core_type = #tpu.core_type<tc>, window_params = [{pipeline_mode = #tpu.pipeline_mode<synchronous>, transform_indices = @transform_0, window_bounds = array<i64: 8, 256>}, {pipeline_mode = #tpu.pipeline_mode<synchronous>, transform_indices = @transform_1, window_bounds = array<i64: 8, 392>}, {pipeline_mode = #tpu.pipeline_mode<synchronous>, transform_indices = @transform_2, window_bounds = array<i64: 8, 392>}, {pipeline_mode = #tpu.pipeline_mode<synchronous>, transform_indices = @transform_3, window_bounds = array<i64: 8, 1>}, {pipeline_mode = #tpu.pipeline_mode<synchronous>, transform_indices = @transform_4, window_bounds = array<i64: 8, 1>}, {pipeline_mode = #tpu.pipeline_mode<synchronous>, transform_indices = @transform_5, window_bounds = array<i64: 1, 384>}, {pipeline_mode = #tpu.pipeline_mode<synchronous>, transform_indices = @transform_6, window_bounds = array<i64: 8, 384>}]} {
    %c0 = arith.constant 0 : index
    %c0_0 = arith.constant 0 : index
    %0 = vector.load %arg6[%c0, %c0_0] : memref<1x384xf32, #tpu.memory_space<vmem>>, vector<1x384xf32>
    %cst = arith.constant 0.000000e+00 : f32
    %1 = vector.broadcast %cst : f32 to vector<8x640xf32>
    %c0_1 = arith.constant 0 : index
    %c0_2 = arith.constant 0 : index
    %2 = vector.load %arg8[%c0_1, %c0_2] : memref<8x640xf32, #tpu.memory_space<vmem>>, vector<8x640xf32>
    tpu.vector_store %arg8[%c0_1, %c0_2], %1 {strides = array<i32>} : memref<8x640xf32, #tpu.memory_space<vmem>>, vector<8x640xf32>,
    %c0_3 = arith.constant 0 : index
    %c0_4 = arith.constant 0 : index
    %3 = vector.load %arg1[%c0_3, %c0_4] : memref<8x256xf32, #tpu.memory_space<vmem>>, vector<8x16xf32>
    %c0_5 = arith.constant 0 : index
    %c75 = arith.constant 75 : index
    %4 = vector.load %arg8[%c0_5, %c75] : memref<8x640xf32, #tpu.memory_space<vmem>>, vector<8x16xf32>
    tpu.vector_store %arg8[%c0_5, %c75], %3 {strides = array<i32>} : memref<8x640xf32, #tpu.memory_space<vmem>>, vector<8x16xf32>,
    %c0_6 = arith.constant 0 : index
    %c16 = arith.constant 16 : index
    %5 = vector.load %arg1[%c0_6, %c16] : memref<8x256xf32, #tpu.memory_space<vmem>>, vector<8x16xf32>
    %c0_7 = arith.constant 0 : index
    %c99 = arith.constant 99 : index
    %6 = vector.load %arg8[%c0_7, %c99] : memref<8x640xf32, #tpu.memory_space<vmem>>, vector<8x16xf32>
    tpu.vector_store %arg8[%c0_7, %c99], %5 {strides = array<i32>} : memref<8x640xf32, #tpu.memory_space<vmem>>, vector<8x16xf32>,
    %c0_8 = arith.constant 0 : index
    %c32 = arith.constant 32 : index
    %7 = vector.load %arg1[%c0_8, %c32] : memref<8x256xf32, #tpu.memory_space<vmem>>, vector<8x16xf32>
    %c0_9 = arith.constant 0 : index
    %c123 = arith.constant 123 : index
    %8 = vector.load %arg8[%c0_9, %c123] : memref<8x640xf32, #tpu.memory_space<vmem>>, vector<8x16xf32>
    tpu.vector_store %arg8[%c0_9, %c123], %7 {strides = array<i32>} : memref<8x640xf32, #tpu.memory_space<vmem>>, vector<8x16xf32>,
    %c0_10 = arith.constant 0 : index
    %c48 = arith.constant 48 : index
    %9 = vector.load %arg1[%c0_10, %c48] : memref<8x256xf32, #tpu.memory_space<vmem>>, vector<8x16xf32>
    %c0_11 = arith.constant 0 : index
    %c147 = arith.constant 147 : index
    %10 = vector.load %arg8[%c0_11, %c147] : memref<8x640xf32, #tpu.memory_space<vmem>>, vector<8x16xf32>
    tpu.vector_store %arg8[%c0_11, %c147], %9 {strides = array<i32>} : memref<8x640xf32, #tpu.memory_space<vmem>>, vector<8x16xf32>,
    %c0_12 = arith.constant 0 : index
    %c64 = arith.constant 64 : index
    %11 = vector.load %arg1[%c0_12, %c64] : memref<8x256xf32, #tpu.memory_space<vmem>>, vector<8x16xf32>
    %c0_13 = arith.constant 0 : index
    %c171 = arith.constant 171 : index
    %12 = vector.load %arg8[%c0_13, %c171] : memref<8x640xf32, #tpu.memory_space<vmem>>, vector<8x16xf32>
    tpu.vector_store %arg8[%c0_13, %c171], %11 {strides = array<i32>} : memref<8x640xf32, #tpu.memory_space<vmem>>, vector<8x16xf32>,
    %c0_14 = arith.constant 0 : index
    %c80 = arith.constant 80 : index
    %13 = vector.load %arg1[%c0_14, %c80] : memref<8x256xf32, #tpu.memory_space<vmem>>, vector<8x16xf32>
    %c0_15 = arith.constant 0 : index
    %c195 = arith.constant 195 : index
    %14 = vector.load %arg8[%c0_15, %c195] : memref<8x640xf32, #tpu.memory_space<vmem>>, vector<8x16xf32>
    tpu.vector_store %arg8[%c0_15, %c195], %13 {strides = array<i32>} : memref<8x640xf32, #tpu.memory_space<vmem>>, vector<8x16xf32>,
    %c0_16 = arith.constant 0 : index
    %c96 = arith.constant 96 : index
    %15 = vector.load %arg1[%c0_16, %c96] : memref<8x256xf32, #tpu.memory_space<vmem>>, vector<8x16xf32>
    %c0_17 = arith.constant 0 : index
    %c219 = arith.constant 219 : index
    %16 = vector.load %arg8[%c0_17, %c219] : memref<8x640xf32, #tpu.memory_space<vmem>>, vector<8x16xf32>
    tpu.vector_store %arg8[%c0_17, %c219], %15 {strides = array<i32>} : memref<8x640xf32, #tpu.memory_space<vmem>>, vector<8x16xf32>,
    %c0_18 = arith.constant 0 : index
    %c112 = arith.constant 112 : index
    %17 = vector.load %arg1[%c0_18, %c112] : memref<8x256xf32, #tpu.memory_space<vmem>>, vector<8x16xf32>
    %c0_19 = arith.constant 0 : index
    %c243 = arith.constant 243 : index
    %18 = vector.load %arg8[%c0_19, %c243] : memref<8x640xf32, #tpu.memory_space<vmem>>, vector<8x16xf32>
    tpu.vector_store %arg8[%c0_19, %c243], %17 {strides = array<i32>} : memref<8x640xf32, #tpu.memory_space<vmem>>, vector<8x16xf32>,
    %c0_20 = arith.constant 0 : index
    %c128 = arith.constant 128 : index
    %19 = vector.load %arg1[%c0_20, %c128] : memref<8x256xf32, #tpu.memory_space<vmem>>, vector<8x16xf32>
    %c0_21 = arith.constant 0 : index
    %c267 = arith.constant 267 : index
    %20 = vector.load %arg8[%c0_21, %c267] : memref<8x640xf32, #tpu.memory_space<vmem>>, vector<8x16xf32>
    tpu.vector_store %arg8[%c0_21, %c267], %19 {strides = array<i32>} : memref<8x640xf32, #tpu.memory_space<vmem>>, vector<8x16xf32>,
    %c0_22 = arith.constant 0 : index
    %c144 = arith.constant 144 : index
    %21 = vector.load %arg1[%c0_22, %c144] : memref<8x256xf32, #tpu.memory_space<vmem>>, vector<8x16xf32>
    %c0_23 = arith.constant 0 : index
    %c291 = arith.constant 291 : index
    %22 = vector.load %arg8[%c0_23, %c291] : memref<8x640xf32, #tpu.memory_space<vmem>>, vector<8x16xf32>
    tpu.vector_store %arg8[%c0_23, %c291], %21 {strides = array<i32>} : memref<8x640xf32, #tpu.memory_space<vmem>>, vector<8x16xf32>,
    %c0_24 = arith.constant 0 : index
    %c160 = arith.constant 160 : index
    %23 = vector.load %arg1[%c0_24, %c160] : memref<8x256xf32, #tpu.memory_space<vmem>>, vector<8x16xf32>
    %c0_25 = arith.constant 0 : index
    %c315 = arith.constant 315 : index
    %24 = vector.load %arg8[%c0_25, %c315] : memref<8x640xf32, #tpu.memory_space<vmem>>, vector<8x16xf32>
    tpu.vector_store %arg8[%c0_25, %c315], %23 {strides = array<i32>} : memref<8x640xf32, #tpu.memory_space<vmem>>, vector<8x16xf32>,
    %c0_26 = arith.constant 0 : index
    %c176 = arith.constant 176 : index
    %25 = vector.load %arg1[%c0_26, %c176] : memref<8x256xf32, #tpu.memory_space<vmem>>, vector<8x16xf32>
    %c0_27 = arith.constant 0 : index
    %c339 = arith.constant 339 : index
    %26 = vector.load %arg8[%c0_27, %c339] : memref<8x640xf32, #tpu.memory_space<vmem>>, vector<8x16xf32>
    tpu.vector_store %arg8[%c0_27, %c339], %25 {strides = array<i32>} : memref<8x640xf32, #tpu.memory_space<vmem>>, vector<8x16xf32>,
    %c0_28 = arith.constant 0 : index
    %c192 = arith.constant 192 : index
    %27 = vector.load %arg1[%c0_28, %c192] : memref<8x256xf32, #tpu.memory_space<vmem>>, vector<8x16xf32>
    %c0_29 = arith.constant 0 : index
    %c363 = arith.constant 363 : index
    %28 = vector.load %arg8[%c0_29, %c363] : memref<8x640xf32, #tpu.memory_space<vmem>>, vector<8x16xf32>
    tpu.vector_store %arg8[%c0_29, %c363], %27 {strides = array<i32>} : memref<8x640xf32, #tpu.memory_space<vmem>>, vector<8x16xf32>,
    %c0_30 = arith.constant 0 : index
    %c208 = arith.constant 208 : index
    %29 = vector.load %arg1[%c0_30, %c208] : memref<8x256xf32, #tpu.memory_space<vmem>>, vector<8x16xf32>
    %c0_31 = arith.constant 0 : index
    %c387 = arith.constant 387 : index
    %30 = vector.load %arg8[%c0_31, %c387] : memref<8x640xf32, #tpu.memory_space<vmem>>, vector<8x16xf32>
    tpu.vector_store %arg8[%c0_31, %c387], %29 {strides = array<i32>} : memref<8x640xf32, #tpu.memory_space<vmem>>, vector<8x16xf32>,
    %c0_32 = arith.constant 0 : index
    %c224 = arith.constant 224 : index
    %31 = vector.load %arg1[%c0_32, %c224] : memref<8x256xf32, #tpu.memory_space<vmem>>, vector<8x16xf32>
    %c0_33 = arith.constant 0 : index
    %c411 = arith.constant 411 : index
    %32 = vector.load %arg8[%c0_33, %c411] : memref<8x640xf32, #tpu.memory_space<vmem>>, vector<8x16xf32>
    tpu.vector_store %arg8[%c0_33, %c411], %31 {strides = array<i32>} : memref<8x640xf32, #tpu.memory_space<vmem>>, vector<8x16xf32>,
    %c0_34 = arith.constant 0 : index
    %c240 = arith.constant 240 : index
    %33 = vector.load %arg1[%c0_34, %c240] : memref<8x256xf32, #tpu.memory_space<vmem>>, vector<8x16xf32>
    %c0_35 = arith.constant 0 : index
    %c435 = arith.constant 435 : index
    %34 = vector.load %arg8[%c0_35, %c435] : memref<8x640xf32, #tpu.memory_space<vmem>>, vector<8x16xf32>
    tpu.vector_store %arg8[%c0_35, %c435], %33 {strides = array<i32>} : memref<8x640xf32, #tpu.memory_space<vmem>>, vector<8x16xf32>,
    %c0_36 = arith.constant 0 : index
    %c0_37 = arith.constant 0 : index
    %35 = vector.load %arg8[%c0_36, %c0_37] : memref<8x640xf32, #tpu.memory_space<vmem>>, vector<8x384xf32>
    %c0_38 = arith.constant 0 : index
    %c0_39 = arith.constant 0 : index
    %36 = vector.load %arg10[%c0_38, %c0_39] : memref<392x384xf32, #tpu.memory_space<vmem>>, vector<8x384xf32>
    tpu.vector_store %arg10[%c0_38, %c0_39], %35 {strides = array<i32>} : memref<392x384xf32, #tpu.memory_space<vmem>>, vector<8x384xf32>,
    %c0_40 = arith.constant 0 : index
    %c1 = arith.constant 1 : index
    %37 = vector.load %arg8[%c0_40, %c1] : memref<8x640xf32, #tpu.memory_space<vmem>>, vector<8x384xf32>
    %c8 = arith.constant 8 : index
    %c0_41 = arith.constant 0 : index
    %38 = vector.load %arg10[%c8, %c0_41] : memref<392x384xf32, #tpu.memory_space<vmem>>, vector<8x384xf32>
    tpu.vector_store %arg10[%c8, %c0_41], %37 {strides = array<i32>} : memref<392x384xf32, #tpu.memory_space<vmem>>, vector<8x384xf32>,
    %c0_42 = arith.constant 0 : index
    %c2 = arith.constant 2 : index
    %39 = vector.load %arg8[%c0_42, %c2] : memref<8x640xf32, #tpu.memory_space<vmem>>, vector<8x384xf32>
    %c16_43 = arith.constant 16 : index
    %c0_44 = arith.constant 0 : index
    %40 = vector.load %arg10[%c16_43, %c0_44] : memref<392x384xf32, #tpu.memory_space<vmem>>, vector<8x384xf32>
    tpu.vector_store %arg10[%c16_43, %c0_44], %39 {strides = array<i32>} : memref<392x384xf32, #tpu.memory_space<vmem>>, vector<8x384xf32>,
    %c0_45 = arith.constant 0 : index
    %c3 = arith.constant 3 : index
    %41 = vector.load %arg8[%c0_45, %c3] : memref<8x640xf32, #tpu.memory_space<vmem>>, vector<8x384xf32>
    %c24 = arith.constant 24 : index
    %c0_46 = arith.constant 0 : index
    %42 = vector.load %arg10[%c24, %c0_46] : memref<392x384xf32, #tpu.memory_space<vmem>>, vector<8x384xf32>
    tpu.vector_store %arg10[%c24, %c0_46], %41 {strides = array<i32>} : memref<392x384xf32, #tpu.memory_space<vmem>>, vector<8x384xf32>,
    %c0_47 = arith.constant 0 : index
    %c4 = arith.constant 4 : index
    %43 = vector.load %arg8[%c0_47, %c4] : memref<8x640xf32, #tpu.memory_space<vmem>>, vector<8x384xf32>
    %c32_48 = arith.constant 32 : index
    %c0_49 = arith.constant 0 : index
    %44 = vector.load %arg10[%c32_48, %c0_49] : memref<392x384xf32, #tpu.memory_space<vmem>>, vector<8x384xf32>
    tpu.vector_store %arg10[%c32_48, %c0_49], %43 {strides = array<i32>} : memref<392x384xf32, #tpu.memory_space<vmem>>, vector<8x384xf32>,
    %c0_50 = arith.constant 0 : index
    %c5 = arith.constant 5 : index
    %45 = vector.load %arg8[%c0_50, %c5] : memref<8x640xf32, #tpu.memory_space<vmem>>, vector<8x384xf32>
    %c40 = arith.constant 40 : index
    %c0_51 = arith.constant 0 : index
    %46 = vector.load %arg10[%c40, %c0_51] : memref<392x384xf32, #tpu.memory_space<vmem>>, vector<8x384xf32>
    tpu.vector_store %arg10[%c40, %c0_51], %45 {strides = array<i32>} : memref<392x384xf32, #tpu.memory_space<vmem>>, vector<8x384xf32>,
    %c0_52 = arith.constant 0 : index
    %c6 = arith.constant 6 : index
    %47 = vector.load %arg8[%c0_52, %c6] : memref<8x640xf32, #tpu.memory_space<vmem>>, vector<8x384xf32>
    %c48_53 = arith.constant 48 : index
    %c0_54 = arith.constant 0 : index
    %48 = vector.load %arg10[%c48_53, %c0_54] : memref<392x384xf32, #tpu.memory_space<vmem>>, vector<8x384xf32>
    tpu.vector_store %arg10[%c48_53, %c0_54], %47 {strides = array<i32>} : memref<392x384xf32, #tpu.memory_space<vmem>>, vector<8x384xf32>,
    %c0_55 = arith.constant 0 : index
    %c24_56 = arith.constant 24 : index
    %49 = vector.load %arg8[%c0_55, %c24_56] : memref<8x640xf32, #tpu.memory_space<vmem>>, vector<8x384xf32>
    %c56 = arith.constant 56 : index
    %c0_57 = arith.constant 0 : index
    %50 = vector.load %arg10[%c56, %c0_57] : memref<392x384xf32, #tpu.memory_space<vmem>>, vector<8x384xf32>
    tpu.vector_store %arg10[%c56, %c0_57], %49 {strides = array<i32>} : memref<392x384xf32, #tpu.memory_space<vmem>>, vector<8x384xf32>,
    %c0_58 = arith.constant 0 : index
    %c25 = arith.constant 25 : index
    %51 = vector.load %arg8[%c0_58, %c25] : memref<8x640xf32, #tpu.memory_space<vmem>>, vector<8x384xf32>
    %c64_59 = arith.constant 64 : index
    %c0_60 = arith.constant 0 : index
    %52 = vector.load %arg10[%c64_59, %c0_60] : memref<392x384xf32, #tpu.memory_space<vmem>>, vector<8x384xf32>
    tpu.vector_store %arg10[%c64_59, %c0_60], %51 {strides = array<i32>} : memref<392x384xf32, #tpu.memory_space<vmem>>, vector<8x384xf32>,
    %c0_61 = arith.constant 0 : index
    %c26 = arith.constant 26 : index
    %53 = vector.load %arg8[%c0_61, %c26] : memref<8x640xf32, #tpu.memory_space<vmem>>, vector<8x384xf32>
    %c72 = arith.constant 72 : index
    %c0_62 = arith.constant 0 : index
    %54 = vector.load %arg10[%c72, %c0_62] : memref<392x384xf32, #tpu.memory_space<vmem>>, vector<8x384xf32>
    tpu.vector_store %arg10[%c72, %c0_62], %53 {strides = array<i32>} : memref<392x384xf32, #tpu.memory_space<vmem>>, vector<8x384xf32>,
    %c0_63 = arith.constant 0 : index
    %c27 = arith.constant 27 : index
    %55 = vector.load %arg8[%c0_63, %c27] : memref<8x640xf32, #tpu.memory_space<vmem>>, vector<8x384xf32>
    %c80_64 = arith.constant 80 : index
    %c0_65 = arith.constant 0 : index
    %56 = vector.load %arg10[%c80_64, %c0_65] : memref<392x384xf32, #tpu.memory_space<vmem>>, vector<8x384xf32>
    tpu.vector_store %arg10[%c80_64, %c0_65], %55 {strides = array<i32>} : memref<392x384xf32, #tpu.memory_space<vmem>>, vector<8x384xf32>,
    %c0_66 = arith.constant 0 : index
    %c28 = arith.constant 28 : index
    %57 = vector.load %arg8[%c0_66, %c28] : memref<8x640xf32, #tpu.memory_space<vmem>>, vector<8x384xf32>
    %c88 = arith.constant 88 : index
    %c0_67 = arith.constant 0 : index
    %58 = vector.load %arg10[%c88, %c0_67] : memref<392x384xf32, #tpu.memory_space<vmem>>, vector<8x384xf32>
    tpu.vector_store %arg10[%c88, %c0_67], %57 {strides = array<i32>} : memref<392x384xf32, #tpu.memory_space<vmem>>, vector<8x384xf32>,
    %c0_68 = arith.constant 0 : index
    %c29 = arith.constant 29 : index
    %59 = vector.load %arg8[%c0_68, %c29] : memref<8x640xf32, #tpu.memory_space<vmem>>, vector<8x384xf32>
    %c96_69 = arith.constant 96 : index
    %c0_70 = arith.constant 0 : index
    %60 = vector.load %arg10[%c96_69, %c0_70] : memref<392x384xf32, #tpu.memory_space<vmem>>, vector<8x384xf32>
    tpu.vector_store %arg10[%c96_69, %c0_70], %59 {strides = array<i32>} : memref<392x384xf32, #tpu.memory_space<vmem>>, vector<8x384xf32>,
    %c0_71 = arith.constant 0 : index
    %c30 = arith.constant 30 : index
    %61 = vector.load %arg8[%c0_71, %c30] : memref<8x640xf32, #tpu.memory_space<vmem>>, vector<8x384xf32>
    %c104 = arith.constant 104 : index
    %c0_72 = arith.constant 0 : index
    %62 = vector.load %arg10[%c104, %c0_72] : memref<392x384xf32, #tpu.memory_space<vmem>>, vector<8x384xf32>
    tpu.vector_store %arg10[%c104, %c0_72], %61 {strides = array<i32>} : memref<392x384xf32, #tpu.memory_space<vmem>>, vector<8x384xf32>,
    %c0_73 = arith.constant 0 : index
    %c48_74 = arith.constant 48 : index
    %63 = vector.load %arg8[%c0_73, %c48_74] : memref<8x640xf32, #tpu.memory_space<vmem>>, vector<8x384xf32>
    %c112_75 = arith.constant 112 : index
    %c0_76 = arith.constant 0 : index
    %64 = vector.load %arg10[%c112_75, %c0_76] : memref<392x384xf32, #tpu.memory_space<vmem>>, vector<8x384xf32>
    tpu.vector_store %arg10[%c112_75, %c0_76], %63 {strides = array<i32>} : memref<392x384xf32, #tpu.memory_space<vmem>>, vector<8x384xf32>,
    %c0_77 = arith.constant 0 : index
    %c49 = arith.constant 49 : index
    %65 = vector.load %arg8[%c0_77, %c49] : memref<8x640xf32, #tpu.memory_space<vmem>>, vector<8x384xf32>
    %c120 = arith.constant 120 : index
    %c0_78 = arith.constant 0 : index
    %66 = vector.load %arg10[%c120, %c0_78] : memref<392x384xf32, #tpu.memory_space<vmem>>, vector<8x384xf32>
    tpu.vector_store %arg10[%c120, %c0_78], %65 {strides = array<i32>} : memref<392x384xf32, #tpu.memory_space<vmem>>, vector<8x384xf32>,
    %c0_79 = arith.constant 0 : index
    %c50 = arith.constant 50 : index
    %67 = vector.load %arg8[%c0_79, %c50] : memref<8x640xf32, #tpu.memory_space<vmem>>, vector<8x384xf32>
    %c128_80 = arith.constant 128 : index
    %c0_81 = arith.constant 0 : index
    %68 = vector.load %arg10[%c128_80, %c0_81] : memref<392x384xf32, #tpu.memory_space<vmem>>, vector<8x384xf32>
    tpu.vector_store %arg10[%c128_80, %c0_81], %67 {strides = array<i32>} : memref<392x384xf32, #tpu.memory_space<vmem>>, vector<8x384xf32>,
    %c0_82 = arith.constant 0 : index
    %c51 = arith.constant 51 : index
    %69 = vector.load %arg8[%c0_82, %c51] : memref<8x640xf32, #tpu.memory_space<vmem>>, vector<8x384xf32>
    %c136 = arith.constant 136 : index
    %c0_83 = arith.constant 0 : index
    %70 = vector.load %arg10[%c136, %c0_83] : memref<392x384xf32, #tpu.memory_space<vmem>>, vector<8x384xf32>
    tpu.vector_store %arg10[%c136, %c0_83], %69 {strides = array<i32>} : memref<392x384xf32, #tpu.memory_space<vmem>>, vector<8x384xf32>,
    %c0_84 = arith.constant 0 : index
    %c52 = arith.constant 52 : index
    %71 = vector.load %arg8[%c0_84, %c52] : memref<8x640xf32, #tpu.memory_space<vmem>>, vector<8x384xf32>
    %c144_85 = arith.constant 144 : index
    %c0_86 = arith.constant 0 : index
    %72 = vector.load %arg10[%c144_85, %c0_86] : memref<392x384xf32, #tpu.memory_space<vmem>>, vector<8x384xf32>
    tpu.vector_store %arg10[%c144_85, %c0_86], %71 {strides = array<i32>} : memref<392x384xf32, #tpu.memory_space<vmem>>, vector<8x384xf32>,
    %c0_87 = arith.constant 0 : index
    %c53 = arith.constant 53 : index
    %73 = vector.load %arg8[%c0_87, %c53] : memref<8x640xf32, #tpu.memory_space<vmem>>, vector<8x384xf32>
    %c152 = arith.constant 152 : index
    %c0_88 = arith.constant 0 : index
    %74 = vector.load %arg10[%c152, %c0_88] : memref<392x384xf32, #tpu.memory_space<vmem>>, vector<8x384xf32>
    tpu.vector_store %arg10[%c152, %c0_88], %73 {strides = array<i32>} : memref<392x384xf32, #tpu.memory_space<vmem>>, vector<8x384xf32>,
    %c0_89 = arith.constant 0 : index
    %c54 = arith.constant 54 : index
    %75 = vector.load %arg8[%c0_89, %c54] : memref<8x640xf32, #tpu.memory_space<vmem>>, vector<8x384xf32>
    %c160_90 = arith.constant 160 : index
    %c0_91 = arith.constant 0 : index
    %76 = vector.load %arg10[%c160_90, %c0_91] : memref<392x384xf32, #tpu.memory_space<vmem>>, vector<8x384xf32>
    tpu.vector_store %arg10[%c160_90, %c0_91], %75 {strides = array<i32>} : memref<392x384xf32, #tpu.memory_space<vmem>>, vector<8x384xf32>,
    %c0_92 = arith.constant 0 : index
    %c72_93 = arith.constant 72 : index
    %77 = vector.load %arg8[%c0_92, %c72_93] : memref<8x640xf32, #tpu.memory_space<vmem>>, vector<8x384xf32>
    %c168 = arith.constant 168 : index
    %c0_94 = arith.constant 0 : index
    %78 = vector.load %arg10[%c168, %c0_94] : memref<392x384xf32, #tpu.memory_space<vmem>>, vector<8x384xf32>
    tpu.vector_store %arg10[%c168, %c0_94], %77 {strides = array<i32>} : memref<392x384xf32, #tpu.memory_space<vmem>>, vector<8x384xf32>,
    %c0_95 = arith.constant 0 : index
    %c73 = arith.constant 73 : index
    %79 = vector.load %arg8[%c0_95, %c73] : memref<8x640xf32, #tpu.memory_space<vmem>>, vector<8x384xf32>
    %c176_96 = arith.constant 176 : index
    %c0_97 = arith.constant 0 : index
    %80 = vector.load %arg10[%c176_96, %c0_97] : memref<392x384xf32, #tpu.memory_space<vmem>>, vector<8x384xf32>
    tpu.vector_store %arg10[%c176_96, %c0_97], %79 {strides = array<i32>} : memref<392x384xf32, #tpu.memory_space<vmem>>, vector<8x384xf32>,
    %c0_98 = arith.constant 0 : index
    %c74 = arith.constant 74 : index
    %81 = vector.load %arg8[%c0_98, %c74] : memref<8x640xf32, #tpu.memory_space<vmem>>, vector<8x384xf32>
    %c184 = arith.constant 184 : index
    %c0_99 = arith.constant 0 : index
    %82 = vector.load %arg10[%c184, %c0_99] : memref<392x384xf32, #tpu.memory_space<vmem>>, vector<8x384xf32>
    tpu.vector_store %arg10[%c184, %c0_99], %81 {strides = array<i32>} : memref<392x384xf32, #tpu.memory_space<vmem>>, vector<8x384xf32>,
    %c0_100 = arith.constant 0 : index
    %c75_101 = arith.constant 75 : index
    %83 = vector.load %arg8[%c0_100, %c75_101] : memref<8x640xf32, #tpu.memory_space<vmem>>, vector<8x384xf32>
    %c192_102 = arith.constant 192 : index
    %c0_103 = arith.constant 0 : index
    %84 = vector.load %arg10[%c192_102, %c0_103] : memref<392x384xf32, #tpu.memory_space<vmem>>, vector<8x384xf32>
    tpu.vector_store %arg10[%c192_102, %c0_103], %83 {strides = array<i32>} : memref<392x384xf32, #tpu.memory_space<vmem>>, vector<8x384xf32>,
    %c0_104 = arith.constant 0 : index
    %c76 = arith.constant 76 : index
    %85 = vector.load %arg8[%c0_104, %c76] : memref<8x640xf32, #tpu.memory_space<vmem>>, vector<8x384xf32>
    %c200 = arith.constant 200 : index
    %c0_105 = arith.constant 0 : index
    %86 = vector.load %arg10[%c200, %c0_105] : memref<392x384xf32, #tpu.memory_space<vmem>>, vector<8x384xf32>
    tpu.vector_store %arg10[%c200, %c0_105], %85 {strides = array<i32>} : memref<392x384xf32, #tpu.memory_space<vmem>>, vector<8x384xf32>,
    %c0_106 = arith.constant 0 : index
    %c77 = arith.constant 77 : index
    %87 = vector.load %arg8[%c0_106, %c77] : memref<8x640xf32, #tpu.memory_space<vmem>>, vector<8x384xf32>
    %c208_107 = arith.constant 208 : index
    %c0_108 = arith.constant 0 : index
    %88 = vector.load %arg10[%c208_107, %c0_108] : memref<392x384xf32, #tpu.memory_space<vmem>>, vector<8x384xf32>
    tpu.vector_store %arg10[%c208_107, %c0_108], %87 {strides = array<i32>} : memref<392x384xf32, #tpu.memory_space<vmem>>, vector<8x384xf32>,
    %c0_109 = arith.constant 0 : index
    %c78 = arith.constant 78 : index
    %89 = vector.load %arg8[%c0_109, %c78] : memref<8x640xf32, #tpu.memory_space<vmem>>, vector<8x384xf32>
    %c216 = arith.constant 216 : index
    %c0_110 = arith.constant 0 : index
    %90 = vector.load %arg10[%c216, %c0_110] : memref<392x384xf32, #tpu.memory_space<vmem>>, vector<8x384xf32>
    tpu.vector_store %arg10[%c216, %c0_110], %89 {strides = array<i32>} : memref<392x384xf32, #tpu.memory_space<vmem>>, vector<8x384xf32>,
    %c0_111 = arith.constant 0 : index
    %c96_112 = arith.constant 96 : index
    %91 = vector.load %arg8[%c0_111, %c96_112] : memref<8x640xf32, #tpu.memory_space<vmem>>, vector<8x384xf32>
    %c224_113 = arith.constant 224 : index
    %c0_114 = arith.constant 0 : index
    %92 = vector.load %arg10[%c224_113, %c0_114] : memref<392x384xf32, #tpu.memory_space<vmem>>, vector<8x384xf32>
    tpu.vector_store %arg10[%c224_113, %c0_114], %91 {strides = array<i32>} : memref<392x384xf32, #tpu.memory_space<vmem>>, vector<8x384xf32>,
    %c0_115 = arith.constant 0 : index
    %c97 = arith.constant 97 : index
    %93 = vector.load %arg8[%c0_115, %c97] : memref<8x640xf32, #tpu.memory_space<vmem>>, vector<8x384xf32>
    %c232 = arith.constant 232 : index
    %c0_116 = arith.constant 0 : index
    %94 = vector.load %arg10[%c232, %c0_116] : memref<392x384xf32, #tpu.memory_space<vmem>>, vector<8x384xf32>
    tpu.vector_store %arg10[%c232, %c0_116], %93 {strides = array<i32>} : memref<392x384xf32, #tpu.memory_space<vmem>>, vector<8x384xf32>,
    %c0_117 = arith.constant 0 : index
    %c98 = arith.constant 98 : index
    %95 = vector.load %arg8[%c0_117, %c98] : memref<8x640xf32, #tpu.memory_space<vmem>>, vector<8x384xf32>
    %c240_118 = arith.constant 240 : index
    %c0_119 = arith.constant 0 : index
    %96 = vector.load %arg10[%c240_118, %c0_119] : memref<392x384xf32, #tpu.memory_space<vmem>>, vector<8x384xf32>
    tpu.vector_store %arg10[%c240_118, %c0_119], %95 {strides = array<i32>} : memref<392x384xf32, #tpu.memory_space<vmem>>, vector<8x384xf32>,
    %c0_120 = arith.constant 0 : index
    %c99_121 = arith.constant 99 : index
    %97 = vector.load %arg8[%c0_120, %c99_121] : memref<8x640xf32, #tpu.memory_space<vmem>>, vector<8x384xf32>
    %c248 = arith.constant 248 : index
    %c0_122 = arith.constant 0 : index
    %98 = vector.load %arg10[%c248, %c0_122] : memref<392x384xf32, #tpu.memory_space<vmem>>, vector<8x384xf32>
    tpu.vector_store %arg10[%c248, %c0_122], %97 {strides = array<i32>} : memref<392x384xf32, #tpu.memory_space<vmem>>, vector<8x384xf32>,
    %c0_123 = arith.constant 0 : index
    %c100 = arith.constant 100 : index
    %99 = vector.load %arg8[%c0_123, %c100] : memref<8x640xf32, #tpu.memory_space<vmem>>, vector<8x384xf32>
    %c256 = arith.constant 256 : index
    %c0_124 = arith.constant 0 : index
    %100 = vector.load %arg10[%c256, %c0_124] : memref<392x384xf32, #tpu.memory_space<vmem>>, vector<8x384xf32>
    tpu.vector_store %arg10[%c256, %c0_124], %99 {strides = array<i32>} : memref<392x384xf32, #tpu.memory_space<vmem>>, vector<8x384xf32>,
    %c0_125 = arith.constant 0 : index
    %c101 = arith.constant 101 : index
    %101 = vector.load %arg8[%c0_125, %c101] : memref<8x640xf32, #tpu.memory_space<vmem>>, vector<8x384xf32>
    %c264 = arith.constant 264 : index
    %c0_126 = arith.constant 0 : index
    %102 = vector.load %arg10[%c264, %c0_126] : memref<392x384xf32, #tpu.memory_space<vmem>>, vector<8x384xf32>
    tpu.vector_store %arg10[%c264, %c0_126], %101 {strides = array<i32>} : memref<392x384xf32, #tpu.memory_space<vmem>>, vector<8x384xf32>,
    %c0_127 = arith.constant 0 : index
    %c102 = arith.constant 102 : index
    %103 = vector.load %arg8[%c0_127, %c102] : memref<8x640xf32, #tpu.memory_space<vmem>>, vector<8x384xf32>
    %c272 = arith.constant 272 : index
    %c0_128 = arith.constant 0 : index
    %104 = vector.load %arg10[%c272, %c0_128] : memref<392x384xf32, #tpu.memory_space<vmem>>, vector<8x384xf32>
    tpu.vector_store %arg10[%c272, %c0_128], %103 {strides = array<i32>} : memref<392x384xf32, #tpu.memory_space<vmem>>, vector<8x384xf32>,
    %c0_129 = arith.constant 0 : index
    %c120_130 = arith.constant 120 : index
    %105 = vector.load %arg8[%c0_129, %c120_130] : memref<8x640xf32, #tpu.memory_space<vmem>>, vector<8x384xf32>
    %c280 = arith.constant 280 : index
    %c0_131 = arith.constant 0 : index
    %106 = vector.load %arg10[%c280, %c0_131] : memref<392x384xf32, #tpu.memory_space<vmem>>, vector<8x384xf32>
    tpu.vector_store %arg10[%c280, %c0_131], %105 {strides = array<i32>} : memref<392x384xf32, #tpu.memory_space<vmem>>, vector<8x384xf32>,
    %c0_132 = arith.constant 0 : index
    %c121 = arith.constant 121 : index
    %107 = vector.load %arg8[%c0_132, %c121] : memref<8x640xf32, #tpu.memory_space<vmem>>, vector<8x384xf32>
    %c288 = arith.constant 288 : index
    %c0_133 = arith.constant 0 : index
    %108 = vector.load %arg10[%c288, %c0_133] : memref<392x384xf32, #tpu.memory_space<vmem>>, vector<8x384xf32>
    tpu.vector_store %arg10[%c288, %c0_133], %107 {strides = array<i32>} : memref<392x384xf32, #tpu.memory_space<vmem>>, vector<8x384xf32>,
    %c0_134 = arith.constant 0 : index
    %c122 = arith.constant 122 : index
    %109 = vector.load %arg8[%c0_134, %c122] : memref<8x640xf32, #tpu.memory_space<vmem>>, vector<8x384xf32>
    %c296 = arith.constant 296 : index
    %c0_135 = arith.constant 0 : index
    %110 = vector.load %arg10[%c296, %c0_135] : memref<392x384xf32, #tpu.memory_space<vmem>>, vector<8x384xf32>
    tpu.vector_store %arg10[%c296, %c0_135], %109 {strides = array<i32>} : memref<392x384xf32, #tpu.memory_space<vmem>>, vector<8x384xf32>,
    %c0_136 = arith.constant 0 : index
    %c123_137 = arith.constant 123 : index
    %111 = vector.load %arg8[%c0_136, %c123_137] : memref<8x640xf32, #tpu.memory_space<vmem>>, vector<8x384xf32>
    %c304 = arith.constant 304 : index
    %c0_138 = arith.constant 0 : index
    %112 = vector.load %arg10[%c304, %c0_138] : memref<392x384xf32, #tpu.memory_space<vmem>>, vector<8x384xf32>
    tpu.vector_store %arg10[%c304, %c0_138], %111 {strides = array<i32>} : memref<392x384xf32, #tpu.memory_space<vmem>>, vector<8x384xf32>,
    %c0_139 = arith.constant 0 : index
    %c124 = arith.constant 124 : index
    %113 = vector.load %arg8[%c0_139, %c124] : memref<8x640xf32, #tpu.memory_space<vmem>>, vector<8x384xf32>
    %c312 = arith.constant 312 : index
    %c0_140 = arith.constant 0 : index
    %114 = vector.load %arg10[%c312, %c0_140] : memref<392x384xf32, #tpu.memory_space<vmem>>, vector<8x384xf32>
    tpu.vector_store %arg10[%c312, %c0_140], %113 {strides = array<i32>} : memref<392x384xf32, #tpu.memory_space<vmem>>, vector<8x384xf32>,
    %c0_141 = arith.constant 0 : index
    %c125 = arith.constant 125 : index
    %115 = vector.load %arg8[%c0_141, %c125] : memref<8x640xf32, #tpu.memory_space<vmem>>, vector<8x384xf32>
    %c320 = arith.constant 320 : index
    %c0_142 = arith.constant 0 : index
    %116 = vector.load %arg10[%c320, %c0_142] : memref<392x384xf32, #tpu.memory_space<vmem>>, vector<8x384xf32>
    tpu.vector_store %arg10[%c320, %c0_142], %115 {strides = array<i32>} : memref<392x384xf32, #tpu.memory_space<vmem>>, vector<8x384xf32>,
    %c0_143 = arith.constant 0 : index
    %c126 = arith.constant 126 : index
    %117 = vector.load %arg8[%c0_143, %c126] : memref<8x640xf32, #tpu.memory_space<vmem>>, vector<8x384xf32>
    %c328 = arith.constant 328 : index
    %c0_144 = arith.constant 0 : index
    %118 = vector.load %arg10[%c328, %c0_144] : memref<392x384xf32, #tpu.memory_space<vmem>>, vector<8x384xf32>
    tpu.vector_store %arg10[%c328, %c0_144], %117 {strides = array<i32>} : memref<392x384xf32, #tpu.memory_space<vmem>>, vector<8x384xf32>,
    %c0_145 = arith.constant 0 : index
    %c144_146 = arith.constant 144 : index
    %119 = vector.load %arg8[%c0_145, %c144_146] : memref<8x640xf32, #tpu.memory_space<vmem>>, vector<8x384xf32>
    %c336 = arith.constant 336 : index
    %c0_147 = arith.constant 0 : index
    %120 = vector.load %arg10[%c336, %c0_147] : memref<392x384xf32, #tpu.memory_space<vmem>>, vector<8x384xf32>
    tpu.vector_store %arg10[%c336, %c0_147], %119 {strides = array<i32>} : memref<392x384xf32, #tpu.memory_space<vmem>>, vector<8x384xf32>,
    %c0_148 = arith.constant 0 : index
    %c145 = arith.constant 145 : index
    %121 = vector.load %arg8[%c0_148, %c145] : memref<8x640xf32, #tpu.memory_space<vmem>>, vector<8x384xf32>
    %c344 = arith.constant 344 : index
    %c0_149 = arith.constant 0 : index
    %122 = vector.load %arg10[%c344, %c0_149] : memref<392x384xf32, #tpu.memory_space<vmem>>, vector<8x384xf32>
    tpu.vector_store %arg10[%c344, %c0_149], %121 {strides = array<i32>} : memref<392x384xf32, #tpu.memory_space<vmem>>, vector<8x384xf32>,
    %c0_150 = arith.constant 0 : index
    %c146 = arith.constant 146 : index
    %123 = vector.load %arg8[%c0_150, %c146] : memref<8x640xf32, #tpu.memory_space<vmem>>, vector<8x384xf32>
    %c352 = arith.constant 352 : index
    %c0_151 = arith.constant 0 : index
    %124 = vector.load %arg10[%c352, %c0_151] : memref<392x384xf32, #tpu.memory_space<vmem>>, vector<8x384xf32>
    tpu.vector_store %arg10[%c352, %c0_151], %123 {strides = array<i32>} : memref<392x384xf32, #tpu.memory_space<vmem>>, vector<8x384xf32>,
    %c0_152 = arith.constant 0 : index
    %c147_153 = arith.constant 147 : index
    %125 = vector.load %arg8[%c0_152, %c147_153] : memref<8x640xf32, #tpu.memory_space<vmem>>, vector<8x384xf32>
    %c360 = arith.constant 360 : index
    %c0_154 = arith.constant 0 : index
    %126 = vector.load %arg10[%c360, %c0_154] : memref<392x384xf32, #tpu.memory_space<vmem>>, vector<8x384xf32>
    tpu.vector_store %arg10[%c360, %c0_154], %125 {strides = array<i32>} : memref<392x384xf32, #tpu.memory_space<vmem>>, vector<8x384xf32>,
    %c0_155 = arith.constant 0 : index
    %c148 = arith.constant 148 : index
    %127 = vector.load %arg8[%c0_155, %c148] : memref<8x640xf32, #tpu.memory_space<vmem>>, vector<8x384xf32>
    %c368 = arith.constant 368 : index
    %c0_156 = arith.constant 0 : index
    %128 = vector.load %arg10[%c368, %c0_156] : memref<392x384xf32, #tpu.memory_space<vmem>>, vector<8x384xf32>
    tpu.vector_store %arg10[%c368, %c0_156], %127 {strides = array<i32>} : memref<392x384xf32, #tpu.memory_space<vmem>>, vector<8x384xf32>,
    %c0_157 = arith.constant 0 : index
    %c149 = arith.constant 149 : index
    %129 = vector.load %arg8[%c0_157, %c149] : memref<8x640xf32, #tpu.memory_space<vmem>>, vector<8x384xf32>
    %c376 = arith.constant 376 : index
    %c0_158 = arith.constant 0 : index
    %130 = vector.load %arg10[%c376, %c0_158] : memref<392x384xf32, #tpu.memory_space<vmem>>, vector<8x384xf32>
    tpu.vector_store %arg10[%c376, %c0_158], %129 {strides = array<i32>} : memref<392x384xf32, #tpu.memory_space<vmem>>, vector<8x384xf32>,
    %c0_159 = arith.constant 0 : index
    %c150 = arith.constant 150 : index
    %131 = vector.load %arg8[%c0_159, %c150] : memref<8x640xf32, #tpu.memory_space<vmem>>, vector<8x384xf32>
    %c384 = arith.constant 384 : index
    %c0_160 = arith.constant 0 : index
    %132 = vector.load %arg10[%c384, %c0_160] : memref<392x384xf32, #tpu.memory_space<vmem>>, vector<8x384xf32>
    tpu.vector_store %arg10[%c384, %c0_160], %131 {strides = array<i32>} : memref<392x384xf32, #tpu.memory_space<vmem>>, vector<8x384xf32>,
    %c0_161 = arith.constant 0 : index
    %c0_162 = arith.constant 0 : index
    %133 = vector.load %arg2[%c0_161, %c0_162] : memref<8x392xf32, #tpu.memory_space<vmem>>, vector<8x392xf32>
    %c0_163 = arith.constant 0 : index
    %c0_164 = arith.constant 0 : index
    %134 = vector.load %arg10[%c0_163, %c0_164] : memref<392x384xf32, #tpu.memory_space<vmem>>, vector<392x384xf32>
    %cst_165 = arith.constant dense<0.000000e+00> : vector<8x384xf32>
    %135 = tpu.matmul %133, %134, %cst_165 {dimension_numbers = #tpu.dot_dimension_numbers<[1], [0], [0], [1], [0, 0, 1, 1], [], []>} : vector<8x392xf32>, vector<392x384xf32>, vector<8x384xf32> -> vector<8x384xf32>
    %c0_166 = arith.constant 0 : index
    %c0_167 = arith.constant 0 : index
    %136 = vector.load %arg4[%c0_166, %c0_167] : memref<8x1xf32, #tpu.memory_space<vmem>>, vector<8x1xf32>
    %137 = vector.broadcast %136 : vector<8x1xf32> to vector<8x384xf32>
    %138 = arith.addf %135, %137 : vector<8x384xf32>
    %139 = vector.broadcast %0 : vector<1x384xf32> to vector<8x384xf32>
    %140 = arith.mulf %138, %139 : vector<8x384xf32>
    %cst_168 = arith.constant dense<0.000000e+00> : vector<8xf32>
    %141 = vector.multi_reduction <add>, %140, %cst_168 [1] : vector<8x384xf32> to vector<8xf32>
    %142 = vector.shape_cast %141 : vector<8xf32> to vector<8x1xf32>
    %c4_i32 = arith.constant 4 : i32
    %143 = tpu.dynamic_rotate %142 by %c4_i32 dim 0 : vector<8x1xf32>, i32 -> vector<8x1xf32>
    %144 = arith.addf %142, %143 : vector<8x1xf32>
    %cst_169 = arith.constant 0.001953125 : f32
    %145 = vector.broadcast %cst_169 : f32 to vector<8x1xf32>
    %146 = arith.mulf %144, %145 : vector<8x1xf32>
    %147 = vector.broadcast %146 : vector<8x1xf32> to vector<8x384xf32>
    %148 = arith.subf %138, %147 : vector<8x384xf32>
    %149 = vector.broadcast %0 : vector<1x384xf32> to vector<8x384xf32>
    %150 = arith.mulf %148, %149 : vector<8x384xf32>
    %151 = arith.mulf %150, %150 : vector<8x384xf32>
    %cst_170 = arith.constant dense<0.000000e+00> : vector<8xf32>
    %152 = vector.multi_reduction <add>, %151, %cst_170 [1] : vector<8x384xf32> to vector<8xf32>
    %153 = vector.shape_cast %152 : vector<8xf32> to vector<8x1xf32>
    %c4_i32_171 = arith.constant 4 : i32
    %154 = tpu.dynamic_rotate %153 by %c4_i32_171 dim 0 : vector<8x1xf32>, i32 -> vector<8x1xf32>
    %155 = arith.addf %153, %154 : vector<8x1xf32>
    %cst_172 = arith.constant 0.001953125 : f32
    %156 = vector.broadcast %cst_172 : f32 to vector<8x1xf32>
    %157 = arith.mulf %155, %156 : vector<8x1xf32>
    %cst_173 = arith.constant 9.99999974E-6 : f32
    %158 = vector.broadcast %cst_173 : f32 to vector<8x1xf32>
    %159 = arith.addf %157, %158 : vector<8x1xf32>
    %160 = math.rsqrt %159 : vector<8x1xf32>
    %161 = vector.broadcast %146 : vector<8x1xf32> to vector<8x384xf32>
    %162 = arith.subf %138, %161 : vector<8x384xf32>
    %163 = vector.broadcast %160 : vector<8x1xf32> to vector<8x384xf32>
    %164 = arith.mulf %162, %163 : vector<8x384xf32>
    %cst_174 = arith.constant 0.000000e+00 : f32
    %165 = vector.broadcast %cst_174 : f32 to vector<8x384xf32>
    %166 = arith.maximumf %164, %165 : vector<8x384xf32>
    %167 = vector.broadcast %0 : vector<1x384xf32> to vector<8x384xf32>
    %168 = arith.mulf %166, %167 : vector<8x384xf32>
    %cst_175 = arith.constant 0.000000e+00 : f32
    %169 = vector.broadcast %cst_175 : f32 to vector<8x640xf32>
    %c0_176 = arith.constant 0 : index
    %c0_177 = arith.constant 0 : index
    %170 = vector.load %arg9[%c0_176, %c0_177] : memref<8x640xf32, #tpu.memory_space<vmem>>, vector<8x640xf32>
    tpu.vector_store %arg9[%c0_176, %c0_177], %169 {strides = array<i32>} : memref<8x640xf32, #tpu.memory_space<vmem>>, vector<8x640xf32>,
    %c0_178 = arith.constant 0 : index
    %c75_179 = arith.constant 75 : index
    %171 = vector.load %arg9[%c0_178, %c75_179] : memref<8x640xf32, #tpu.memory_space<vmem>>, vector<8x384xf32>
    tpu.vector_store %arg9[%c0_178, %c75_179], %168 {strides = array<i32>} : memref<8x640xf32, #tpu.memory_space<vmem>>, vector<8x384xf32>,
    %c0_180 = arith.constant 0 : index
    %c0_181 = arith.constant 0 : index
    %172 = vector.load %arg9[%c0_180, %c0_181] : memref<8x640xf32, #tpu.memory_space<vmem>>, vector<8x384xf32>
    %c0_182 = arith.constant 0 : index
    %c0_183 = arith.constant 0 : index
    %173 = vector.load %arg10[%c0_182, %c0_183] : memref<392x384xf32, #tpu.memory_space<vmem>>, vector<8x384xf32>
    tpu.vector_store %arg10[%c0_182, %c0_183], %172 {strides = array<i32>} : memref<392x384xf32, #tpu.memory_space<vmem>>, vector<8x384xf32>,
    %c0_184 = arith.constant 0 : index
    %c1_185 = arith.constant 1 : index
    %174 = vector.load %arg9[%c0_184, %c1_185] : memref<8x640xf32, #tpu.memory_space<vmem>>, vector<8x384xf32>
    %c8_186 = arith.constant 8 : index
    %c0_187 = arith.constant 0 : index
    %175 = vector.load %arg10[%c8_186, %c0_187] : memref<392x384xf32, #tpu.memory_space<vmem>>, vector<8x384xf32>
    tpu.vector_store %arg10[%c8_186, %c0_187], %174 {strides = array<i32>} : memref<392x384xf32, #tpu.memory_space<vmem>>, vector<8x384xf32>,
    %c0_188 = arith.constant 0 : index
    %c2_189 = arith.constant 2 : index
    %176 = vector.load %arg9[%c0_188, %c2_189] : memref<8x640xf32, #tpu.memory_space<vmem>>, vector<8x384xf32>
    %c16_190 = arith.constant 16 : index
    %c0_191 = arith.constant 0 : index
    %177 = vector.load %arg10[%c16_190, %c0_191] : memref<392x384xf32, #tpu.memory_space<vmem>>, vector<8x384xf32>
    tpu.vector_store %arg10[%c16_190, %c0_191], %176 {strides = array<i32>} : memref<392x384xf32, #tpu.memory_space<vmem>>, vector<8x384xf32>,
    %c0_192 = arith.constant 0 : index
    %c3_193 = arith.constant 3 : index
    %178 = vector.load %arg9[%c0_192, %c3_193] : memref<8x640xf32, #tpu.memory_space<vmem>>, vector<8x384xf32>
    %c24_194 = arith.constant 24 : index
    %c0_195 = arith.constant 0 : index
    %179 = vector.load %arg10[%c24_194, %c0_195] : memref<392x384xf32, #tpu.memory_space<vmem>>, vector<8x384xf32>
    tpu.vector_store %arg10[%c24_194, %c0_195], %178 {strides = array<i32>} : memref<392x384xf32, #tpu.memory_space<vmem>>, vector<8x384xf32>,
    %c0_196 = arith.constant 0 : index
    %c4_197 = arith.constant 4 : index
    %180 = vector.load %arg9[%c0_196, %c4_197] : memref<8x640xf32, #tpu.memory_space<vmem>>, vector<8x384xf32>
    %c32_198 = arith.constant 32 : index
    %c0_199 = arith.constant 0 : index
    %181 = vector.load %arg10[%c32_198, %c0_199] : memref<392x384xf32, #tpu.memory_space<vmem>>, vector<8x384xf32>
    tpu.vector_store %arg10[%c32_198, %c0_199], %180 {strides = array<i32>} : memref<392x384xf32, #tpu.memory_space<vmem>>, vector<8x384xf32>,
    %c0_200 = arith.constant 0 : index
    %c5_201 = arith.constant 5 : index
    %182 = vector.load %arg9[%c0_200, %c5_201] : memref<8x640xf32, #tpu.memory_space<vmem>>, vector<8x384xf32>
    %c40_202 = arith.constant 40 : index
    %c0_203 = arith.constant 0 : index
    %183 = vector.load %arg10[%c40_202, %c0_203] : memref<392x384xf32, #tpu.memory_space<vmem>>, vector<8x384xf32>
    tpu.vector_store %arg10[%c40_202, %c0_203], %182 {strides = array<i32>} : memref<392x384xf32, #tpu.memory_space<vmem>>, vector<8x384xf32>,
    %c0_204 = arith.constant 0 : index
    %c6_205 = arith.constant 6 : index
    %184 = vector.load %arg9[%c0_204, %c6_205] : memref<8x640xf32, #tpu.memory_space<vmem>>, vector<8x384xf32>
    %c48_206 = arith.constant 48 : index
    %c0_207 = arith.constant 0 : index
    %185 = vector.load %arg10[%c48_206, %c0_207] : memref<392x384xf32, #tpu.memory_space<vmem>>, vector<8x384xf32>
    tpu.vector_store %arg10[%c48_206, %c0_207], %184 {strides = array<i32>} : memref<392x384xf32, #tpu.memory_space<vmem>>, vector<8x384xf32>,
    %c0_208 = arith.constant 0 : index
    %c24_209 = arith.constant 24 : index
    %186 = vector.load %arg9[%c0_208, %c24_209] : memref<8x640xf32, #tpu.memory_space<vmem>>, vector<8x384xf32>
    %c56_210 = arith.constant 56 : index
    %c0_211 = arith.constant 0 : index
    %187 = vector.load %arg10[%c56_210, %c0_211] : memref<392x384xf32, #tpu.memory_space<vmem>>, vector<8x384xf32>
    tpu.vector_store %arg10[%c56_210, %c0_211], %186 {strides = array<i32>} : memref<392x384xf32, #tpu.memory_space<vmem>>, vector<8x384xf32>,
    %c0_212 = arith.constant 0 : index
    %c25_213 = arith.constant 25 : index
    %188 = vector.load %arg9[%c0_212, %c25_213] : memref<8x640xf32, #tpu.memory_space<vmem>>, vector<8x384xf32>
    %c64_214 = arith.constant 64 : index
    %c0_215 = arith.constant 0 : index
    %189 = vector.load %arg10[%c64_214, %c0_215] : memref<392x384xf32, #tpu.memory_space<vmem>>, vector<8x384xf32>
    tpu.vector_store %arg10[%c64_214, %c0_215], %188 {strides = array<i32>} : memref<392x384xf32, #tpu.memory_space<vmem>>, vector<8x384xf32>,
    %c0_216 = arith.constant 0 : index
    %c26_217 = arith.constant 26 : index
    %190 = vector.load %arg9[%c0_216, %c26_217] : memref<8x640xf32, #tpu.memory_space<vmem>>, vector<8x384xf32>
    %c72_218 = arith.constant 72 : index
    %c0_219 = arith.constant 0 : index
    %191 = vector.load %arg10[%c72_218, %c0_219] : memref<392x384xf32, #tpu.memory_space<vmem>>, vector<8x384xf32>
    tpu.vector_store %arg10[%c72_218, %c0_219], %190 {strides = array<i32>} : memref<392x384xf32, #tpu.memory_space<vmem>>, vector<8x384xf32>,
    %c0_220 = arith.constant 0 : index
    %c27_221 = arith.constant 27 : index
    %192 = vector.load %arg9[%c0_220, %c27_221] : memref<8x640xf32, #tpu.memory_space<vmem>>, vector<8x384xf32>
    %c80_222 = arith.constant 80 : index
    %c0_223 = arith.constant 0 : index
    %193 = vector.load %arg10[%c80_222, %c0_223] : memref<392x384xf32, #tpu.memory_space<vmem>>, vector<8x384xf32>
    tpu.vector_store %arg10[%c80_222, %c0_223], %192 {strides = array<i32>} : memref<392x384xf32, #tpu.memory_space<vmem>>, vector<8x384xf32>,
    %c0_224 = arith.constant 0 : index
    %c28_225 = arith.constant 28 : index
    %194 = vector.load %arg9[%c0_224, %c28_225] : memref<8x640xf32, #tpu.memory_space<vmem>>, vector<8x384xf32>
    %c88_226 = arith.constant 88 : index
    %c0_227 = arith.constant 0 : index
    %195 = vector.load %arg10[%c88_226, %c0_227] : memref<392x384xf32, #tpu.memory_space<vmem>>, vector<8x384xf32>
    tpu.vector_store %arg10[%c88_226, %c0_227], %194 {strides = array<i32>} : memref<392x384xf32, #tpu.memory_space<vmem>>, vector<8x384xf32>,
    %c0_228 = arith.constant 0 : index
    %c29_229 = arith.constant 29 : index
    %196 = vector.load %arg9[%c0_228, %c29_229] : memref<8x640xf32, #tpu.memory_space<vmem>>, vector<8x384xf32>
    %c96_230 = arith.constant 96 : index
    %c0_231 = arith.constant 0 : index
    %197 = vector.load %arg10[%c96_230, %c0_231] : memref<392x384xf32, #tpu.memory_space<vmem>>, vector<8x384xf32>
    tpu.vector_store %arg10[%c96_230, %c0_231], %196 {strides = array<i32>} : memref<392x384xf32, #tpu.memory_space<vmem>>, vector<8x384xf32>,
    %c0_232 = arith.constant 0 : index
    %c30_233 = arith.constant 30 : index
    %198 = vector.load %arg9[%c0_232, %c30_233] : memref<8x640xf32, #tpu.memory_space<vmem>>, vector<8x384xf32>
    %c104_234 = arith.constant 104 : index
    %c0_235 = arith.constant 0 : index
    %199 = vector.load %arg10[%c104_234, %c0_235] : memref<392x384xf32, #tpu.memory_space<vmem>>, vector<8x384xf32>
    tpu.vector_store %arg10[%c104_234, %c0_235], %198 {strides = array<i32>} : memref<392x384xf32, #tpu.memory_space<vmem>>, vector<8x384xf32>,
    %c0_236 = arith.constant 0 : index
    %c48_237 = arith.constant 48 : index
    %200 = vector.load %arg9[%c0_236, %c48_237] : memref<8x640xf32, #tpu.memory_space<vmem>>, vector<8x384xf32>
    %c112_238 = arith.constant 112 : index
    %c0_239 = arith.constant 0 : index
    %201 = vector.load %arg10[%c112_238, %c0_239] : memref<392x384xf32, #tpu.memory_space<vmem>>, vector<8x384xf32>
    tpu.vector_store %arg10[%c112_238, %c0_239], %200 {strides = array<i32>} : memref<392x384xf32, #tpu.memory_space<vmem>>, vector<8x384xf32>,
    %c0_240 = arith.constant 0 : index
    %c49_241 = arith.constant 49 : index
    %202 = vector.load %arg9[%c0_240, %c49_241] : memref<8x640xf32, #tpu.memory_space<vmem>>, vector<8x384xf32>
    %c120_242 = arith.constant 120 : index
    %c0_243 = arith.constant 0 : index
    %203 = vector.load %arg10[%c120_242, %c0_243] : memref<392x384xf32, #tpu.memory_space<vmem>>, vector<8x384xf32>
    tpu.vector_store %arg10[%c120_242, %c0_243], %202 {strides = array<i32>} : memref<392x384xf32, #tpu.memory_space<vmem>>, vector<8x384xf32>,
    %c0_244 = arith.constant 0 : index
    %c50_245 = arith.constant 50 : index
    %204 = vector.load %arg9[%c0_244, %c50_245] : memref<8x640xf32, #tpu.memory_space<vmem>>, vector<8x384xf32>
    %c128_246 = arith.constant 128 : index
    %c0_247 = arith.constant 0 : index
    %205 = vector.load %arg10[%c128_246, %c0_247] : memref<392x384xf32, #tpu.memory_space<vmem>>, vector<8x384xf32>
    tpu.vector_store %arg10[%c128_246, %c0_247], %204 {strides = array<i32>} : memref<392x384xf32, #tpu.memory_space<vmem>>, vector<8x384xf32>,
    %c0_248 = arith.constant 0 : index
    %c51_249 = arith.constant 51 : index
    %206 = vector.load %arg9[%c0_248, %c51_249] : memref<8x640xf32, #tpu.memory_space<vmem>>, vector<8x384xf32>
    %c136_250 = arith.constant 136 : index
    %c0_251 = arith.constant 0 : index
    %207 = vector.load %arg10[%c136_250, %c0_251] : memref<392x384xf32, #tpu.memory_space<vmem>>, vector<8x384xf32>
    tpu.vector_store %arg10[%c136_250, %c0_251], %206 {strides = array<i32>} : memref<392x384xf32, #tpu.memory_space<vmem>>, vector<8x384xf32>,
    %c0_252 = arith.constant 0 : index
    %c52_253 = arith.constant 52 : index
    %208 = vector.load %arg9[%c0_252, %c52_253] : memref<8x640xf32, #tpu.memory_space<vmem>>, vector<8x384xf32>
    %c144_254 = arith.constant 144 : index
    %c0_255 = arith.constant 0 : index
    %209 = vector.load %arg10[%c144_254, %c0_255] : memref<392x384xf32, #tpu.memory_space<vmem>>, vector<8x384xf32>
    tpu.vector_store %arg10[%c144_254, %c0_255], %208 {strides = array<i32>} : memref<392x384xf32, #tpu.memory_space<vmem>>, vector<8x384xf32>,
    %c0_256 = arith.constant 0 : index
    %c53_257 = arith.constant 53 : index
    %210 = vector.load %arg9[%c0_256, %c53_257] : memref<8x640xf32, #tpu.memory_space<vmem>>, vector<8x384xf32>
    %c152_258 = arith.constant 152 : index
    %c0_259 = arith.constant 0 : index
    %211 = vector.load %arg10[%c152_258, %c0_259] : memref<392x384xf32, #tpu.memory_space<vmem>>, vector<8x384xf32>
    tpu.vector_store %arg10[%c152_258, %c0_259], %210 {strides = array<i32>} : memref<392x384xf32, #tpu.memory_space<vmem>>, vector<8x384xf32>,
    %c0_260 = arith.constant 0 : index
    %c54_261 = arith.constant 54 : index
    %212 = vector.load %arg9[%c0_260, %c54_261] : memref<8x640xf32, #tpu.memory_space<vmem>>, vector<8x384xf32>
    %c160_262 = arith.constant 160 : index
    %c0_263 = arith.constant 0 : index
    %213 = vector.load %arg10[%c160_262, %c0_263] : memref<392x384xf32, #tpu.memory_space<vmem>>, vector<8x384xf32>
    tpu.vector_store %arg10[%c160_262, %c0_263], %212 {strides = array<i32>} : memref<392x384xf32, #tpu.memory_space<vmem>>, vector<8x384xf32>,
    %c0_264 = arith.constant 0 : index
    %c72_265 = arith.constant 72 : index
    %214 = vector.load %arg9[%c0_264, %c72_265] : memref<8x640xf32, #tpu.memory_space<vmem>>, vector<8x384xf32>
    %c168_266 = arith.constant 168 : index
    %c0_267 = arith.constant 0 : index
    %215 = vector.load %arg10[%c168_266, %c0_267] : memref<392x384xf32, #tpu.memory_space<vmem>>, vector<8x384xf32>
    tpu.vector_store %arg10[%c168_266, %c0_267], %214 {strides = array<i32>} : memref<392x384xf32, #tpu.memory_space<vmem>>, vector<8x384xf32>,
    %c0_268 = arith.constant 0 : index
    %c73_269 = arith.constant 73 : index
    %216 = vector.load %arg9[%c0_268, %c73_269] : memref<8x640xf32, #tpu.memory_space<vmem>>, vector<8x384xf32>
    %c176_270 = arith.constant 176 : index
    %c0_271 = arith.constant 0 : index
    %217 = vector.load %arg10[%c176_270, %c0_271] : memref<392x384xf32, #tpu.memory_space<vmem>>, vector<8x384xf32>
    tpu.vector_store %arg10[%c176_270, %c0_271], %216 {strides = array<i32>} : memref<392x384xf32, #tpu.memory_space<vmem>>, vector<8x384xf32>,
    %c0_272 = arith.constant 0 : index
    %c74_273 = arith.constant 74 : index
    %218 = vector.load %arg9[%c0_272, %c74_273] : memref<8x640xf32, #tpu.memory_space<vmem>>, vector<8x384xf32>
    %c184_274 = arith.constant 184 : index
    %c0_275 = arith.constant 0 : index
    %219 = vector.load %arg10[%c184_274, %c0_275] : memref<392x384xf32, #tpu.memory_space<vmem>>, vector<8x384xf32>
    tpu.vector_store %arg10[%c184_274, %c0_275], %218 {strides = array<i32>} : memref<392x384xf32, #tpu.memory_space<vmem>>, vector<8x384xf32>,
    %c0_276 = arith.constant 0 : index
    %c75_277 = arith.constant 75 : index
    %220 = vector.load %arg9[%c0_276, %c75_277] : memref<8x640xf32, #tpu.memory_space<vmem>>, vector<8x384xf32>
    %c192_278 = arith.constant 192 : index
    %c0_279 = arith.constant 0 : index
    %221 = vector.load %arg10[%c192_278, %c0_279] : memref<392x384xf32, #tpu.memory_space<vmem>>, vector<8x384xf32>
    tpu.vector_store %arg10[%c192_278, %c0_279], %220 {strides = array<i32>} : memref<392x384xf32, #tpu.memory_space<vmem>>, vector<8x384xf32>,
    %c0_280 = arith.constant 0 : index
    %c76_281 = arith.constant 76 : index
    %222 = vector.load %arg9[%c0_280, %c76_281] : memref<8x640xf32, #tpu.memory_space<vmem>>, vector<8x384xf32>
    %c200_282 = arith.constant 200 : index
    %c0_283 = arith.constant 0 : index
    %223 = vector.load %arg10[%c200_282, %c0_283] : memref<392x384xf32, #tpu.memory_space<vmem>>, vector<8x384xf32>
    tpu.vector_store %arg10[%c200_282, %c0_283], %222 {strides = array<i32>} : memref<392x384xf32, #tpu.memory_space<vmem>>, vector<8x384xf32>,
    %c0_284 = arith.constant 0 : index
    %c77_285 = arith.constant 77 : index
    %224 = vector.load %arg9[%c0_284, %c77_285] : memref<8x640xf32, #tpu.memory_space<vmem>>, vector<8x384xf32>
    %c208_286 = arith.constant 208 : index
    %c0_287 = arith.constant 0 : index
    %225 = vector.load %arg10[%c208_286, %c0_287] : memref<392x384xf32, #tpu.memory_space<vmem>>, vector<8x384xf32>
    tpu.vector_store %arg10[%c208_286, %c0_287], %224 {strides = array<i32>} : memref<392x384xf32, #tpu.memory_space<vmem>>, vector<8x384xf32>,
    %c0_288 = arith.constant 0 : index
    %c78_289 = arith.constant 78 : index
    %226 = vector.load %arg9[%c0_288, %c78_289] : memref<8x640xf32, #tpu.memory_space<vmem>>, vector<8x384xf32>
    %c216_290 = arith.constant 216 : index
    %c0_291 = arith.constant 0 : index
    %227 = vector.load %arg10[%c216_290, %c0_291] : memref<392x384xf32, #tpu.memory_space<vmem>>, vector<8x384xf32>
    tpu.vector_store %arg10[%c216_290, %c0_291], %226 {strides = array<i32>} : memref<392x384xf32, #tpu.memory_space<vmem>>, vector<8x384xf32>,
    %c0_292 = arith.constant 0 : index
    %c96_293 = arith.constant 96 : index
    %228 = vector.load %arg9[%c0_292, %c96_293] : memref<8x640xf32, #tpu.memory_space<vmem>>, vector<8x384xf32>
    %c224_294 = arith.constant 224 : index
    %c0_295 = arith.constant 0 : index
    %229 = vector.load %arg10[%c224_294, %c0_295] : memref<392x384xf32, #tpu.memory_space<vmem>>, vector<8x384xf32>
    tpu.vector_store %arg10[%c224_294, %c0_295], %228 {strides = array<i32>} : memref<392x384xf32, #tpu.memory_space<vmem>>, vector<8x384xf32>,
    %c0_296 = arith.constant 0 : index
    %c97_297 = arith.constant 97 : index
    %230 = vector.load %arg9[%c0_296, %c97_297] : memref<8x640xf32, #tpu.memory_space<vmem>>, vector<8x384xf32>
    %c232_298 = arith.constant 232 : index
    %c0_299 = arith.constant 0 : index
    %231 = vector.load %arg10[%c232_298, %c0_299] : memref<392x384xf32, #tpu.memory_space<vmem>>, vector<8x384xf32>
    tpu.vector_store %arg10[%c232_298, %c0_299], %230 {strides = array<i32>} : memref<392x384xf32, #tpu.memory_space<vmem>>, vector<8x384xf32>,
    %c0_300 = arith.constant 0 : index
    %c98_301 = arith.constant 98 : index
    %232 = vector.load %arg9[%c0_300, %c98_301] : memref<8x640xf32, #tpu.memory_space<vmem>>, vector<8x384xf32>
    %c240_302 = arith.constant 240 : index
    %c0_303 = arith.constant 0 : index
    %233 = vector.load %arg10[%c240_302, %c0_303] : memref<392x384xf32, #tpu.memory_space<vmem>>, vector<8x384xf32>
    tpu.vector_store %arg10[%c240_302, %c0_303], %232 {strides = array<i32>} : memref<392x384xf32, #tpu.memory_space<vmem>>, vector<8x384xf32>,
    %c0_304 = arith.constant 0 : index
    %c99_305 = arith.constant 99 : index
    %234 = vector.load %arg9[%c0_304, %c99_305] : memref<8x640xf32, #tpu.memory_space<vmem>>, vector<8x384xf32>
    %c248_306 = arith.constant 248 : index
    %c0_307 = arith.constant 0 : index
    %235 = vector.load %arg10[%c248_306, %c0_307] : memref<392x384xf32, #tpu.memory_space<vmem>>, vector<8x384xf32>
    tpu.vector_store %arg10[%c248_306, %c0_307], %234 {strides = array<i32>} : memref<392x384xf32, #tpu.memory_space<vmem>>, vector<8x384xf32>,
    %c0_308 = arith.constant 0 : index
    %c100_309 = arith.constant 100 : index
    %236 = vector.load %arg9[%c0_308, %c100_309] : memref<8x640xf32, #tpu.memory_space<vmem>>, vector<8x384xf32>
    %c256_310 = arith.constant 256 : index
    %c0_311 = arith.constant 0 : index
    %237 = vector.load %arg10[%c256_310, %c0_311] : memref<392x384xf32, #tpu.memory_space<vmem>>, vector<8x384xf32>
    tpu.vector_store %arg10[%c256_310, %c0_311], %236 {strides = array<i32>} : memref<392x384xf32, #tpu.memory_space<vmem>>, vector<8x384xf32>,
    %c0_312 = arith.constant 0 : index
    %c101_313 = arith.constant 101 : index
    %238 = vector.load %arg9[%c0_312, %c101_313] : memref<8x640xf32, #tpu.memory_space<vmem>>, vector<8x384xf32>
    %c264_314 = arith.constant 264 : index
    %c0_315 = arith.constant 0 : index
    %239 = vector.load %arg10[%c264_314, %c0_315] : memref<392x384xf32, #tpu.memory_space<vmem>>, vector<8x384xf32>
    tpu.vector_store %arg10[%c264_314, %c0_315], %238 {strides = array<i32>} : memref<392x384xf32, #tpu.memory_space<vmem>>, vector<8x384xf32>,
    %c0_316 = arith.constant 0 : index
    %c102_317 = arith.constant 102 : index
    %240 = vector.load %arg9[%c0_316, %c102_317] : memref<8x640xf32, #tpu.memory_space<vmem>>, vector<8x384xf32>
    %c272_318 = arith.constant 272 : index
    %c0_319 = arith.constant 0 : index
    %241 = vector.load %arg10[%c272_318, %c0_319] : memref<392x384xf32, #tpu.memory_space<vmem>>, vector<8x384xf32>
    tpu.vector_store %arg10[%c272_318, %c0_319], %240 {strides = array<i32>} : memref<392x384xf32, #tpu.memory_space<vmem>>, vector<8x384xf32>,
    %c0_320 = arith.constant 0 : index
    %c120_321 = arith.constant 120 : index
    %242 = vector.load %arg9[%c0_320, %c120_321] : memref<8x640xf32, #tpu.memory_space<vmem>>, vector<8x384xf32>
    %c280_322 = arith.constant 280 : index
    %c0_323 = arith.constant 0 : index
    %243 = vector.load %arg10[%c280_322, %c0_323] : memref<392x384xf32, #tpu.memory_space<vmem>>, vector<8x384xf32>
    tpu.vector_store %arg10[%c280_322, %c0_323], %242 {strides = array<i32>} : memref<392x384xf32, #tpu.memory_space<vmem>>, vector<8x384xf32>,
    %c0_324 = arith.constant 0 : index
    %c121_325 = arith.constant 121 : index
    %244 = vector.load %arg9[%c0_324, %c121_325] : memref<8x640xf32, #tpu.memory_space<vmem>>, vector<8x384xf32>
    %c288_326 = arith.constant 288 : index
    %c0_327 = arith.constant 0 : index
    %245 = vector.load %arg10[%c288_326, %c0_327] : memref<392x384xf32, #tpu.memory_space<vmem>>, vector<8x384xf32>
    tpu.vector_store %arg10[%c288_326, %c0_327], %244 {strides = array<i32>} : memref<392x384xf32, #tpu.memory_space<vmem>>, vector<8x384xf32>,
    %c0_328 = arith.constant 0 : index
    %c122_329 = arith.constant 122 : index
    %246 = vector.load %arg9[%c0_328, %c122_329] : memref<8x640xf32, #tpu.memory_space<vmem>>, vector<8x384xf32>
    %c296_330 = arith.constant 296 : index
    %c0_331 = arith.constant 0 : index
    %247 = vector.load %arg10[%c296_330, %c0_331] : memref<392x384xf32, #tpu.memory_space<vmem>>, vector<8x384xf32>
    tpu.vector_store %arg10[%c296_330, %c0_331], %246 {strides = array<i32>} : memref<392x384xf32, #tpu.memory_space<vmem>>, vector<8x384xf32>,
    %c0_332 = arith.constant 0 : index
    %c123_333 = arith.constant 123 : index
    %248 = vector.load %arg9[%c0_332, %c123_333] : memref<8x640xf32, #tpu.memory_space<vmem>>, vector<8x384xf32>
    %c304_334 = arith.constant 304 : index
    %c0_335 = arith.constant 0 : index
    %249 = vector.load %arg10[%c304_334, %c0_335] : memref<392x384xf32, #tpu.memory_space<vmem>>, vector<8x384xf32>
    tpu.vector_store %arg10[%c304_334, %c0_335], %248 {strides = array<i32>} : memref<392x384xf32, #tpu.memory_space<vmem>>, vector<8x384xf32>,
    %c0_336 = arith.constant 0 : index
    %c124_337 = arith.constant 124 : index
    %250 = vector.load %arg9[%c0_336, %c124_337] : memref<8x640xf32, #tpu.memory_space<vmem>>, vector<8x384xf32>
    %c312_338 = arith.constant 312 : index
    %c0_339 = arith.constant 0 : index
    %251 = vector.load %arg10[%c312_338, %c0_339] : memref<392x384xf32, #tpu.memory_space<vmem>>, vector<8x384xf32>
    tpu.vector_store %arg10[%c312_338, %c0_339], %250 {strides = array<i32>} : memref<392x384xf32, #tpu.memory_space<vmem>>, vector<8x384xf32>,
    %c0_340 = arith.constant 0 : index
    %c125_341 = arith.constant 125 : index
    %252 = vector.load %arg9[%c0_340, %c125_341] : memref<8x640xf32, #tpu.memory_space<vmem>>, vector<8x384xf32>
    %c320_342 = arith.constant 320 : index
    %c0_343 = arith.constant 0 : index
    %253 = vector.load %arg10[%c320_342, %c0_343] : memref<392x384xf32, #tpu.memory_space<vmem>>, vector<8x384xf32>
    tpu.vector_store %arg10[%c320_342, %c0_343], %252 {strides = array<i32>} : memref<392x384xf32, #tpu.memory_space<vmem>>, vector<8x384xf32>,
    %c0_344 = arith.constant 0 : index
    %c126_345 = arith.constant 126 : index
    %254 = vector.load %arg9[%c0_344, %c126_345] : memref<8x640xf32, #tpu.memory_space<vmem>>, vector<8x384xf32>
    %c328_346 = arith.constant 328 : index
    %c0_347 = arith.constant 0 : index
    %255 = vector.load %arg10[%c328_346, %c0_347] : memref<392x384xf32, #tpu.memory_space<vmem>>, vector<8x384xf32>
    tpu.vector_store %arg10[%c328_346, %c0_347], %254 {strides = array<i32>} : memref<392x384xf32, #tpu.memory_space<vmem>>, vector<8x384xf32>,
    %c0_348 = arith.constant 0 : index
    %c144_349 = arith.constant 144 : index
    %256 = vector.load %arg9[%c0_348, %c144_349] : memref<8x640xf32, #tpu.memory_space<vmem>>, vector<8x384xf32>
    %c336_350 = arith.constant 336 : index
    %c0_351 = arith.constant 0 : index
    %257 = vector.load %arg10[%c336_350, %c0_351] : memref<392x384xf32, #tpu.memory_space<vmem>>, vector<8x384xf32>
    tpu.vector_store %arg10[%c336_350, %c0_351], %256 {strides = array<i32>} : memref<392x384xf32, #tpu.memory_space<vmem>>, vector<8x384xf32>,
    %c0_352 = arith.constant 0 : index
    %c145_353 = arith.constant 145 : index
    %258 = vector.load %arg9[%c0_352, %c145_353] : memref<8x640xf32, #tpu.memory_space<vmem>>, vector<8x384xf32>
    %c344_354 = arith.constant 344 : index
    %c0_355 = arith.constant 0 : index
    %259 = vector.load %arg10[%c344_354, %c0_355] : memref<392x384xf32, #tpu.memory_space<vmem>>, vector<8x384xf32>
    tpu.vector_store %arg10[%c344_354, %c0_355], %258 {strides = array<i32>} : memref<392x384xf32, #tpu.memory_space<vmem>>, vector<8x384xf32>,
    %c0_356 = arith.constant 0 : index
    %c146_357 = arith.constant 146 : index
    %260 = vector.load %arg9[%c0_356, %c146_357] : memref<8x640xf32, #tpu.memory_space<vmem>>, vector<8x384xf32>
    %c352_358 = arith.constant 352 : index
    %c0_359 = arith.constant 0 : index
    %261 = vector.load %arg10[%c352_358, %c0_359] : memref<392x384xf32, #tpu.memory_space<vmem>>, vector<8x384xf32>
    tpu.vector_store %arg10[%c352_358, %c0_359], %260 {strides = array<i32>} : memref<392x384xf32, #tpu.memory_space<vmem>>, vector<8x384xf32>,
    %c0_360 = arith.constant 0 : index
    %c147_361 = arith.constant 147 : index
    %262 = vector.load %arg9[%c0_360, %c147_361] : memref<8x640xf32, #tpu.memory_space<vmem>>, vector<8x384xf32>
    %c360_362 = arith.constant 360 : index
    %c0_363 = arith.constant 0 : index
    %263 = vector.load %arg10[%c360_362, %c0_363] : memref<392x384xf32, #tpu.memory_space<vmem>>, vector<8x384xf32>
    tpu.vector_store %arg10[%c360_362, %c0_363], %262 {strides = array<i32>} : memref<392x384xf32, #tpu.memory_space<vmem>>, vector<8x384xf32>,
    %c0_364 = arith.constant 0 : index
    %c148_365 = arith.constant 148 : index
    %264 = vector.load %arg9[%c0_364, %c148_365] : memref<8x640xf32, #tpu.memory_space<vmem>>, vector<8x384xf32>
    %c368_366 = arith.constant 368 : index
    %c0_367 = arith.constant 0 : index
    %265 = vector.load %arg10[%c368_366, %c0_367] : memref<392x384xf32, #tpu.memory_space<vmem>>, vector<8x384xf32>
    tpu.vector_store %arg10[%c368_366, %c0_367], %264 {strides = array<i32>} : memref<392x384xf32, #tpu.memory_space<vmem>>, vector<8x384xf32>,
    %c0_368 = arith.constant 0 : index
    %c149_369 = arith.constant 149 : index
    %266 = vector.load %arg9[%c0_368, %c149_369] : memref<8x640xf32, #tpu.memory_space<vmem>>, vector<8x384xf32>
    %c376_370 = arith.constant 376 : index
    %c0_371 = arith.constant 0 : index
    %267 = vector.load %arg10[%c376_370, %c0_371] : memref<392x384xf32, #tpu.memory_space<vmem>>, vector<8x384xf32>
    tpu.vector_store %arg10[%c376_370, %c0_371], %266 {strides = array<i32>} : memref<392x384xf32, #tpu.memory_space<vmem>>, vector<8x384xf32>,
    %c0_372 = arith.constant 0 : index
    %c150_373 = arith.constant 150 : index
    %268 = vector.load %arg9[%c0_372, %c150_373] : memref<8x640xf32, #tpu.memory_space<vmem>>, vector<8x384xf32>
    %c384_374 = arith.constant 384 : index
    %c0_375 = arith.constant 0 : index
    %269 = vector.load %arg10[%c384_374, %c0_375] : memref<392x384xf32, #tpu.memory_space<vmem>>, vector<8x384xf32>
    tpu.vector_store %arg10[%c384_374, %c0_375], %268 {strides = array<i32>} : memref<392x384xf32, #tpu.memory_space<vmem>>, vector<8x384xf32>,
    %c0_376 = arith.constant 0 : index
    %c0_377 = arith.constant 0 : index
    %270 = vector.load %arg3[%c0_376, %c0_377] : memref<8x392xf32, #tpu.memory_space<vmem>>, vector<8x392xf32>
    %c0_378 = arith.constant 0 : index
    %c0_379 = arith.constant 0 : index
    %271 = vector.load %arg10[%c0_378, %c0_379] : memref<392x384xf32, #tpu.memory_space<vmem>>, vector<392x384xf32>
    %cst_380 = arith.constant dense<0.000000e+00> : vector<8x384xf32>
    %272 = tpu.matmul %270, %271, %cst_380 {dimension_numbers = #tpu.dot_dimension_numbers<[1], [0], [0], [1], [0, 0, 1, 1], [], []>} : vector<8x392xf32>, vector<392x384xf32>, vector<8x384xf32> -> vector<8x384xf32>
    %c0_381 = arith.constant 0 : index
    %c0_382 = arith.constant 0 : index
    %273 = vector.load %arg5[%c0_381, %c0_382] : memref<8x1xf32, #tpu.memory_space<vmem>>, vector<8x1xf32>
    %274 = vector.broadcast %273 : vector<8x1xf32> to vector<8x384xf32>
    %275 = arith.addf %272, %274 : vector<8x384xf32>
    %276 = vector.broadcast %0 : vector<1x384xf32> to vector<8x384xf32>
    %277 = arith.mulf %275, %276 : vector<8x384xf32>
    %cst_383 = arith.constant dense<0.000000e+00> : vector<8xf32>
    %278 = vector.multi_reduction <add>, %277, %cst_383 [1] : vector<8x384xf32> to vector<8xf32>
    %279 = vector.shape_cast %278 : vector<8xf32> to vector<8x1xf32>
    %c4_i32_384 = arith.constant 4 : i32
    %280 = tpu.dynamic_rotate %279 by %c4_i32_384 dim 0 : vector<8x1xf32>, i32 -> vector<8x1xf32>
    %281 = arith.addf %279, %280 : vector<8x1xf32>
    %cst_385 = arith.constant 0.001953125 : f32
    %282 = vector.broadcast %cst_385 : f32 to vector<8x1xf32>
    %283 = arith.mulf %281, %282 : vector<8x1xf32>
    %284 = vector.broadcast %283 : vector<8x1xf32> to vector<8x384xf32>
    %285 = arith.subf %275, %284 : vector<8x384xf32>
    %286 = vector.broadcast %0 : vector<1x384xf32> to vector<8x384xf32>
    %287 = arith.mulf %285, %286 : vector<8x384xf32>
    %288 = arith.mulf %287, %287 : vector<8x384xf32>
    %cst_386 = arith.constant dense<0.000000e+00> : vector<8xf32>
    %289 = vector.multi_reduction <add>, %288, %cst_386 [1] : vector<8x384xf32> to vector<8xf32>
    %290 = vector.shape_cast %289 : vector<8xf32> to vector<8x1xf32>
    %c4_i32_387 = arith.constant 4 : i32
    %291 = tpu.dynamic_rotate %290 by %c4_i32_387 dim 0 : vector<8x1xf32>, i32 -> vector<8x1xf32>
    %292 = arith.addf %290, %291 : vector<8x1xf32>
    %cst_388 = arith.constant 0.001953125 : f32
    %293 = vector.broadcast %cst_388 : f32 to vector<8x1xf32>
    %294 = arith.mulf %292, %293 : vector<8x1xf32>
    %cst_389 = arith.constant 9.99999974E-6 : f32
    %295 = vector.broadcast %cst_389 : f32 to vector<8x1xf32>
    %296 = arith.addf %294, %295 : vector<8x1xf32>
    %297 = math.rsqrt %296 : vector<8x1xf32>
    %298 = vector.broadcast %283 : vector<8x1xf32> to vector<8x384xf32>
    %299 = arith.subf %275, %298 : vector<8x384xf32>
    %300 = vector.broadcast %297 : vector<8x1xf32> to vector<8x384xf32>
    %301 = arith.mulf %299, %300 : vector<8x384xf32>
    %c0_390 = arith.constant 0 : index
    %c75_391 = arith.constant 75 : index
    %302 = vector.load %arg8[%c0_390, %c75_391] : memref<8x640xf32, #tpu.memory_space<vmem>>, vector<8x384xf32>
    %cst_392 = arith.constant 1.000000e-01 : f32
    %303 = vector.broadcast %cst_392 : f32 to vector<8x384xf32>
    %304 = arith.mulf %301, %303 : vector<8x384xf32>
    %305 = arith.addf %304, %302 : vector<8x384xf32>
    %c0_393 = arith.constant 0 : index
    %c0_394 = arith.constant 0 : index
    %306 = vector.load %arg7[%c0_393, %c0_394] : memref<8x384xf32, #tpu.memory_space<vmem>>, vector<8x384xf32>
    tpu.vector_store %arg7[%c0_393, %c0_394], %305 {strides = array<i32>} : memref<8x384xf32, #tpu.memory_space<vmem>>, vector<8x384xf32>,
    return
  }
  func.func @transform_0(%arg0: i32) -> (i32, i32) {
    %c0_i32 = arith.constant 0 : i32
    %c0_i32_0 = arith.constant 0 : i32
    %c0_i32_1 = arith.constant 0 : i32
    return %c0_i32, %c0_i32_0 : i32, i32
  }
  func.func @transform_1(%arg0: i32) -> (i32, i32) {
    %c0_i32 = arith.constant 0 : i32
    %c0_i32_0 = arith.constant 0 : i32
    %c0_i32_1 = arith.constant 0 : i32
    return %c0_i32, %c0_i32_0 : i32, i32
  }
  func.func @transform_2(%arg0: i32) -> (i32, i32) {
    %c0_i32 = arith.constant 0 : i32
    %c0_i32_0 = arith.constant 0 : i32
    %c0_i32_1 = arith.constant 0 : i32
    return %c0_i32, %c0_i32_0 : i32, i32
  }
  func.func @transform_3(%arg0: i32) -> (i32, i32) {
    %c0_i32 = arith.constant 0 : i32
    %c0_i32_0 = arith.constant 0 : i32
    %c0_i32_1 = arith.constant 0 : i32
    return %c0_i32, %c0_i32_0 : i32, i32
  }
  func.func @transform_4(%arg0: i32) -> (i32, i32) {
    %c0_i32 = arith.constant 0 : i32
    %c0_i32_0 = arith.constant 0 : i32
    %c0_i32_1 = arith.constant 0 : i32
    return %c0_i32, %c0_i32_0 : i32, i32
  }
  func.func @transform_5(%arg0: i32) -> (i32, i32) {
    %c0_i32 = arith.constant 0 : i32
    %c0_i32_0 = arith.constant 0 : i32
    %c0_i32_1 = arith.constant 0 : i32
    return %c0_i32, %c0_i32_0 : i32, i32
  }
  func.func @transform_6(%arg0: i32) -> (i32, i32) {
    %c0_i32 = arith.constant 0 : i32
    %c0_i32_0 = arith.constant 0 : i32
    %c0_i32_1 = arith.constant 0 : i32
    return %c0_i32, %c0_i32_0 : i32, i32
  }
}

</mosaic_0001>

<llo_original>
// kernel: tile.10
$region0: #{tile.10}
  #allocation0 [shape = 's32[1]{0}', space=sflag, size = 0x4, scoped, tag = 'scoped memory for tile.10']
  %s0 = inlined_call_operand.vmem [shape: f32[4], index: 0, kind: input, shape index: {}]
  %s1 = inlined_call_operand.vmem [shape: f32[2,1,1,4], index: 1, kind: output, shape index: {}]
  // Predicated region
  $region2: #{tile.10} parent=0 // pred_check
    _
  $region3: #{tile.10} parent=0 // pred_check_branch
    %3 = sbr.rel (0) target = $region5
  $region4: #{tile.10} parent=0 // pred_region
    _
  $region5: #{tile.10} parent=0 // pred_fallthru
    _
  %v4 = vld [vmem:[%s0] ss:$0 sm:$0xff]
  %5 = vst [vmem:[%s1] sm:$0x3] %v4

// kernel: tile.0
$region0: #{tile.0}
  %s0 = inlined_call_operand.vmem [shape: f32[2,1,1,4], index: 0, kind: input, shape index: {}]
  %s1 = inlined_call_operand.vmem [shape: f32[8,1], index: 1, kind: output, shape index: {}]
  $region1: #{tile.0} parent=0
    #allocation0 [shape = 'u8[4096]{0}', space=vmem, size = 0x1000, scoped, tag = 'scoped mem for input reshape']
    %s3 = sshll.u32 1, 2
    %s4 = ssub.s32 %s3, 1
    %v5 = vld [vmem:[%s0] sm:%s4]
    %6 = vst [vmem:[#allocation0] sm:%s4] %v5
    %v7 = vld [vmem:[#allocation0] sm:$0x3]
    %vm8 = vcmask 7168
    %9 = vst.msk [vmem:[%s1] ss:$4 sm:$0x3] %vm8, %v7
    %v10 = vld [vmem:[#allocation0] sm:$0x3]
    %11 = vrot.lane.b32.xlu0 %v10, 127
    %v12 = vpop.permute.xlu0 %11
    %vm13 = vcmask 7168
    %s14 = scalar_lea.vmem %s1, 1
    %15 = vst.msk [vmem:[%s14] ss:$4 sm:$0x3] %vm13, %v12
    %v16 = vld [vmem:[#allocation0] sm:$0x3]
    %17 = vrot.lane.b32.xlu0 %v16, 126
    %v18 = vpop.permute.xlu0 %17
    %vm19 = vcmask 7168
    %s20 = scalar_lea.vmem %s1, 2
    %21 = vst.msk [vmem:[%s20] ss:$4 sm:$0x3] %vm19, %v18
    %v22 = vld [vmem:[#allocation0] sm:$0x3]
    %23 = vrot.lane.b32.xlu0 %v22, 125
    %v24 = vpop.permute.xlu0 %23
    %vm25 = vcmask 7168
    %s26 = scalar_lea.vmem %s1, 3
    %27 = vst.msk [vmem:[%s26] ss:$4 sm:$0x3] %vm25, %v24

// kernel: rot_res_block.1
$region0: #{rot_res_block.1}
  #allocation0 [shape = 'u32[]', space=smem, size = 0x4, offset = 0x4, fixed_abs, tag = 'smem constant byte address 0x4 - core index']
  #allocation1 [shape = 'u32[144,128]{1,0:T(1,128)}', space=vmem, size = 0x12000, scoped, tag = 'internal scratch']
  #allocation2 [shape = 'f32[8,640]{1,0:T(8,128)}', space=vmem, size = 0x5000, scoped, tag = 'scratch operand']
  #allocation3 [shape = 'f32[8,640]{1,0:T(8,128)}', space=vmem, size = 0x5000, scoped, tag = 'scratch operand']
  #allocation4 [shape = 'f32[392,384]{1,0:T(8,128)}', space=vmem, size = 0x93000, scoped, tag = 'scratch operand']
  %s0 = inlined_call_operand.vmem [shape: f32[8,256], index: 0, kind: input, shape index: {}]
  %s1 = inlined_call_operand.vmem [shape: f32[8,392], index: 1, kind: input, shape index: {}]
  %s2 = inlined_call_operand.vmem [shape: f32[8,392], index: 2, kind: input, shape index: {}]
  %s3 = inlined_call_operand.vmem [shape: f32[8,1], index: 3, kind: input, shape index: {}]
  %s4 = inlined_call_operand.vmem [shape: f32[8,1], index: 4, kind: input, shape index: {}]
  %s5 = inlined_call_operand.vmem [shape: f32[1,384], index: 5, kind: input, shape index: {}]
  %s6 = inlined_call_operand.vmem [shape: f32[8,384], index: 6, kind: output, shape index: {}]
  %s7 = sld [smem:[#allocation0]]
  $region34: #{rot_res_block.1} parent=0
    _
  %s9 = ssub.s32 1, %s7
  %s10 = scalar_select 0, %s9, %s7
  // Predicated region
  $region2: #{rot_res_block.1} parent=0 // pred_check
    _
  $region3: #{rot_res_block.1} parent=0 // pred_check_branch
    %12 = sbr.rel (0) target = $region5
  $region4: #{rot_res_block.1} parent=0 // pred_region
    _
  $region5: #{rot_res_block.1} parent=0 // pred_fallthru
    _
  // Predicated region
  $region6: #{rot_res_block.1} parent=0 // pred_check
    _
  $region7: #{rot_res_block.1} parent=0 // pred_check_branch
    %14 = sbr.rel (0) target = $region9
  $region8: #{rot_res_block.1} parent=0 // pred_region
    _
  $region9: #{rot_res_block.1} parent=0 // pred_fallthru
    _
  // Predicated region
  $region10: #{rot_res_block.1} parent=0 // pred_check
    _
  $region11: #{rot_res_block.1} parent=0 // pred_check_branch
    %16 = sbr.rel (0) target = $region13
  $region12: #{rot_res_block.1} parent=0 // pred_region
    _
  $region13: #{rot_res_block.1} parent=0 // pred_fallthru
    _
  // Predicated region
  $region14: #{rot_res_block.1} parent=0 // pred_check
    _
  $region15: #{rot_res_block.1} parent=0 // pred_check_branch
    %18 = sbr.rel (0) target = $region17
  $region16: #{rot_res_block.1} parent=0 // pred_region
    _
  $region17: #{rot_res_block.1} parent=0 // pred_fallthru
    _
  // Predicated region
  $region18: #{rot_res_block.1} parent=0 // pred_check
    _
  $region19: #{rot_res_block.1} parent=0 // pred_check_branch
    %20 = sbr.rel (0) target = $region21
  $region20: #{rot_res_block.1} parent=0 // pred_region
    _
  $region21: #{rot_res_block.1} parent=0 // pred_fallthru
    _
  // Predicated region
  $region22: #{rot_res_block.1} parent=0 // pred_check
    _
  $region23: #{rot_res_block.1} parent=0 // pred_check_branch
    %22 = sbr.rel (0) target = $region25
  $region24: #{rot_res_block.1} parent=0 // pred_region
    _
  $region25: #{rot_res_block.1} parent=0 // pred_fallthru
    _
  %v23 = vld [vmem:[%s5] sm:$0x7]
  %24 = vst [vmem:[#allocation2] sm:$0xff] 0.0
  %25 = vst [vmem:[#allocation2 + $0x8] sm:$0xff] 0.0
  %26 = vst [vmem:[#allocation2 + $0x10] sm:$0xff] 0.0
  %27 = vst [vmem:[#allocation2 + $0x18] sm:$0xff] 0.0
  %28 = vst [vmem:[#allocation2 + $0x20] sm:$0xff] 0.0
  %v29 = vld [vmem:[%s0] sm:$0xff]
  %31 = vrot.lane.b32.xlu0 %v29, 75
  %v32 = vpop.permute.xlu0 %31
  %vm34 = vcmask 745048
  %35 = vst.msk [vmem:[#allocation2] sm:$0xff] %vm34, %v32
  %v36 = vld [vmem:[%s0] sm:$0xff]
  %38 = vrot.lane.b32.xlu0 %v36, 83
  %v39 = vpop.permute.xlu0 %38
  %vm41 = vcmask 941848
  %42 = vst.msk [vmem:[#allocation2] sm:$0xff] %vm41, %v39
  %v43 = vld [vmem:[%s0] sm:$0xff]
  %45 = vrot.lane.b32.xlu0 %v43, 91
  %v46 = vpop.permute.xlu0 %45
  %vm48 = vcmask 1048536
  %49 = vst.msk [vmem:[#allocation2] sm:$0xff] %vm48, %v46
  %vm50 = vcmask 89088
  %51 = vst.msk [vmem:[#allocation2 + $0x8] sm:$0xff] %vm50, %v46
  %v52 = vld [vmem:[%s0] sm:$0xff]
  %54 = vrot.lane.b32.xlu0 %v52, 99
  %v55 = vpop.permute.xlu0 %54
  %vm57 = vcmask 285848
  %58 = vst.msk [vmem:[#allocation2 + $0x8] sm:$0xff] %vm57, %v55
  %v59 = vld [vmem:[%s0] sm:$0xff]
  %61 = vrot.lane.b32.xlu0 %v59, 107
  %v62 = vpop.permute.xlu0 %61
  %vm64 = vcmask 482648
  %65 = vst.msk [vmem:[#allocation2 + $0x8] sm:$0xff] %vm64, %v62
  %v66 = vld [vmem:[%s0] sm:$0xff]
  %68 = vrot.lane.b32.xlu0 %v66, 115
  %v69 = vpop.permute.xlu0 %68
  %vm71 = vcmask 679448
  %72 = vst.msk [vmem:[#allocation2 + $0x8] sm:$0xff] %vm71, %v69
  %v73 = vld [vmem:[%s0] sm:$0xff]
  %75 = vrot.lane.b32.xlu0 %v73, 123
  %v76 = vpop.permute.xlu0 %75
  %vm78 = vcmask 876248
  %79 = vst.msk [vmem:[#allocation2 + $0x8] sm:$0xff] %vm78, %v76
  %v80 = vld [vmem:[%s0] sm:$0xff]
  %82 = vrot.lane.b32.xlu0 %v80, 3
  %v83 = vpop.permute.xlu0 %82
  %vm85 = vcmask 1048472
  %86 = vst.msk [vmem:[#allocation2 + $0x8] sm:$0xff] %vm85, %v83
  %vm87 = vcmask 23552
  %88 = vst.msk [vmem:[#allocation2 + $0x10] sm:$0xff] %vm87, %v83
  %v89 = vld [vmem:[%s0 + $0x8] sm:$0xff]
  %91 = vrot.lane.b32.xlu0 %v89, 11
  %v92 = vpop.permute.xlu0 %91
  %vm94 = vcmask 220248
  %95 = vst.msk [vmem:[#allocation2 + $0x10] sm:$0xff] %vm94, %v92
  %v96 = vld [vmem:[%s0 + $0x8] sm:$0xff]
  %98 = vrot.lane.b32.xlu0 %v96, 19
  %v99 = vpop.permute.xlu0 %98
  %vm101 = vcmask 417048
  %102 = vst.msk [vmem:[#allocation2 + $0x10] sm:$0xff] %vm101, %v99
  %v103 = vld [vmem:[%s0 + $0x8] sm:$0xff]
  %105 = vrot.lane.b32.xlu0 %v103, 27
  %v106 = vpop.permute.xlu0 %105
  %vm108 = vcmask 613848
  %109 = vst.msk [vmem:[#allocation2 + $0x10] sm:$0xff] %vm108, %v106
  %v110 = vld [vmem:[%s0 + $0x8] sm:$0xff]
  %112 = vrot.lane.b32.xlu0 %v110, 35
  %v113 = vpop.permute.xlu0 %112
  %vm115 = vcmask 810648
  %116 = vst.msk [vmem:[#allocation2 + $0x10] sm:$0xff] %vm115, %v113
  %v117 = vld [vmem:[%s0 + $0x8] sm:$0xff]
  %119 = vrot.lane.b32.xlu0 %v117, 43
  %v120 = vpop.permute.xlu0 %119
  %vm122 = vcmask 1007448
  %123 = vst.msk [vmem:[#allocation2 + $0x10] sm:$0xff] %vm122, %v120
  %v124 = vld [vmem:[%s0 + $0x8] sm:$0xff]
  %126 = vrot.lane.b32.xlu0 %v124, 51
  %v127 = vpop.permute.xlu0 %126
  %vm129 = vcmask 154648
  %130 = vst.msk [vmem:[#allocation2 + $0x18] sm:$0xff] %vm129, %v127
  %v131 = vld [vmem:[%s0 + $0x8] sm:$0xff]
  %133 = vrot.lane.b32.xlu0 %v131, 59
  %v134 = vpop.permute.xlu0 %133
  %vm136 = vcmask 351448
  %137 = vst.msk [vmem:[#allocation2 + $0x18] sm:$0xff] %vm136, %v134
  %v138 = vld [vmem:[%s0 + $0x8] sm:$0xff]
  %140 = vrot.lane.b32.xlu0 %v138, 67
  %v141 = vpop.permute.xlu0 %140
  %vm143 = vcmask 548248
  %144 = vst.msk [vmem:[#allocation2 + $0x18] sm:$0xff] %vm143, %v141
  %v145 = vld [vmem:[#allocation2] sm:$0xff]
  %v146 = vld [vmem:[#allocation2 + $0x8] sm:$0xff]
  %v147 = vld [vmem:[#allocation2 + $0x10] sm:$0xff]
  %148 = vst [vmem:[#allocation4] sm:$0xff] %v145
  %149 = vst [vmem:[#allocation4 + $0x8] sm:$0xff] %v146
  %150 = vst [vmem:[#allocation4 + $0x10] sm:$0xff] %v147
  %v151 = vld [vmem:[#allocation2] sm:$0xff]
  %v152 = vld [vmem:[#allocation2 + $0x8] sm:$0xff]
  %v153 = vld [vmem:[#allocation2 + $0x10] sm:$0xff]
  %v154 = vld [vmem:[#allocation2 + $0x18] sm:$0xff]
  %159 = vrot.lane.b32.xlu0 %v151, 127
  %v160 = vpop.permute.xlu0 %159
  %161 = vrot.lane.b32.xlu0 %v152, 127
  %v162 = vpop.permute.xlu0 %161
  %163 = vrot.lane.b32.xlu0 %v153, 127
  %v164 = vpop.permute.xlu0 %163
  %165 = vrot.lane.b32.xlu0 %v154, 127
  %v166 = vpop.permute.xlu0 %165
  %vm167 = vcmask 1039360
  %v168 = vsel %vm167, %v160, %v162
  %v169 = vsel %vm167, %v162, %v164
  %v170 = vsel %vm167, %v164, %v166
  %174 = vst [vmem:[#allocation4 + $0x18] sm:$0xff] %v168
  %175 = vst [vmem:[#allocation4 + $0x20] sm:$0xff] %v169
  %176 = vst [vmem:[#allocation4 + $0x28] sm:$0xff] %v170
  %v177 = vld [vmem:[#allocation2] sm:$0xff]
  %v178 = vld [vmem:[#allocation2 + $0x8] sm:$0xff]
  %v179 = vld [vmem:[#allocation2 + $0x10] sm:$0xff]
  %v180 = vld [vmem:[#allocation2 + $0x18] sm:$0xff]
  %185 = vrot.lane.b32.xlu0 %v177, 126
  %v186 = vpop.permute.xlu0 %185
  %187 = vrot.lane.b32.xlu0 %v178, 126
  %v188 = vpop.permute.xlu0 %187
  %189 = vrot.lane.b32.xlu0 %v179, 126
  %v190 = vpop.permute.xlu0 %189
  %191 = vrot.lane.b32.xlu0 %v180, 126
  %v192 = vpop.permute.xlu0 %191
  %vm193 = vcmask 1031168
  %v194 = vsel %vm193, %v186, %v188
  %v195 = vsel %vm193, %v188, %v190
  %v196 = vsel %vm193, %v190, %v192
  %200 = vst [vmem:[#allocation4 + $0x30] sm:$0xff] %v194
  %201 = vst [vmem:[#allocation4 + $0x38] sm:$0xff] %v195
  %202 = vst [vmem:[#allocation4 + $0x40] sm:$0xff] %v196
  %v203 = vld [vmem:[#allocation2] sm:$0xff]
  %v204 = vld [vmem:[#allocation2 + $0x8] sm:$0xff]
  %v205 = vld [vmem:[#allocation2 + $0x10] sm:$0xff]
  %v206 = vld [vmem:[#allocation2 + $0x18] sm:$0xff]
  %211 = vrot.lane.b32.xlu0 %v203, 125
  %v212 = vpop.permute.xlu0 %211
  %213 = vrot.lane.b32.xlu0 %v204, 125
  %v214 = vpop.permute.xlu0 %213
  %215 = vrot.lane.b32.xlu0 %v205, 125
  %v216 = vpop.permute.xlu0 %215
  %217 = vrot.lane.b32.xlu0 %v206, 125
  %v218 = vpop.permute.xlu0 %217
  %vm219 = vcmask 1022976
  %v220 = vsel %vm219, %v212, %v214
  %v221 = vsel %vm219, %v214, %v216
  %v222 = vsel %vm219, %v216, %v218
  %226 = vst [vmem:[#allocation4 + $0x48] sm:$0xff] %v220
  %227 = vst [vmem:[#allocation4 + $0x50] sm:$0xff] %v221
  %228 = vst [vmem:[#allocation4 + $0x58] sm:$0xff] %v222
  %v229 = vld [vmem:[#allocation2] sm:$0xff]
  %v230 = vld [vmem:[#allocation2 + $0x8] sm:$0xff]
  %v231 = vld [vmem:[#allocation2 + $0x10] sm:$0xff]
  %v232 = vld [vmem:[#allocation2 + $0x18] sm:$0xff]
  %237 = vrot.lane.b32.xlu0 %v229, 124
  %v238 = vpop.permute.xlu0 %237
  %239 = vrot.lane.b32.xlu0 %v230, 124
  %v240 = vpop.permute.xlu0 %239
  %241 = vrot.lane.b32.xlu0 %v231, 124
  %v242 = vpop.permute.xlu0 %241
  %243 = vrot.lane.b32.xlu0 %v232, 124
  %v244 = vpop.permute.xlu0 %243
  %vm245 = vcmask 1014784
  %v246 = vsel %vm245, %v238, %v240
  %v247 = vsel %vm245, %v240, %v242
  %v248 = vsel %vm245, %v242, %v244
  %252 = vst [vmem:[#allocation4 + $0x60] sm:$0xff] %v246
  %253 = vst [vmem:[#allocation4 + $0x68] sm:$0xff] %v247
  %254 = vst [vmem:[#allocation4 + $0x70] sm:$0xff] %v248
  %v255 = vld [vmem:[#allocation2] sm:$0xff]
  %v256 = vld [vmem:[#allocation2 + $0x8] sm:$0xff]
  %v257 = vld [vmem:[#allocation2 + $0x10] sm:$0xff]
  %v258 = vld [vmem:[#allocation2 + $0x18] sm:$0xff]
  %263 = vrot.lane.b32.xlu0 %v255, 123
  %v264 = vpop.permute.xlu0 %263
  %265 = vrot.lane.b32.xlu0 %v256, 123
  %v266 = vpop.permute.xlu0 %265
  %267 = vrot.lane.b32.xlu0 %v257, 123
  %v268 = vpop.permute.xlu0 %267
  %269 = vrot.lane.b32.xlu0 %v258, 123
  %v270 = vpop.permute.xlu0 %269
  %vm271 = vcmask 1006592
  %v272 = vsel %vm271, %v264, %v266
  %v273 = vsel %vm271, %v266, %v268
  %v274 = vsel %vm271, %v268, %v270
  %278 = vst [vmem:[#allocation4 + $0x78] sm:$0xff] %v272
  %279 = vst [vmem:[#allocation4 + $0x80] sm:$0xff] %v273
  %280 = vst [vmem:[#allocation4 + $0x88] sm:$0xff] %v274
  %v281 = vld [vmem:[#allocation2] sm:$0xff]
  %v282 = vld [vmem:[#allocation2 + $0x8] sm:$0xff]
  %v283 = vld [vmem:[#allocation2 + $0x10] sm:$0xff]
  %v284 = vld [vmem:[#allocation2 + $0x18] sm:$0xff]
  %289 = vrot.lane.b32.xlu0 %v281, 122
  %v290 = vpop.permute.xlu0 %289
  %291 = vrot.lane.b32.xlu0 %v282, 122
  %v292 = vpop.permute.xlu0 %291
  %293 = vrot.lane.b32.xlu0 %v283, 122
  %v294 = vpop.permute.xlu0 %293
  %295 = vrot.lane.b32.xlu0 %v284, 122
  %v296 = vpop.permute.xlu0 %295
  %vm297 = vcmask 998400
  %v298 = vsel %vm297, %v290, %v292
  %v299 = vsel %vm297, %v292, %v294
  %v300 = vsel %vm297, %v294, %v296
  %304 = vst [vmem:[#allocation4 + $0x90] sm:$0xff] %v298
  %305 = vst [vmem:[#allocation4 + $0x98] sm:$0xff] %v299
  %306 = vst [vmem:[#allocation4 + $0xa0] sm:$0xff] %v300
  %v307 = vld [vmem:[#allocation2] sm:$0xff]
  %v308 = vld [vmem:[#allocation2 + $0x8] sm:$0xff]
  %v309 = vld [vmem:[#allocation2 + $0x10] sm:$0xff]
  %v310 = vld [vmem:[#allocation2 + $0x18] sm:$0xff]
  %315 = vrot.lane.b32.xlu0 %v307, 104
  %v316 = vpop.permute.xlu0 %315
  %317 = vrot.lane.b32.xlu0 %v308, 104
  %v318 = vpop.permute.xlu0 %317
  %319 = vrot.lane.b32.xlu0 %v309, 104
  %v320 = vpop.permute.xlu0 %319
  %321 = vrot.lane.b32.xlu0 %v310, 104
  %v322 = vpop.permute.xlu0 %321
  %vm323 = vcmask 850944
  %v324 = vsel %vm323, %v316, %v318
  %v325 = vsel %vm323, %v318, %v320
  %v326 = vsel %vm323, %v320, %v322
  %330 = vst [vmem:[#allocation4 + $0xa8] sm:$0xff] %v324
  %331 = vst [vmem:[#allocation4 + $0xb0] sm:$0xff] %v325
  %332 = vst [vmem:[#allocation4 + $0xb8] sm:$0xff] %v326
  %v333 = vld [vmem:[#allocation2] sm:$0xff]
  %v334 = vld [vmem:[#allocation2 + $0x8] sm:$0xff]
  %v335 = vld [vmem:[#allocation2 + $0x10] sm:$0xff]
  %v336 = vld [vmem:[#allocation2 + $0x18] sm:$0xff]
  %341 = vrot.lane.b32.xlu0 %v333, 103
  %v342 = vpop.permute.xlu0 %341
  %343 = vrot.lane.b32.xlu0 %v334, 103
  %v344 = vpop.permute.xlu0 %343
  %345 = vrot.lane.b32.xlu0 %v335, 103
  %v346 = vpop.permute.xlu0 %345
  %347 = vrot.lane.b32.xlu0 %v336, 103
  %v348 = vpop.permute.xlu0 %347
  %vm349 = vcmask 842752
  %v350 = vsel %vm349, %v342, %v344
  %v351 = vsel %vm349, %v344, %v346
  %v352 = vsel %vm349, %v346, %v348
  %356 = vst [vmem:[#allocation4 + $0xc0] sm:$0xff] %v350
  %357 = vst [vmem:[#allocation4 + $0xc8] sm:$0xff] %v351
  %358 = vst [vmem:[#allocation4 + $0xd0] sm:$0xff] %v352
  %v359 = vld [vmem:[#allocation2] sm:$0xff]
  %v360 = vld [vmem:[#allocation2 + $0x8] sm:$0xff]
  %v361 = vld [vmem:[#allocation2 + $0x10] sm:$0xff]
  %v362 = vld [vmem:[#allocation2 + $0x18] sm:$0xff]
  %367 = vrot.lane.b32.xlu0 %v359, 102
  %v368 = vpop.permute.xlu0 %367
  %369 = vrot.lane.b32.xlu0 %v360, 102
  %v370 = vpop.permute.xlu0 %369
  %371 = vrot.lane.b32.xlu0 %v361, 102
  %v372 = vpop.permute.xlu0 %371
  %373 = vrot.lane.b32.xlu0 %v362, 102
  %v374 = vpop.permute.xlu0 %373
  %vm375 = vcmask 834560
  %v376 = vsel %vm375, %v368, %v370
  %v377 = vsel %vm375, %v370, %v372
  %v378 = vsel %vm375, %v372, %v374
  %382 = vst [vmem:[#allocation4 + $0xd8] sm:$0xff] %v376
  %383 = vst [vmem:[#allocation4 + $0xe0] sm:$0xff] %v377
  %384 = vst [vmem:[#allocation4 + $0xe8] sm:$0xff] %v378
  %v385 = vld [vmem:[#allocation2] sm:$0xff]
  %v386 = vld [vmem:[#allocation2 + $0x8] sm:$0xff]
  %v387 = vld [vmem:[#allocation2 + $0x10] sm:$0xff]
  %v388 = vld [vmem:[#allocation2 + $0x18] sm:$0xff]
  %393 = vrot.lane.b32.xlu0 %v385, 101
  %v394 = vpop.permute.xlu0 %393
  %395 = vrot.lane.b32.xlu0 %v386, 101
  %v396 = vpop.permute.xlu0 %395
  %397 = vrot.lane.b32.xlu0 %v387, 101
  %v398 = vpop.permute.xlu0 %397
  %399 = vrot.lane.b32.xlu0 %v388, 101
  %v400 = vpop.permute.xlu0 %399
  %vm401 = vcmask 826368
  %v402 = vsel %vm401, %v394, %v396
  %v403 = vsel %vm401, %v396, %v398
  %v404 = vsel %vm401, %v398, %v400
  %408 = vst [vmem:[#allocation4 + $0xf0] sm:$0xff] %v402
  %409 = vst [vmem:[#allocation4 + $0xf8] sm:$0xff] %v403
  %410 = vst [vmem:[#allocation4 + $0x100] sm:$0xff] %v404
  %v411 = vld [vmem:[#allocation2] sm:$0xff]
  %v412 = vld [vmem:[#allocation2 + $0x8] sm:$0xff]
  %v413 = vld [vmem:[#allocation2 + $0x10] sm:$0xff]
  %v414 = vld [vmem:[#allocation2 + $0x18] sm:$0xff]
  %419 = vrot.lane.b32.xlu0 %v411, 100
  %v420 = vpop.permute.xlu0 %419
  %421 = vrot.lane.b32.xlu0 %v412, 100
  %v422 = vpop.permute.xlu0 %421
  %423 = vrot.lane.b32.xlu0 %v413, 100
  %v424 = vpop.permute.xlu0 %423
  %425 = vrot.lane.b32.xlu0 %v414, 100
  %v426 = vpop.permute.xlu0 %425
  %vm427 = vcmask 818176
  %v428 = vsel %vm427, %v420, %v422
  %v429 = vsel %vm427, %v422, %v424
  %v430 = vsel %vm427, %v424, %v426
  %434 = vst [vmem:[#allocation4 + $0x108] sm:$0xff] %v428
  %435 = vst [vmem:[#allocation4 + $0x110] sm:$0xff] %v429
  %436 = vst [vmem:[#allocation4 + $0x118] sm:$0xff] %v430
  %v437 = vld [vmem:[#allocation2] sm:$0xff]
  %v438 = vld [vmem:[#allocation2 + $0x8] sm:$0xff]
  %v439 = vld [vmem:[#allocation2 + $0x10] sm:$0xff]
  %v440 = vld [vmem:[#allocation2 + $0x18] sm:$0xff]
  %445 = vrot.lane.b32.xlu0 %v437, 99
  %v446 = vpop.permute.xlu0 %445
  %447 = vrot.lane.b32.xlu0 %v438, 99
  %v448 = vpop.permute.xlu0 %447
  %449 = vrot.lane.b32.xlu0 %v439, 99
  %v450 = vpop.permute.xlu0 %449
  %451 = vrot.lane.b32.xlu0 %v440, 99
  %v452 = vpop.permute.xlu0 %451
  %vm453 = vcmask 809984
  %v454 = vsel %vm453, %v446, %v448
  %v455 = vsel %vm453, %v448, %v450
  %v456 = vsel %vm453, %v450, %v452
  %460 = vst [vmem:[#allocation4 + $0x120] sm:$0xff] %v454
  %461 = vst [vmem:[#allocation4 + $0x128] sm:$0xff] %v455
  %462 = vst [vmem:[#allocation4 + $0x130] sm:$0xff] %v456
  %v463 = vld [vmem:[#allocation2] sm:$0xff]
  %v464 = vld [vmem:[#allocation2 + $0x8] sm:$0xff]
  %v465 = vld [vmem:[#allocation2 + $0x10] sm:$0xff]
  %v466 = vld [vmem:[#allocation2 + $0x18] sm:$0xff]
  %471 = vrot.lane.b32.xlu0 %v463, 98
  %v472 = vpop.permute.xlu0 %471
  %473 = vrot.lane.b32.xlu0 %v464, 98
  %v474 = vpop.permute.xlu0 %473
  %475 = vrot.lane.b32.xlu0 %v465, 98
  %v476 = vpop.permute.xlu0 %475
  %477 = vrot.lane.b32.xlu0 %v466, 98
  %v478 = vpop.permute.xlu0 %477
  %vm479 = vcmask 801792
  %v480 = vsel %vm479, %v472, %v474
  %v481 = vsel %vm479, %v474, %v476
  %v482 = vsel %vm479, %v476, %v478
  %486 = vst [vmem:[#allocation4 + $0x138] sm:$0xff] %v480
  %487 = vst [vmem:[#allocation4 + $0x140] sm:$0xff] %v481
  %488 = vst [vmem:[#allocation4 + $0x148] sm:$0xff] %v482
  %v489 = vld [vmem:[#allocation2] sm:$0xff]
  %v490 = vld [vmem:[#allocation2 + $0x8] sm:$0xff]
  %v491 = vld [vmem:[#allocation2 + $0x10] sm:$0xff]
  %v492 = vld [vmem:[#allocation2 + $0x18] sm:$0xff]
  %497 = vrot.lane.b32.xlu0 %v489, 80
  %v498 = vpop.permute.xlu0 %497
  %499 = vrot.lane.b32.xlu0 %v490, 80
  %v500 = vpop.permute.xlu0 %499
  %501 = vrot.lane.b32.xlu0 %v491, 80
  %v502 = vpop.permute.xlu0 %501
  %503 = vrot.lane.b32.xlu0 %v492, 80
  %v504 = vpop.permute.xlu0 %503
  %vm505 = vcmask 654336
  %v506 = vsel %vm505, %v498, %v500
  %v507 = vsel %vm505, %v500, %v502
  %v508 = vsel %vm505, %v502, %v504
  %512 = vst [vmem:[#allocation4 + $0x150] sm:$0xff] %v506
  %513 = vst [vmem:[#allocation4 + $0x158] sm:$0xff] %v507
  %514 = vst [vmem:[#allocation4 + $0x160] sm:$0xff] %v508
  %v515 = vld [vmem:[#allocation2] sm:$0xff]
  %v516 = vld [vmem:[#allocation2 + $0x8] sm:$0xff]
  %v517 = vld [vmem:[#allocation2 + $0x10] sm:$0xff]
  %v518 = vld [vmem:[#allocation2 + $0x18] sm:$0xff]
  %523 = vrot.lane.b32.xlu0 %v515, 79
  %v524 = vpop.permute.xlu0 %523
  %525 = vrot.lane.b32.xlu0 %v516, 79
  %v526 = vpop.permute.xlu0 %525
  %527 = vrot.lane.b32.xlu0 %v517, 79
  %v528 = vpop.permute.xlu0 %527
  %529 = vrot.lane.b32.xlu0 %v518, 79
  %v530 = vpop.permute.xlu0 %529
  %vm531 = vcmask 646144
  %v532 = vsel %vm531, %v524, %v526
  %v533 = vsel %vm531, %v526, %v528
  %v534 = vsel %vm531, %v528, %v530
  %538 = vst [vmem:[#allocation4 + $0x168] sm:$0xff] %v532
  %539 = vst [vmem:[#allocation4 + $0x170] sm:$0xff] %v533
  %540 = vst [vmem:[#allocation4 + $0x178] sm:$0xff] %v534
  %v541 = vld [vmem:[#allocation2] sm:$0xff]
  %v542 = vld [vmem:[#allocation2 + $0x8] sm:$0xff]
  %v543 = vld [vmem:[#allocation2 + $0x10] sm:$0xff]
  %v544 = vld [vmem:[#allocation2 + $0x18] sm:$0xff]
  %549 = vrot.lane.b32.xlu0 %v541, 78
  %v550 = vpop.permute.xlu0 %549
  %551 = vrot.lane.b32.xlu0 %v542, 78
  %v552 = vpop.permute.xlu0 %551
  %553 = vrot.lane.b32.xlu0 %v543, 78
  %v554 = vpop.permute.xlu0 %553
  %555 = vrot.lane.b32.xlu0 %v544, 78
  %v556 = vpop.permute.xlu0 %555
  %vm557 = vcmask 637952
  %v558 = vsel %vm557, %v550, %v552
  %v559 = vsel %vm557, %v552, %v554
  %v560 = vsel %vm557, %v554, %v556
  %564 = vst [vmem:[#allocation4 + $0x180] sm:$0xff] %v558
  %565 = vst [vmem:[#allocation4 + $0x188] sm:$0xff] %v559
  %566 = vst [vmem:[#allocation4 + $0x190] sm:$0xff] %v560
  %v567 = vld [vmem:[#allocation2] sm:$0xff]
  %v568 = vld [vmem:[#allocation2 + $0x8] sm:$0xff]
  %v569 = vld [vmem:[#allocation2 + $0x10] sm:$0xff]
  %v570 = vld [vmem:[#allocation2 + $0x18] sm:$0xff]
  %575 = vrot.lane.b32.xlu0 %v567, 77
  %v576 = vpop.permute.xlu0 %575
  %577 = vrot.lane.b32.xlu0 %v568, 77
  %v578 = vpop.permute.xlu0 %577
  %579 = vrot.lane.b32.xlu0 %v569, 77
  %v580 = vpop.permute.xlu0 %579
  %581 = vrot.lane.b32.xlu0 %v570, 77
  %v582 = vpop.permute.xlu0 %581
  %vm583 = vcmask 629760
  %v584 = vsel %vm583, %v576, %v578
  %v585 = vsel %vm583, %v578, %v580
  %v586 = vsel %vm583, %v580, %v582
  %590 = vst [vmem:[#allocation4 + $0x198] sm:$0xff] %v584
  %591 = vst [vmem:[#allocation4 + $0x1a0] sm:$0xff] %v585
  %592 = vst [vmem:[#allocation4 + $0x1a8] sm:$0xff] %v586
  %v593 = vld [vmem:[#allocation2] sm:$0xff]
  %v594 = vld [vmem:[#allocation2 + $0x8] sm:$0xff]
  %v595 = vld [vmem:[#allocation2 + $0x10] sm:$0xff]
  %v596 = vld [vmem:[#allocation2 + $0x18] sm:$0xff]
  %601 = vrot.lane.b32.xlu0 %v593, 76
  %v602 = vpop.permute.xlu0 %601
  %603 = vrot.lane.b32.xlu0 %v594, 76
  %v604 = vpop.permute.xlu0 %603
  %605 = vrot.lane.b32.xlu0 %v595, 76
  %v606 = vpop.permute.xlu0 %605
  %607 = vrot.lane.b32.xlu0 %v596, 76
  %v608 = vpop.permute.xlu0 %607
  %vm609 = vcmask 621568
  %v610 = vsel %vm609, %v602, %v604
  %v611 = vsel %vm609, %v604, %v606
  %v612 = vsel %vm609, %v606, %v608
  %616 = vst [vmem:[#allocation4 + $0x1b0] sm:$0xff] %v610
  %617 = vst [vmem:[#allocation4 + $0x1b8] sm:$0xff] %v611
  %618 = vst [vmem:[#allocation4 + $0x1c0] sm:$0xff] %v612
  %v619 = vld [vmem:[#allocation2] sm:$0xff]
  %v620 = vld [vmem:[#allocation2 + $0x8] sm:$0xff]
  %v621 = vld [vmem:[#allocation2 + $0x10] sm:$0xff]
  %v622 = vld [vmem:[#allocation2 + $0x18] sm:$0xff]
  %627 = vrot.lane.b32.xlu0 %v619, 75
  %v628 = vpop.permute.xlu0 %627
  %629 = vrot.lane.b32.xlu0 %v620, 75
  %v630 = vpop.permute.xlu0 %629
  %631 = vrot.lane.b32.xlu0 %v621, 75
  %v632 = vpop.permute.xlu0 %631
  %633 = vrot.lane.b32.xlu0 %v622, 75
  %v634 = vpop.permute.xlu0 %633
  %vm635 = vcmask 613376
  %v636 = vsel %vm635, %v628, %v630
  %v637 = vsel %vm635, %v630, %v632
  %v638 = vsel %vm635, %v632, %v634
  %642 = vst [vmem:[#allocation4 + $0x1c8] sm:$0xff] %v636
  %643 = vst [vmem:[#allocation4 + $0x1d0] sm:$0xff] %v637
  %644 = vst [vmem:[#allocation4 + $0x1d8] sm:$0xff] %v638
  %v645 = vld [vmem:[#allocation2] sm:$0xff]
  %v646 = vld [vmem:[#allocation2 + $0x8] sm:$0xff]
  %v647 = vld [vmem:[#allocation2 + $0x10] sm:$0xff]
  %v648 = vld [vmem:[#allocation2 + $0x18] sm:$0xff]
  %653 = vrot.lane.b32.xlu0 %v645, 74
  %v654 = vpop.permute.xlu0 %653
  %655 = vrot.lane.b32.xlu0 %v646, 74
  %v656 = vpop.permute.xlu0 %655
  %657 = vrot.lane.b32.xlu0 %v647, 74
  %v658 = vpop.permute.xlu0 %657
  %659 = vrot.lane.b32.xlu0 %v648, 74
  %v660 = vpop.permute.xlu0 %659
  %vm661 = vcmask 605184
  %v662 = vsel %vm661, %v654, %v656
  %v663 = vsel %vm661, %v656, %v658
  %v664 = vsel %vm661, %v658, %v660
  %668 = vst [vmem:[#allocation4 + $0x1e0] sm:$0xff] %v662
  %669 = vst [vmem:[#allocation4 + $0x1e8] sm:$0xff] %v663
  %670 = vst [vmem:[#allocation4 + $0x1f0] sm:$0xff] %v664
  %v671 = vld [vmem:[#allocation2] sm:$0xff]
  %v672 = vld [vmem:[#allocation2 + $0x8] sm:$0xff]
  %v673 = vld [vmem:[#allocation2 + $0x10] sm:$0xff]
  %v674 = vld [vmem:[#allocation2 + $0x18] sm:$0xff]
  %679 = vrot.lane.b32.xlu0 %v671, 56
  %v680 = vpop.permute.xlu0 %679
  %681 = vrot.lane.b32.xlu0 %v672, 56
  %v682 = vpop.permute.xlu0 %681
  %683 = vrot.lane.b32.xlu0 %v673, 56
  %v684 = vpop.permute.xlu0 %683
  %685 = vrot.lane.b32.xlu0 %v674, 56
  %v686 = vpop.permute.xlu0 %685
  %vm687 = vcmask 457728
  %v688 = vsel %vm687, %v680, %v682
  %v689 = vsel %vm687, %v682, %v684
  %v690 = vsel %vm687, %v684, %v686
  %694 = vst [vmem:[#allocation4 + $0x1f8] sm:$0xff] %v688
  %695 = vst [vmem:[#allocation4 + $0x200] sm:$0xff] %v689
  %696 = vst [vmem:[#allocation4 + $0x208] sm:$0xff] %v690
  %v697 = vld [vmem:[#allocation2] sm:$0xff]
  %v698 = vld [vmem:[#allocation2 + $0x8] sm:$0xff]
  %v699 = vld [vmem:[#allocation2 + $0x10] sm:$0xff]
  %v700 = vld [vmem:[#allocation2 + $0x18] sm:$0xff]
  %705 = vrot.lane.b32.xlu0 %v697, 55
  %v706 = vpop.permute.xlu0 %705
  %707 = vrot.lane.b32.xlu0 %v698, 55
  %v708 = vpop.permute.xlu0 %707
  %709 = vrot.lane.b32.xlu0 %v699, 55
  %v710 = vpop.permute.xlu0 %709
  %711 = vrot.lane.b32.xlu0 %v700, 55
  %v712 = vpop.permute.xlu0 %711
  %vm713 = vcmask 449536
  %v714 = vsel %vm713, %v706, %v708
  %v715 = vsel %vm713, %v708, %v710
  %v716 = vsel %vm713, %v710, %v712
  %720 = vst [vmem:[#allocation4 + $0x210] sm:$0xff] %v714
  %721 = vst [vmem:[#allocation4 + $0x218] sm:$0xff] %v715
  %722 = vst [vmem:[#allocation4 + $0x220] sm:$0xff] %v716
  %v723 = vld [vmem:[#allocation2] sm:$0xff]
  %v724 = vld [vmem:[#allocation2 + $0x8] sm:$0xff]
  %v725 = vld [vmem:[#allocation2 + $0x10] sm:$0xff]
  %v726 = vld [vmem:[#allocation2 + $0x18] sm:$0xff]
  %731 = vrot.lane.b32.xlu0 %v723, 54
  %v732 = vpop.permute.xlu0 %731
  %733 = vrot.lane.b32.xlu0 %v724, 54
  %v734 = vpop.permute.xlu0 %733
  %735 = vrot.lane.b32.xlu0 %v725, 54
  %v736 = vpop.permute.xlu0 %735
  %737 = vrot.lane.b32.xlu0 %v726, 54
  %v738 = vpop.permute.xlu0 %737
  %vm739 = vcmask 441344
  %v740 = vsel %vm739, %v732, %v734
  %v741 = vsel %vm739, %v734, %v736
  %v742 = vsel %vm739, %v736, %v738
  %746 = vst [vmem:[#allocation4 + $0x228] sm:$0xff] %v740
  %747 = vst [vmem:[#allocation4 + $0x230] sm:$0xff] %v741
  %748 = vst [vmem:[#allocation4 + $0x238] sm:$0xff] %v742
  %v749 = vld [vmem:[#allocation2] sm:$0xff]
  %v750 = vld [vmem:[#allocation2 + $0x8] sm:$0xff]
  %v751 = vld [vmem:[#allocation2 + $0x10] sm:$0xff]
  %v752 = vld [vmem:[#allocation2 + $0x18] sm:$0xff]
  %757 = vrot.lane.b32.xlu0 %v749, 53
  %v758 = vpop.permute.xlu0 %757
  %759 = vrot.lane.b32.xlu0 %v750, 53
  %v760 = vpop.permute.xlu0 %759
  %761 = vrot.lane.b32.xlu0 %v751, 53
  %v762 = vpop.permute.xlu0 %761
  %763 = vrot.lane.b32.xlu0 %v752, 53
  %v764 = vpop.permute.xlu0 %763
  %vm765 = vcmask 433152
  %v766 = vsel %vm765, %v758, %v760
  %v767 = vsel %vm765, %v760, %v762
  %v768 = vsel %vm765, %v762, %v764
  %772 = vst [vmem:[#allocation4 + $0x240] sm:$0xff] %v766
  %773 = vst [vmem:[#allocation4 + $0x248] sm:$0xff] %v767
  %774 = vst [vmem:[#allocation4 + $0x250] sm:$0xff] %v768
  %v775 = vld [vmem:[#allocation2] sm:$0xff]
  %v776 = vld [vmem:[#allocation2 + $0x8] sm:$0xff]
  %v777 = vld [vmem:[#allocation2 + $0x10] sm:$0xff]
  %v778 = vld [vmem:[#allocation2 + $0x18] sm:$0xff]
  %783 = vrot.lane.b32.xlu0 %v775, 52
  %v784 = vpop.permute.xlu0 %783
  %785 = vrot.lane.b32.xlu0 %v776, 52
  %v786 = vpop.permute.xlu0 %785
  %787 = vrot.lane.b32.xlu0 %v777, 52
  %v788 = vpop.permute.xlu0 %787
  %789 = vrot.lane.b32.xlu0 %v778, 52
  %v790 = vpop.permute.xlu0 %789
  %vm791 = vcmask 424960
  %v792 = vsel %vm791, %v784, %v786
  %v793 = vsel %vm791, %v786, %v788
  %v794 = vsel %vm791, %v788, %v790
  %798 = vst [vmem:[#allocation4 + $0x258] sm:$0xff] %v792
  %799 = vst [vmem:[#allocation4 + $0x260] sm:$0xff] %v793
  %800 = vst [vmem:[#allocation4 + $0x268] sm:$0xff] %v794
  %v801 = vld [vmem:[#allocation2] sm:$0xff]
  %v802 = vld [vmem:[#allocation2 + $0x8] sm:$0xff]
  %v803 = vld [vmem:[#allocation2 + $0x10] sm:$0xff]
  %v804 = vld [vmem:[#allocation2 + $0x18] sm:$0xff]
  %809 = vrot.lane.b32.xlu0 %v801, 51
  %v810 = vpop.permute.xlu0 %809
  %811 = vrot.lane.b32.xlu0 %v802, 51
  %v812 = vpop.permute.xlu0 %811
  %813 = vrot.lane.b32.xlu0 %v803, 51
  %v814 = vpop.permute.xlu0 %813
  %815 = vrot.lane.b32.xlu0 %v804, 51
  %v816 = vpop.permute.xlu0 %815
  %vm817 = vcmask 416768
  %v818 = vsel %vm817, %v810, %v812
  %v819 = vsel %vm817, %v812, %v814
  %v820 = vsel %vm817, %v814, %v816
  %824 = vst [vmem:[#allocation4 + $0x270] sm:$0xff] %v818
  %825 = vst [vmem:[#allocation4 + $0x278] sm:$0xff] %v819
  %826 = vst [vmem:[#allocation4 + $0x280] sm:$0xff] %v820
  %v827 = vld [vmem:[#allocation2] sm:$0xff]
  %v828 = vld [vmem:[#allocation2 + $0x8] sm:$0xff]
  %v829 = vld [vmem:[#allocation2 + $0x10] sm:$0xff]
  %v830 = vld [vmem:[#allocation2 + $0x18] sm:$0xff]
  %835 = vrot.lane.b32.xlu0 %v827, 50
  %v836 = vpop.permute.xlu0 %835
  %837 = vrot.lane.b32.xlu0 %v828, 50
  %v838 = vpop.permute.xlu0 %837
  %839 = vrot.lane.b32.xlu0 %v829, 50
  %v840 = vpop.permute.xlu0 %839
  %841 = vrot.lane.b32.xlu0 %v830, 50
  %v842 = vpop.permute.xlu0 %841
  %vm843 = vcmask 408576
  %v844 = vsel %vm843, %v836, %v838
  %v845 = vsel %vm843, %v838, %v840
  %v846 = vsel %vm843, %v840, %v842
  %850 = vst [vmem:[#allocation4 + $0x288] sm:$0xff] %v844
  %851 = vst [vmem:[#allocation4 + $0x290] sm:$0xff] %v845
  %852 = vst [vmem:[#allocation4 + $0x298] sm:$0xff] %v846
  %v853 = vld [vmem:[#allocation2] sm:$0xff]
  %v854 = vld [vmem:[#allocation2 + $0x8] sm:$0xff]
  %v855 = vld [vmem:[#allocation2 + $0x10] sm:$0xff]
  %v856 = vld [vmem:[#allocation2 + $0x18] sm:$0xff]
  %861 = vrot.lane.b32.xlu0 %v853, 32
  %v862 = vpop.permute.xlu0 %861
  %863 = vrot.lane.b32.xlu0 %v854, 32
  %v864 = vpop.permute.xlu0 %863
  %865 = vrot.lane.b32.xlu0 %v855, 32
  %v866 = vpop.permute.xlu0 %865
  %867 = vrot.lane.b32.xlu0 %v856, 32
  %v868 = vpop.permute.xlu0 %867
  %vm869 = vcmask 261120
  %v870 = vsel %vm869, %v862, %v864
  %v871 = vsel %vm869, %v864, %v866
  %v872 = vsel %vm869, %v866, %v868
  %876 = vst [vmem:[#allocation4 + $0x2a0] sm:$0xff] %v870
  %877 = vst [vmem:[#allocation4 + $0x2a8] sm:$0xff] %v871
  %878 = vst [vmem:[#allocation4 + $0x2b0] sm:$0xff] %v872
  %v879 = vld [vmem:[#allocation2] sm:$0xff]
  %v880 = vld [vmem:[#allocation2 + $0x8] sm:$0xff]
  %v881 = vld [vmem:[#allocation2 + $0x10] sm:$0xff]
  %v882 = vld [vmem:[#allocation2 + $0x18] sm:$0xff]
  %887 = vrot.lane.b32.xlu0 %v879, 31
  %v888 = vpop.permute.xlu0 %887
  %889 = vrot.lane.b32.xlu0 %v880, 31
  %v890 = vpop.permute.xlu0 %889
  %891 = vrot.lane.b32.xlu0 %v881, 31
  %v892 = vpop.permute.xlu0 %891
  %893 = vrot.lane.b32.xlu0 %v882, 31
  %v894 = vpop.permute.xlu0 %893
  %vm895 = vcmask 252928
  %v896 = vsel %vm895, %v888, %v890
  %v897 = vsel %vm895, %v890, %v892
  %v898 = vsel %vm895, %v892, %v894
  %902 = vst [vmem:[#allocation4 + $0x2b8] sm:$0xff] %v896
  %903 = vst [vmem:[#allocation4 + $0x2c0] sm:$0xff] %v897
  %904 = vst [vmem:[#allocation4 + $0x2c8] sm:$0xff] %v898
  %v905 = vld [vmem:[#allocation2] sm:$0xff]
  %v906 = vld [vmem:[#allocation2 + $0x8] sm:$0xff]
  %v907 = vld [vmem:[#allocation2 + $0x10] sm:$0xff]
  %v908 = vld [vmem:[#allocation2 + $0x18] sm:$0xff]
  %913 = vrot.lane.b32.xlu0 %v905, 30
  %v914 = vpop.permute.xlu0 %913
  %915 = vrot.lane.b32.xlu0 %v906, 30
  %v916 = vpop.permute.xlu0 %915
  %917 = vrot.lane.b32.xlu0 %v907, 30
  %v918 = vpop.permute.xlu0 %917
  %919 = vrot.lane.b32.xlu0 %v908, 30
  %v920 = vpop.permute.xlu0 %919
  %vm921 = vcmask 244736
  %v922 = vsel %vm921, %v914, %v916
  %v923 = vsel %vm921, %v916, %v918
  %v924 = vsel %vm921, %v918, %v920
  %928 = vst [vmem:[#allocation4 + $0x2d0] sm:$0xff] %v922
  %929 = vst [vmem:[#allocation4 + $0x2d8] sm:$0xff] %v923
  %930 = vst [vmem:[#allocation4 + $0x2e0] sm:$0xff] %v924
  %v931 = vld [vmem:[#allocation2] sm:$0xff]
  %v932 = vld [vmem:[#allocation2 + $0x8] sm:$0xff]
  %v933 = vld [vmem:[#allocation2 + $0x10] sm:$0xff]
  %v934 = vld [vmem:[#allocation2 + $0x18] sm:$0xff]
  %939 = vrot.lane.b32.xlu0 %v931, 29
  %v940 = vpop.permute.xlu0 %939
  %941 = vrot.lane.b32.xlu0 %v932, 29
  %v942 = vpop.permute.xlu0 %941
  %943 = vrot.lane.b32.xlu0 %v933, 29
  %v944 = vpop.permute.xlu0 %943
  %945 = vrot.lane.b32.xlu0 %v934, 29
  %v946 = vpop.permute.xlu0 %945
  %vm947 = vcmask 236544
  %v948 = vsel %vm947, %v940, %v942
  %v949 = vsel %vm947, %v942, %v944
  %v950 = vsel %vm947, %v944, %v946
  %954 = vst [vmem:[#allocation4 + $0x2e8] sm:$0xff] %v948
  %955 = vst [vmem:[#allocation4 + $0x2f0] sm:$0xff] %v949
  %956 = vst [vmem:[#allocation4 + $0x2f8] sm:$0xff] %v950
  %v957 = vld [vmem:[#allocation2] sm:$0xff]
  %v958 = vld [vmem:[#allocation2 + $0x8] sm:$0xff]
  %v959 = vld [vmem:[#allocation2 + $0x10] sm:$0xff]
  %v960 = vld [vmem:[#allocation2 + $0x18] sm:$0xff]
  %965 = vrot.lane.b32.xlu0 %v957, 28
  %v966 = vpop.permute.xlu0 %965
  %967 = vrot.lane.b32.xlu0 %v958, 28
  %v968 = vpop.permute.xlu0 %967
  %969 = vrot.lane.b32.xlu0 %v959, 28
  %v970 = vpop.permute.xlu0 %969
  %971 = vrot.lane.b32.xlu0 %v960, 28
  %v972 = vpop.permute.xlu0 %971
  %vm973 = vcmask 228352
  %v974 = vsel %vm973, %v966, %v968
  %v975 = vsel %vm973, %v968, %v970
  %v976 = vsel %vm973, %v970, %v972
  %980 = vst [vmem:[#allocation4 + $0x300] sm:$0xff] %v974
  %981 = vst [vmem:[#allocation4 + $0x308] sm:$0xff] %v975
  %982 = vst [vmem:[#allocation4 + $0x310] sm:$0xff] %v976
  %v983 = vld [vmem:[#allocation2] sm:$0xff]
  %v984 = vld [vmem:[#allocation2 + $0x8] sm:$0xff]
  %v985 = vld [vmem:[#allocation2 + $0x10] sm:$0xff]
  %v986 = vld [vmem:[#allocation2 + $0x18] sm:$0xff]
  %991 = vrot.lane.b32.xlu0 %v983, 27
  %v992 = vpop.permute.xlu0 %991
  %993 = vrot.lane.b32.xlu0 %v984, 27
  %v994 = vpop.permute.xlu0 %993
  %995 = vrot.lane.b32.xlu0 %v985, 27
  %v996 = vpop.permute.xlu0 %995
  %997 = vrot.lane.b32.xlu0 %v986, 27
  %v998 = vpop.permute.xlu0 %997
  %vm999 = vcmask 220160
  %v1000 = vsel %vm999, %v992, %v994
  %v1001 = vsel %vm999, %v994, %v996
  %v1002 = vsel %vm999, %v996, %v998
  %1006 = vst [vmem:[#allocation4 + $0x318] sm:$0xff] %v1000
  %1007 = vst [vmem:[#allocation4 + $0x320] sm:$0xff] %v1001
  %1008 = vst [vmem:[#allocation4 + $0x328] sm:$0xff] %v1002
  %v1009 = vld [vmem:[#allocation2] sm:$0xff]
  %v1010 = vld [vmem:[#allocation2 + $0x8] sm:$0xff]
  %v1011 = vld [vmem:[#allocation2 + $0x10] sm:$0xff]
  %v1012 = vld [vmem:[#allocation2 + $0x18] sm:$0xff]
  %1017 = vrot.lane.b32.xlu0 %v1009, 26
  %v1018 = vpop.permute.xlu0 %1017
  %1019 = vrot.lane.b32.xlu0 %v1010, 26
  %v1020 = vpop.permute.xlu0 %1019
  %1021 = vrot.lane.b32.xlu0 %v1011, 26
  %v1022 = vpop.permute.xlu0 %1021
  %1023 = vrot.lane.b32.xlu0 %v1012, 26
  %v1024 = vpop.permute.xlu0 %1023
  %vm1025 = vcmask 211968
  %v1026 = vsel %vm1025, %v1018, %v1020
  %v1027 = vsel %vm1025, %v1020, %v1022
  %v1028 = vsel %vm1025, %v1022, %v1024
  %1032 = vst [vmem:[#allocation4 + $0x330] sm:$0xff] %v1026
  %1033 = vst [vmem:[#allocation4 + $0x338] sm:$0xff] %v1027
  %1034 = vst [vmem:[#allocation4 + $0x340] sm:$0xff] %v1028
  %v1035 = vld [vmem:[#allocation2] sm:$0xff]
  %v1036 = vld [vmem:[#allocation2 + $0x8] sm:$0xff]
  %v1037 = vld [vmem:[#allocation2 + $0x10] sm:$0xff]
  %v1038 = vld [vmem:[#allocation2 + $0x18] sm:$0xff]
  %1043 = vrot.lane.b32.xlu0 %v1035, 8
  %v1044 = vpop.permute.xlu0 %1043
  %1045 = vrot.lane.b32.xlu0 %v1036, 8
  %v1046 = vpop.permute.xlu0 %1045
  %1047 = vrot.lane.b32.xlu0 %v1037, 8
  %v1048 = vpop.permute.xlu0 %1047
  %1049 = vrot.lane.b32.xlu0 %v1038, 8
  %v1050 = vpop.permute.xlu0 %1049
  %vm1051 = vcmask 64512
  %v1052 = vsel %vm1051, %v1044, %v1046
  %v1053 = vsel %vm1051, %v1046, %v1048
  %v1054 = vsel %vm1051, %v1048, %v1050
  %1058 = vst [vmem:[#allocation4 + $0x348] sm:$0xff] %v1052
  %1059 = vst [vmem:[#allocation4 + $0x350] sm:$0xff] %v1053
  %1060 = vst [vmem:[#allocation4 + $0x358] sm:$0xff] %v1054
  %v1061 = vld [vmem:[#allocation2] sm:$0xff]
  %v1062 = vld [vmem:[#allocation2 + $0x8] sm:$0xff]
  %v1063 = vld [vmem:[#allocation2 + $0x10] sm:$0xff]
  %v1064 = vld [vmem:[#allocation2 + $0x18] sm:$0xff]
  %1069 = vrot.lane.b32.xlu0 %v1061, 7
  %v1070 = vpop.permute.xlu0 %1069
  %1071 = vrot.lane.b32.xlu0 %v1062, 7
  %v1072 = vpop.permute.xlu0 %1071
  %1073 = vrot.lane.b32.xlu0 %v1063, 7
  %v1074 = vpop.permute.xlu0 %1073
  %1075 = vrot.lane.b32.xlu0 %v1064, 7
  %v1076 = vpop.permute.xlu0 %1075
  %vm1077 = vcmask 56320
  %v1078 = vsel %vm1077, %v1070, %v1072
  %v1079 = vsel %vm1077, %v1072, %v1074
  %v1080 = vsel %vm1077, %v1074, %v1076
  %1084 = vst [vmem:[#allocation4 + $0x360] sm:$0xff] %v1078
  %1085 = vst [vmem:[#allocation4 + $0x368] sm:$0xff] %v1079
  %1086 = vst [vmem:[#allocation4 + $0x370] sm:$0xff] %v1080
  %v1087 = vld [vmem:[#allocation2] sm:$0xff]
  %v1088 = vld [vmem:[#allocation2 + $0x8] sm:$0xff]
  %v1089 = vld [vmem:[#allocation2 + $0x10] sm:$0xff]
  %v1090 = vld [vmem:[#allocation2 + $0x18] sm:$0xff]
  %1095 = vrot.lane.b32.xlu0 %v1087, 6
  %v1096 = vpop.permute.xlu0 %1095
  %1097 = vrot.lane.b32.xlu0 %v1088, 6
  %v1098 = vpop.permute.xlu0 %1097
  %1099 = vrot.lane.b32.xlu0 %v1089, 6
  %v1100 = vpop.permute.xlu0 %1099
  %1101 = vrot.lane.b32.xlu0 %v1090, 6
  %v1102 = vpop.permute.xlu0 %1101
  %vm1103 = vcmask 48128
  %v1104 = vsel %vm1103, %v1096, %v1098
  %v1105 = vsel %vm1103, %v1098, %v1100
  %v1106 = vsel %vm1103, %v1100, %v1102
  %1110 = vst [vmem:[#allocation4 + $0x378] sm:$0xff] %v1104
  %1111 = vst [vmem:[#allocation4 + $0x380] sm:$0xff] %v1105
  %1112 = vst [vmem:[#allocation4 + $0x388] sm:$0xff] %v1106
  %v1113 = vld [vmem:[#allocation2] sm:$0xff]
  %v1114 = vld [vmem:[#allocation2 + $0x8] sm:$0xff]
  %v1115 = vld [vmem:[#allocation2 + $0x10] sm:$0xff]
  %v1116 = vld [vmem:[#allocation2 + $0x18] sm:$0xff]
  %1121 = vrot.lane.b32.xlu0 %v1113, 5
  %v1122 = vpop.permute.xlu0 %1121
  %1123 = vrot.lane.b32.xlu0 %v1114, 5
  %v1124 = vpop.permute.xlu0 %1123
  %1125 = vrot.lane.b32.xlu0 %v1115, 5
  %v1126 = vpop.permute.xlu0 %1125
  %1127 = vrot.lane.b32.xlu0 %v1116, 5
  %v1128 = vpop.permute.xlu0 %1127
  %vm1129 = vcmask 39936
  %v1130 = vsel %vm1129, %v1122, %v1124
  %v1131 = vsel %vm1129, %v1124, %v1126
  %v1132 = vsel %vm1129, %v1126, %v1128
  %1136 = vst [vmem:[#allocation4 + $0x390] sm:$0xff] %v1130
  %1137 = vst [vmem:[#allocation4 + $0x398] sm:$0xff] %v1131
  %1138 = vst [vmem:[#allocation4 + $0x3a0] sm:$0xff] %v1132
  %v1139 = vld [vmem:[#allocation2] sm:$0xff]
  %v1140 = vld [vmem:[#allocation2 + $0x8] sm:$0xff]
  %v1141 = vld [vmem:[#allocation2 + $0x10] sm:$0xff]
  %v1142 = vld [vmem:[#allocation2 + $0x18] sm:$0xff]
  %1147 = vrot.lane.b32.xlu0 %v1139, 4
  %v1148 = vpop.permute.xlu0 %1147
  %1149 = vrot.lane.b32.xlu0 %v1140, 4
  %v1150 = vpop.permute.xlu0 %1149
  %1151 = vrot.lane.b32.xlu0 %v1141, 4
  %v1152 = vpop.permute.xlu0 %1151
  %1153 = vrot.lane.b32.xlu0 %v1142, 4
  %v1154 = vpop.permute.xlu0 %1153
  %vm1155 = vcmask 31744
  %v1156 = vsel %vm1155, %v1148, %v1150
  %v1157 = vsel %vm1155, %v1150, %v1152
  %v1158 = vsel %vm1155, %v1152, %v1154
  %1162 = vst [vmem:[#allocation4 + $0x3a8] sm:$0xff] %v1156
  %1163 = vst [vmem:[#allocation4 + $0x3b0] sm:$0xff] %v1157
  %1164 = vst [vmem:[#allocation4 + $0x3b8] sm:$0xff] %v1158
  %v1165 = vld [vmem:[#allocation2] sm:$0xff]
  %v1166 = vld [vmem:[#allocation2 + $0x8] sm:$0xff]
  %v1167 = vld [vmem:[#allocation2 + $0x10] sm:$0xff]
  %v1168 = vld [vmem:[#allocation2 + $0x18] sm:$0xff]
  %1173 = vrot.lane.b32.xlu0 %v1165, 3
  %v1174 = vpop.permute.xlu0 %1173
  %1175 = vrot.lane.b32.xlu0 %v1166, 3
  %v1176 = vpop.permute.xlu0 %1175
  %1177 = vrot.lane.b32.xlu0 %v1167, 3
  %v1178 = vpop.permute.xlu0 %1177
  %1179 = vrot.lane.b32.xlu0 %v1168, 3
  %v1180 = vpop.permute.xlu0 %1179
  %v1181 = vsel %vm87, %v1174, %v1176
  %v1182 = vsel %vm87, %v1176, %v1178
  %v1183 = vsel %vm87, %v1178, %v1180
  %1187 = vst [vmem:[#allocation4 + $0x3c0] sm:$0xff] %v1181
  %1188 = vst [vmem:[#allocation4 + $0x3c8] sm:$0xff] %v1182
  %1189 = vst [vmem:[#allocation4 + $0x3d0] sm:$0xff] %v1183
  %v1190 = vld [vmem:[#allocation2] sm:$0xff]
  %v1191 = vld [vmem:[#allocation2 + $0x8] sm:$0xff]
  %v1192 = vld [vmem:[#allocation2 + $0x10] sm:$0xff]
  %v1193 = vld [vmem:[#allocation2 + $0x18] sm:$0xff]
  %1198 = vrot.lane.b32.xlu0 %v1190, 2
  %v1199 = vpop.permute.xlu0 %1198
  %1200 = vrot.lane.b32.xlu0 %v1191, 2
  %v1201 = vpop.permute.xlu0 %1200
  %1202 = vrot.lane.b32.xlu0 %v1192, 2
  %v1203 = vpop.permute.xlu0 %1202
  %1204 = vrot.lane.b32.xlu0 %v1193, 2
  %v1205 = vpop.permute.xlu0 %1204
  %vm1206 = vcmask 15360
  %v1207 = vsel %vm1206, %v1199, %v1201
  %v1208 = vsel %vm1206, %v1201, %v1203
  %v1209 = vsel %vm1206, %v1203, %v1205
  %1213 = vst [vmem:[#allocation4 + $0x3d8] sm:$0xff] %v1207
  %1214 = vst [vmem:[#allocation4 + $0x3e0] sm:$0xff] %v1208
  %1215 = vst [vmem:[#allocation4 + $0x3e8] sm:$0xff] %v1209
  %v1216 = vld [vmem:[#allocation2 + $0x8] sm:$0xff]
  %v1217 = vld [vmem:[#allocation2 + $0x10] sm:$0xff]
  %v1218 = vld [vmem:[#allocation2 + $0x18] sm:$0xff]
  %v1219 = vld [vmem:[#allocation2 + $0x20] sm:$0xff]
  %1224 = vrot.lane.b32.xlu0 %v1216, 112
  %v1225 = vpop.permute.xlu0 %1224
  %1226 = vrot.lane.b32.xlu0 %v1217, 112
  %v1227 = vpop.permute.xlu0 %1226
  %1228 = vrot.lane.b32.xlu0 %v1218, 112
  %v1229 = vpop.permute.xlu0 %1228
  %1230 = vrot.lane.b32.xlu0 %v1219, 112
  %v1231 = vpop.permute.xlu0 %1230
  %vm1232 = vcmask 916480
  %v1233 = vsel %vm1232, %v1225, %v1227
  %v1234 = vsel %vm1232, %v1227, %v1229
  %v1235 = vsel %vm1232, %v1229, %v1231
  %1239 = vst [vmem:[#allocation4 + $0x3f0] sm:$0xff] %v1233
  %1240 = vst [vmem:[#allocation4 + $0x3f8] sm:$0xff] %v1234
  %1241 = vst [vmem:[#allocation4 + $0x400] sm:$0xff] %v1235
  %v1242 = vld [vmem:[#allocation2 + $0x8] sm:$0xff]
  %v1243 = vld [vmem:[#allocation2 + $0x10] sm:$0xff]
  %v1244 = vld [vmem:[#allocation2 + $0x18] sm:$0xff]
  %v1245 = vld [vmem:[#allocation2 + $0x20] sm:$0xff]
  %1250 = vrot.lane.b32.xlu0 %v1242, 111
  %v1251 = vpop.permute.xlu0 %1250
  %1252 = vrot.lane.b32.xlu0 %v1243, 111
  %v1253 = vpop.permute.xlu0 %1252
  %1254 = vrot.lane.b32.xlu0 %v1244, 111
  %v1255 = vpop.permute.xlu0 %1254
  %1256 = vrot.lane.b32.xlu0 %v1245, 111
  %v1257 = vpop.permute.xlu0 %1256
  %vm1258 = vcmask 908288
  %v1259 = vsel %vm1258, %v1251, %v1253
  %v1260 = vsel %vm1258, %v1253, %v1255
  %v1261 = vsel %vm1258, %v1255, %v1257
  %1265 = vst [vmem:[#allocation4 + $0x408] sm:$0xff] %v1259
  %1266 = vst [vmem:[#allocation4 + $0x410] sm:$0xff] %v1260
  %1267 = vst [vmem:[#allocation4 + $0x418] sm:$0xff] %v1261
  %v1268 = vld [vmem:[#allocation2 + $0x8] sm:$0xff]
  %v1269 = vld [vmem:[#allocation2 + $0x10] sm:$0xff]
  %v1270 = vld [vmem:[#allocation2 + $0x18] sm:$0xff]
  %v1271 = vld [vmem:[#allocation2 + $0x20] sm:$0xff]
  %1276 = vrot.lane.b32.xlu0 %v1268, 110
  %v1277 = vpop.permute.xlu0 %1276
  %1278 = vrot.lane.b32.xlu0 %v1269, 110
  %v1279 = vpop.permute.xlu0 %1278
  %1280 = vrot.lane.b32.xlu0 %v1270, 110
  %v1281 = vpop.permute.xlu0 %1280
  %1282 = vrot.lane.b32.xlu0 %v1271, 110
  %v1283 = vpop.permute.xlu0 %1282
  %vm1284 = vcmask 900096
  %v1285 = vsel %vm1284, %v1277, %v1279
  %v1286 = vsel %vm1284, %v1279, %v1281
  %v1287 = vsel %vm1284, %v1281, %v1283
  %1291 = vst [vmem:[#allocation4 + $0x420] sm:$0xff] %v1285
  %1292 = vst [vmem:[#allocation4 + $0x428] sm:$0xff] %v1286
  %1293 = vst [vmem:[#allocation4 + $0x430] sm:$0xff] %v1287
  %v1294 = vld [vmem:[#allocation2 + $0x8] sm:$0xff]
  %v1295 = vld [vmem:[#allocation2 + $0x10] sm:$0xff]
  %v1296 = vld [vmem:[#allocation2 + $0x18] sm:$0xff]
  %v1297 = vld [vmem:[#allocation2 + $0x20] sm:$0xff]
  %1302 = vrot.lane.b32.xlu0 %v1294, 109
  %v1303 = vpop.permute.xlu0 %1302
  %1304 = vrot.lane.b32.xlu0 %v1295, 109
  %v1305 = vpop.permute.xlu0 %1304
  %1306 = vrot.lane.b32.xlu0 %v1296, 109
  %v1307 = vpop.permute.xlu0 %1306
  %1308 = vrot.lane.b32.xlu0 %v1297, 109
  %v1309 = vpop.permute.xlu0 %1308
  %vm1310 = vcmask 891904
  %v1311 = vsel %vm1310, %v1303, %v1305
  %v1312 = vsel %vm1310, %v1305, %v1307
  %v1313 = vsel %vm1310, %v1307, %v1309
  %1317 = vst [vmem:[#allocation4 + $0x438] sm:$0xff] %v1311
  %1318 = vst [vmem:[#allocation4 + $0x440] sm:$0xff] %v1312
  %1319 = vst [vmem:[#allocation4 + $0x448] sm:$0xff] %v1313
  %v1320 = vld [vmem:[#allocation2 + $0x8] sm:$0xff]
  %v1321 = vld [vmem:[#allocation2 + $0x10] sm:$0xff]
  %v1322 = vld [vmem:[#allocation2 + $0x18] sm:$0xff]
  %v1323 = vld [vmem:[#allocation2 + $0x20] sm:$0xff]
  %1328 = vrot.lane.b32.xlu0 %v1320, 108
  %v1329 = vpop.permute.xlu0 %1328
  %1330 = vrot.lane.b32.xlu0 %v1321, 108
  %v1331 = vpop.permute.xlu0 %1330
  %1332 = vrot.lane.b32.xlu0 %v1322, 108
  %v1333 = vpop.permute.xlu0 %1332
  %1334 = vrot.lane.b32.xlu0 %v1323, 108
  %v1335 = vpop.permute.xlu0 %1334
  %vm1336 = vcmask 883712
  %v1337 = vsel %vm1336, %v1329, %v1331
  %v1338 = vsel %vm1336, %v1331, %v1333
  %v1339 = vsel %vm1336, %v1333, %v1335
  %1343 = vst [vmem:[#allocation4 + $0x450] sm:$0xff] %v1337
  %1344 = vst [vmem:[#allocation4 + $0x458] sm:$0xff] %v1338
  %1345 = vst [vmem:[#allocation4 + $0x460] sm:$0xff] %v1339
  %v1346 = vld [vmem:[#allocation2 + $0x8] sm:$0xff]
  %v1347 = vld [vmem:[#allocation2 + $0x10] sm:$0xff]
  %v1348 = vld [vmem:[#allocation2 + $0x18] sm:$0xff]
  %v1349 = vld [vmem:[#allocation2 + $0x20] sm:$0xff]
  %1354 = vrot.lane.b32.xlu0 %v1346, 107
  %v1355 = vpop.permute.xlu0 %1354
  %1356 = vrot.lane.b32.xlu0 %v1347, 107
  %v1357 = vpop.permute.xlu0 %1356
  %1358 = vrot.lane.b32.xlu0 %v1348, 107
  %v1359 = vpop.permute.xlu0 %1358
  %1360 = vrot.lane.b32.xlu0 %v1349, 107
  %v1361 = vpop.permute.xlu0 %1360
  %vm1362 = vcmask 875520
  %v1363 = vsel %vm1362, %v1355, %v1357
  %v1364 = vsel %vm1362, %v1357, %v1359
  %v1365 = vsel %vm1362, %v1359, %v1361
  %1369 = vst [vmem:[#allocation4 + $0x468] sm:$0xff] %v1363
  %1370 = vst [vmem:[#allocation4 + $0x470] sm:$0xff] %v1364
  %1371 = vst [vmem:[#allocation4 + $0x478] sm:$0xff] %v1365
  %v1372 = vld [vmem:[#allocation2 + $0x8] sm:$0xff]
  %v1373 = vld [vmem:[#allocation2 + $0x10] sm:$0xff]
  %v1374 = vld [vmem:[#allocation2 + $0x18] sm:$0xff]
  %v1375 = vld [vmem:[#allocation2 + $0x20] sm:$0xff]
  %1380 = vrot.lane.b32.xlu0 %v1372, 106
  %v1381 = vpop.permute.xlu0 %1380
  %1382 = vrot.lane.b32.xlu0 %v1373, 106
  %v1383 = vpop.permute.xlu0 %1382
  %1384 = vrot.lane.b32.xlu0 %v1374, 106
  %v1385 = vpop.permute.xlu0 %1384
  %1386 = vrot.lane.b32.xlu0 %v1375, 106
  %v1387 = vpop.permute.xlu0 %1386
  %vm1388 = vcmask 867328
  %v1389 = vsel %vm1388, %v1381, %v1383
  %v1390 = vsel %vm1388, %v1383, %v1385
  %v1391 = vsel %vm1388, %v1385, %v1387
  %1395 = vst [vmem:[#allocation4 + $0x480] sm:$0xff] %v1389
  %1396 = vst [vmem:[#allocation4 + $0x488] sm:$0xff] %v1390
  %1397 = vst [vmem:[#allocation4 + $0x490] sm:$0xff] %v1391
  %v1398 = vld [vmem:[%s1] sm:$0xff]
  %v1399 = vld [vmem:[%s1 + $0x8] sm:$0xff]
  %v1400 = vld [vmem:[%s1 + $0x10] sm:$0xff]
  %v1401 = vld [vmem:[%s1 + $0x18] sm:$0xff]
  %v1402 = vld [vmem:[#allocation4] sm:$0xff]
  %v1403 = vld [vmem:[#allocation4 + $0x8] sm:$0xff]
  %v1404 = vld [vmem:[#allocation4 + $0x10] sm:$0xff]
  %v1405 = vld [vmem:[#allocation4 + $0x18] sm:$0xff]
  %v1406 = vld [vmem:[#allocation4 + $0x20] sm:$0xff]
  %v1407 = vld [vmem:[#allocation4 + $0x28] sm:$0xff]
  %v1408 = vld [vmem:[#allocation4 + $0x30] sm:$0xff]
  %v1409 = vld [vmem:[#allocation4 + $0x38] sm:$0xff]
  %v1410 = vld [vmem:[#allocation4 + $0x40] sm:$0xff]
  %v1411 = vld [vmem:[#allocation4 + $0x48] sm:$0xff]
  %v1412 = vld [vmem:[#allocation4 + $0x50] sm:$0xff]
  %v1413 = vld [vmem:[#allocation4 + $0x58] sm:$0xff]
  %v1414 = vld [vmem:[#allocation4 + $0x60] sm:$0xff]
  %v1415 = vld [vmem:[#allocation4 + $0x68] sm:$0xff]
  %v1416 = vld [vmem:[#allocation4 + $0x70] sm:$0xff]
  %v1417 = vld [vmem:[#allocation4 + $0x78] sm:$0xff]
  %v1418 = vld [vmem:[#allocation4 + $0x80] sm:$0xff]
  %v1419 = vld [vmem:[#allocation4 + $0x88] sm:$0xff]
  %v1420 = vld [vmem:[#allocation4 + $0x90] sm:$0xff]
  %v1421 = vld [vmem:[#allocation4 + $0x98] sm:$0xff]
  %v1422 = vld [vmem:[#allocation4 + $0xa0] sm:$0xff]
  %v1423 = vld [vmem:[#allocation4 + $0xa8] sm:$0xff]
  %v1424 = vld [vmem:[#allocation4 + $0xb0] sm:$0xff]
  %v1425 = vld [vmem:[#allocation4 + $0xb8] sm:$0xff]
  %v1426 = vld [vmem:[#allocation4 + $0xc0] sm:$0xff]
  %v1427 = vld [vmem:[#allocation4 + $0xc8] sm:$0xff]
  %v1428 = vld [vmem:[#allocation4 + $0xd0] sm:$0xff]
  %v1429 = vld [vmem:[#allocation4 + $0xd8] sm:$0xff]
  %v1430 = vld [vmem:[#allocation4 + $0xe0] sm:$0xff]
  %v1431 = vld [vmem:[#allocation4 + $0xe8] sm:$0xff]
  %v1432 = vld [vmem:[#allocation4 + $0xf0] sm:$0xff]
  %v1433 = vld [vmem:[#allocation4 + $0xf8] sm:$0xff]
  %v1434 = vld [vmem:[#allocation4 + $0x100] sm:$0xff]
  %v1435 = vld [vmem:[#allocation4 + $0x108] sm:$0xff]
  %v1436 = vld [vmem:[#allocation4 + $0x110] sm:$0xff]
  %v1437 = vld [vmem:[#allocation4 + $0x118] sm:$0xff]
  %v1438 = vld [vmem:[#allocation4 + $0x120] sm:$0xff]
  %v1439 = vld [vmem:[#allocation4 + $0x128] sm:$0xff]
  %v1440 = vld [vmem:[#allocation4 + $0x130] sm:$0xff]
  %v1441 = vld [vmem:[#allocation4 + $0x138] sm:$0xff]
  %v1442 = vld [vmem:[#allocation4 + $0x140] sm:$0xff]
  %v1443 = vld [vmem:[#allocation4 + $0x148] sm:$0xff]
  %v1444 = vld [vmem:[#allocation4 + $0x150] sm:$0xff]
  %v1445 = vld [vmem:[#allocation4 + $0x158] sm:$0xff]
  %v1446 = vld [vmem:[#allocation4 + $0x160] sm:$0xff]
  %v1447 = vld [vmem:[#allocation4 + $0x168] sm:$0xff]
  %v1448 = vld [vmem:[#allocation4 + $0x170] sm:$0xff]
  %v1449 = vld [vmem:[#allocation4 + $0x178] sm:$0xff]
  %v1450 = vld [vmem:[#allocation4 + $0x180] sm:$0xff]
  %v1451 = vld [vmem:[#allocation4 + $0x188] sm:$0xff]
  %v1452 = vld [vmem:[#allocation4 + $0x190] sm:$0xff]
  %v1453 = vld [vmem:[#allocation4 + $0x198] sm:$0xff]
  %v1454 = vld [vmem:[#allocation4 + $0x1a0] sm:$0xff]
  %v1455 = vld [vmem:[#allocation4 + $0x1a8] sm:$0xff]
  %v1456 = vld [vmem:[#allocation4 + $0x1b0] sm:$0xff]
  %v1457 = vld [vmem:[#allocation4 + $0x1b8] sm:$0xff]
  %v1458 = vld [vmem:[#allocation4 + $0x1c0] sm:$0xff]
  %v1459 = vld [vmem:[#allocation4 + $0x1c8] sm:$0xff]
  %v1460 = vld [vmem:[#allocation4 + $0x1d0] sm:$0xff]
  %v1461 = vld [vmem:[#allocation4 + $0x1d8] sm:$0xff]
  %v1462 = vld [vmem:[#allocation4 + $0x1e0] sm:$0xff]
  %v1463 = vld [vmem:[#allocation4 + $0x1e8] sm:$0xff]
  %v1464 = vld [vmem:[#allocation4 + $0x1f0] sm:$0xff]
  %v1465 = vld [vmem:[#allocation4 + $0x1f8] sm:$0xff]
  %v1466 = vld [vmem:[#allocation4 + $0x200] sm:$0xff]
  %v1467 = vld [vmem:[#allocation4 + $0x208] sm:$0xff]
  %v1468 = vld [vmem:[#allocation4 + $0x210] sm:$0xff]
  %v1469 = vld [vmem:[#allocation4 + $0x218] sm:$0xff]
  %v1470 = vld [vmem:[#allocation4 + $0x220] sm:$0xff]
  %v1471 = vld [vmem:[#allocation4 + $0x228] sm:$0xff]
  %v1472 = vld [vmem:[#allocation4 + $0x230] sm:$0xff]
  %v1473 = vld [vmem:[#allocation4 + $0x238] sm:$0xff]
  %v1474 = vld [vmem:[#allocation4 + $0x240] sm:$0xff]
  %v1475 = vld [vmem:[#allocation4 + $0x248] sm:$0xff]
  %v1476 = vld [vmem:[#allocation4 + $0x250] sm:$0xff]
  %v1477 = vld [vmem:[#allocation4 + $0x258] sm:$0xff]
  %v1478 = vld [vmem:[#allocation4 + $0x260] sm:$0xff]
  %v1479 = vld [vmem:[#allocation4 + $0x268] sm:$0xff]
  %v1480 = vld [vmem:[#allocation4 + $0x270] sm:$0xff]
  %v1481 = vld [vmem:[#allocation4 + $0x278] sm:$0xff]
  %v1482 = vld [vmem:[#allocation4 + $0x280] sm:$0xff]
  %v1483 = vld [vmem:[#allocation4 + $0x288] sm:$0xff]
  %v1484 = vld [vmem:[#allocation4 + $0x290] sm:$0xff]
  %v1485 = vld [vmem:[#allocation4 + $0x298] sm:$0xff]
  %v1486 = vld [vmem:[#allocation4 + $0x2a0] sm:$0xff]
  %v1487 = vld [vmem:[#allocation4 + $0x2a8] sm:$0xff]
  %v1488 = vld [vmem:[#allocation4 + $0x2b0] sm:$0xff]
  %v1489 = vld [vmem:[#allocation4 + $0x2b8] sm:$0xff]
  %v1490 = vld [vmem:[#allocation4 + $0x2c0] sm:$0xff]
  %v1491 = vld [vmem:[#allocation4 + $0x2c8] sm:$0xff]
  %v1492 = vld [vmem:[#allocation4 + $0x2d0] sm:$0xff]
  %v1493 = vld [vmem:[#allocation4 + $0x2d8] sm:$0xff]
  %v1494 = vld [vmem:[#allocation4 + $0x2e0] sm:$0xff]
  %v1495 = vld [vmem:[#allocation4 + $0x2e8] sm:$0xff]
  %v1496 = vld [vmem:[#allocation4 + $0x2f0] sm:$0xff]
  %v1497 = vld [vmem:[#allocation4 + $0x2f8] sm:$0xff]
  %v1498 = vld [vmem:[#allocation4 + $0x300] sm:$0xff]
  %v1499 = vld [vmem:[#allocation4 + $0x308] sm:$0xff]
  %v1500 = vld [vmem:[#allocation4 + $0x310] sm:$0xff]
  %v1501 = vld [vmem:[#allocation4 + $0x318] sm:$0xff]
  %v1502 = vld [vmem:[#allocation4 + $0x320] sm:$0xff]
  %v1503 = vld [vmem:[#allocation4 + $0x328] sm:$0xff]
  %v1504 = vld [vmem:[#allocation4 + $0x330] sm:$0xff]
  %v1505 = vld [vmem:[#allocation4 + $0x338] sm:$0xff]
  %v1506 = vld [vmem:[#allocation4 + $0x340] sm:$0xff]
  %v1507 = vld [vmem:[#allocation4 + $0x348] sm:$0xff]
  %v1508 = vld [vmem:[#allocation4 + $0x350] sm:$0xff]
  %v1509 = vld [vmem:[#allocation4 + $0x358] sm:$0xff]
  %v1510 = vld [vmem:[#allocation4 + $0x360] sm:$0xff]
  %v1511 = vld [vmem:[#allocation4 + $0x368] sm:$0xff]
  %v1512 = vld [vmem:[#allocation4 + $0x370] sm:$0xff]
  %v1513 = vld [vmem:[#allocation4 + $0x378] sm:$0xff]
  %v1514 = vld [vmem:[#allocation4 + $0x380] sm:$0xff]
  %v1515 = vld [vmem:[#allocation4 + $0x388] sm:$0xff]
  %v1516 = vld [vmem:[#allocation4 + $0x390] sm:$0xff]
  %v1517 = vld [vmem:[#allocation4 + $0x398] sm:$0xff]
  %v1518 = vld [vmem:[#allocation4 + $0x3a0] sm:$0xff]
  %v1519 = vld [vmem:[#allocation4 + $0x3a8] sm:$0xff]
  %v1520 = vld [vmem:[#allocation4 + $0x3b0] sm:$0xff]
  %v1521 = vld [vmem:[#allocation4 + $0x3b8] sm:$0xff]
  %v1522 = vld [vmem:[#allocation4 + $0x3c0] sm:$0xff]
  %v1523 = vld [vmem:[#allocation4 + $0x3c8] sm:$0xff]
  %v1524 = vld [vmem:[#allocation4 + $0x3d0] sm:$0xff]
  %v1525 = vld [vmem:[#allocation4 + $0x3d8] sm:$0xff]
  %v1526 = vld [vmem:[#allocation4 + $0x3e0] sm:$0xff]
  %v1527 = vld [vmem:[#allocation4 + $0x3e8] sm:$0xff]
  %v1528 = vld [vmem:[#allocation4 + $0x3f0] sm:$0xff]
  %v1529 = vld [vmem:[#allocation4 + $0x3f8] sm:$0xff]
  %v1530 = vld [vmem:[#allocation4 + $0x400] sm:$0xff]
  %v1531 = vld [vmem:[#allocation4 + $0x408] sm:$0xff]
  %v1532 = vld [vmem:[#allocation4 + $0x410] sm:$0xff]
  %v1533 = vld [vmem:[#allocation4 + $0x418] sm:$0xff]
  %v1534 = vld [vmem:[#allocation4 + $0x420] sm:$0xff]
  %v1535 = vld [vmem:[#allocation4 + $0x428] sm:$0xff]
  %v1536 = vld [vmem:[#allocation4 + $0x430] sm:$0xff]
  %v1537 = vld [vmem:[#allocation4 + $0x438] sm:$0xff]
  %v1538 = vld [vmem:[#allocation4 + $0x440] sm:$0xff]
  %v1539 = vld [vmem:[#allocation4 + $0x448] sm:$0xff]
  %v1540 = vld [vmem:[#allocation4 + $0x450] sm:$0xff]
  %v1541 = vld [vmem:[#allocation4 + $0x458] sm:$0xff]
  %v1542 = vld [vmem:[#allocation4 + $0x460] sm:$0xff]
  %v1543 = vld [vmem:[#allocation4 + $0x468] sm:$0xff]
  %v1544 = vld [vmem:[#allocation4 + $0x470] sm:$0xff]
  %v1545 = vld [vmem:[#allocation4 + $0x478] sm:$0xff]
  %v1546 = vld [vmem:[#allocation4 + $0x480] sm:$0xff]
  %v1547 = vld [vmem:[#allocation4 + $0x488] sm:$0xff]
  %v1548 = vld [vmem:[#allocation4 + $0x490] sm:$0xff]
  %v1549 = vld [vmem:[%s3] sm:$0xff]
  %1551 = vset.pattern.permute.xlu0 0
  %1552 = vperm.xlu0 %1551, %v1549
  %v1553 = vpop.permute.xlu0 %1552
  %v1556 = vsel %vm1051, %v1401, 0
  %1558 = vmatprep.subr.mxu0 %v1448
  %1559 = vmatpush1.msra.mxu0 %v1447
  %1560 = vmatprep.subr.mxu0 %v1445
  %1561 = vmatpush1.msra.mxu0 %v1444
  %1562 = vmatprep.subr.mxu0 %v1442
  %1563 = vmatpush1.msra.mxu0 %v1441
  %1564 = vmatprep.subr.mxu0 %v1439
  %1565 = vmatpush1.msra.mxu0 %v1438
  %1566 = vmatprep.subr.mxu0 %v1436
  %1567 = vmatpush1.msra.mxu0 %v1435
  %1568 = vmatprep.subr.mxu0 %v1433
  %1569 = vmatpush1.msra.mxu0 %v1432
  %1570 = vmatprep.subr.mxu0 %v1430
  %1571 = vmatpush1.msra.mxu0 %v1429
  %1572 = vmatprep.subr.mxu0 %v1427
  %1573 = vmatpush1.msra.mxu0 %v1426
  %1574 = vmatprep.subr.mxu0 %v1424
  %1575 = vmatpush1.msra.mxu0 %v1423
  %1576 = vmatprep.subr.mxu0 %v1421
  %1577 = vmatpush1.msra.mxu0 %v1420
  %1578 = vmatprep.subr.mxu0 %v1418
  %1579 = vmatpush1.msra.mxu0 %v1417
  %1580 = vmatprep.subr.mxu0 %v1415
  %1581 = vmatpush1.msra.mxu0 %v1414
  %1582 = vmatprep.subr.mxu0 %v1412
  %1583 = vmatpush1.msra.mxu0 %v1411
  %1584 = vmatprep.subr.mxu0 %v1409
  %1585 = vmatpush1.msra.mxu0 %v1408
  %1586 = vmatprep.subr.mxu0 %v1406
  %1587 = vmatpush1.msra.mxu0 %v1405
  %1588 = vmatprep.subr.mxu0 %v1403
  %1589 = vmatpush1.msra.mxu0 %v1402
  %1590 = vmatprep.subr.mxu0 %v1496
  %1591 = vmatpush2.msra.mxu0 %v1495
  %1592 = vmatprep.subr.mxu0 %v1493
  %1593 = vmatpush2.msra.mxu0 %v1492
  %1594 = vmatprep.subr.mxu0 %v1490
  %1595 = vmatpush2.msra.mxu0 %v1489
  %1596 = vmatprep.subr.mxu0 %v1487
  %1597 = vmatpush2.msra.mxu0 %v1486
  %1598 = vmatprep.subr.mxu0 %v1484
  %1599 = vmatpush2.msra.mxu0 %v1483
  %1600 = vmatprep.subr.mxu0 %v1481
  %1601 = vmatpush2.msra.mxu0 %v1480
  %1602 = vmatprep.subr.mxu0 %v1478
  %1603 = vmatpush2.msra.mxu0 %v1477
  %1604 = vmatprep.subr.mxu0 %v1475
  %1605 = vmatpush2.msra.mxu0 %v1474
  %1606 = vmatprep.subr.mxu0 %v1472
  %1607 = vmatpush2.msra.mxu0 %v1471
  %1608 = vmatprep.subr.mxu0 %v1469
  %1609 = vmatpush2.msra.mxu0 %v1468
  %1610 = vmatprep.subr.mxu0 %v1466
  %1611 = vmatpush2.msra.mxu0 %v1465
  %1612 = vmatprep.subr.mxu0 %v1463
  %1613 = vmatpush2.msra.mxu0 %v1462
  %1614 = vmatprep.subr.mxu0 %v1460
  %1615 = vmatpush2.msra.mxu0 %v1459
  %1616 = vmatprep.subr.mxu0 %v1457
  %1617 = vmatpush2.msra.mxu0 %v1456
  %1618 = vmatprep.subr.mxu0 %v1454
  %1619 = vmatpush2.msra.mxu0 %v1453
  %1620 = vmatprep.subr.mxu0 %v1451
  %1621 = vmatpush2.msra.mxu0 %v1450
  %1622 = vmatprep.mubr.f32.mxu0 %v1399
  %1623 = vmatmul.mubr.f32.gmra.mxu0 %v1398
  %v1624 = vpop.f32.mrf.mxu0
  %v1625 = vadd.f32 %v1553, %v1624
  %v1626 = vpop.f32.mrf.mxu0
  %v1627 = vadd.f32 %v1553, %v1626
  %1628 = vdwg.mxu0
  %1629 = vmatprep.subr.mxu0 %v1544
  %1630 = vmatpush1.msra.mxu0 %v1543
  %1631 = vmatprep.subr.mxu0 %v1541
  %1632 = vmatpush1.msra.mxu0 %v1540
  %1633 = vmatprep.subr.mxu0 %v1538
  %1634 = vmatpush1.msra.mxu0 %v1537
  %1635 = vmatprep.subr.mxu0 %v1535
  %1636 = vmatpush1.msra.mxu0 %v1534
  %1637 = vmatprep.subr.mxu0 %v1532
  %1638 = vmatpush1.msra.mxu0 %v1531
  %1639 = vmatprep.subr.mxu0 %v1529
  %1640 = vmatpush1.msra.mxu0 %v1528
  %1641 = vmatprep.subr.mxu0 %v1526
  %1642 = vmatpush1.msra.mxu0 %v1525
  %1643 = vmatprep.subr.mxu0 %v1523
  %1644 = vmatpush1.msra.mxu0 %v1522
  %1645 = vmatprep.subr.mxu0 %v1520
  %1646 = vmatpush1.msra.mxu0 %v1519
  %1647 = vmatprep.subr.mxu0 %v1517
  %1648 = vmatpush1.msra.mxu0 %v1516
  %1649 = vmatprep.subr.mxu0 %v1514
  %1650 = vmatpush1.msra.mxu0 %v1513
  %1651 = vmatprep.subr.mxu0 %v1511
  %1652 = vmatpush1.msra.mxu0 %v1510
  %1653 = vmatprep.subr.mxu0 %v1508
  %1654 = vmatpush1.msra.mxu0 %v1507
  %1655 = vmatprep.subr.mxu0 %v1505
  %1656 = vmatpush1.msra.mxu0 %v1504
  %1657 = vmatprep.subr.mxu0 %v1502
  %1658 = vmatpush1.msra.mxu0 %v1501
  %1659 = vmatprep.subr.mxu0 %v1499
  %1660 = vmatpush1.msra.mxu0 %v1498
  %1661 = vmatprep.subr.mxu0 0.0
  %1662 = vmatpush2.msra.mxu0 0.0
  %1663 = vmatprep.subr.mxu0 0.0
  %1664 = vmatpush2.msra.mxu0 0.0
  %1665 = vmatprep.subr.mxu0 0.0
  %1666 = vmatpush2.msra.mxu0 0.0
  %1667 = vmatprep.subr.mxu0 0.0
  %1668 = vmatpush2.msra.mxu0 0.0
  %1669 = vmatprep.subr.mxu0 0.0
  %1670 = vmatpush2.msra.mxu0 0.0
  %1671 = vmatprep.subr.mxu0 0.0
  %1672 = vmatpush2.msra.mxu0 0.0
  %1673 = vmatprep.subr.mxu0 0.0
  %1674 = vmatpush2.msra.mxu0 0.0
  %1675 = vmatprep.subr.mxu0 0.0
  %1676 = vmatpush2.msra.mxu0 0.0
  %1677 = vmatprep.subr.mxu0 0.0
  %1678 = vmatpush2.msra.mxu0 0.0
  %1679 = vmatprep.subr.mxu0 0.0
  %1680 = vmatpush2.msra.mxu0 0.0
  %1681 = vmatprep.subr.mxu0 0.0
  %1682 = vmatpush2.msra.mxu0 0.0
  %1683 = vmatprep.subr.mxu0 0.0
  %1684 = vmatpush2.msra.mxu0 0.0
  %1685 = vmatprep.subr.mxu0 0.0
  %1686 = vmatpush2.msra.mxu0 0.0
  %1687 = vmatprep.subr.mxu0 0.0
  %1688 = vmatpush2.msra.mxu0 0.0
  %1689 = vmatprep.subr.mxu0 0.0
  %1690 = vmatpush2.msra.mxu0 0.0
  %1691 = vmatprep.subr.mxu0 %v1547
  %1692 = vmatpush2.msra.mxu0 %v1546
  %1693 = vmatprep.mubr.f32.mxu0 %v1556
  %1694 = vmatmul.mubr.f32.gmra.mxu0 %v1400
  %v1695 = vpop.f32.mrf.mxu0
  %v1696 = vadd.f32 %v1625, %v1695
  %v1697 = vpop.f32.mrf.mxu0
  %v1698 = vadd.f32 %v1627, %v1697
  %1699 = vdwg.mxu0
  %1700 = vmatprep.subr.mxu0 0.0
  %1701 = vmatpush1.msra.mxu0 %v1449
  %1702 = vmatprep.subr.mxu0 0.0
  %1703 = vmatpush1.msra.mxu0 %v1446
  %1704 = vmatprep.subr.mxu0 0.0
  %1705 = vmatpush1.msra.mxu0 %v1443
  %1706 = vmatprep.subr.mxu0 0.0
  %1707 = vmatpush1.msra.mxu0 %v1440
  %1708 = vmatprep.subr.mxu0 0.0
  %1709 = vmatpush1.msra.mxu0 %v1437
  %1710 = vmatprep.subr.mxu0 0.0
  %1711 = vmatpush1.msra.mxu0 %v1434
  %1712 = vmatprep.subr.mxu0 0.0
  %1713 = vmatpush1.msra.mxu0 %v1431
  %1714 = vmatprep.subr.mxu0 0.0
  %1715 = vmatpush1.msra.mxu0 %v1428
  %1716 = vmatprep.subr.mxu0 0.0
  %1717 = vmatpush1.msra.mxu0 %v1425
  %1718 = vmatprep.subr.mxu0 0.0
  %1719 = vmatpush1.msra.mxu0 %v1422
  %1720 = vmatprep.subr.mxu0 0.0
  %1721 = vmatpush1.msra.mxu0 %v1419
  %1722 = vmatprep.subr.mxu0 0.0
  %1723 = vmatpush1.msra.mxu0 %v1416
  %1724 = vmatprep.subr.mxu0 0.0
  %1725 = vmatpush1.msra.mxu0 %v1413
  %1726 = vmatprep.subr.mxu0 0.0
  %1727 = vmatpush1.msra.mxu0 %v1410
  %1728 = vmatprep.subr.mxu0 0.0
  %1729 = vmatpush1.msra.mxu0 %v1407
  %1730 = vmatprep.subr.mxu0 0.0
  %1731 = vmatpush1.msra.mxu0 %v1404
  %1732 = vmatprep.subr.mxu0 0.0
  %1733 = vmatpush2.msra.mxu0 %v1497
  %1734 = vmatprep.subr.mxu0 0.0
  %1735 = vmatpush2.msra.mxu0 %v1494
  %1736 = vmatprep.subr.mxu0 0.0
  %1737 = vmatpush2.msra.mxu0 %v1491
  %1738 = vmatprep.subr.mxu0 0.0
  %1739 = vmatpush2.msra.mxu0 %v1488
  %1740 = vmatprep.subr.mxu0 0.0
  %1741 = vmatpush2.msra.mxu0 %v1485
  %1742 = vmatprep.subr.mxu0 0.0
  %1743 = vmatpush2.msra.mxu0 %v1482
  %1744 = vmatprep.subr.mxu0 0.0
  %1745 = vmatpush2.msra.mxu0 %v1479
  %1746 = vmatprep.subr.mxu0 0.0
  %1747 = vmatpush2.msra.mxu0 %v1476
  %1748 = vmatprep.subr.mxu0 0.0
  %1749 = vmatpush2.msra.mxu0 %v1473
  %1750 = vmatprep.subr.mxu0 0.0
  %1751 = vmatpush2.msra.mxu0 %v1470
  %1752 = vmatprep.subr.mxu0 0.0
  %1753 = vmatpush2.msra.mxu0 %v1467
  %1754 = vmatprep.subr.mxu0 0.0
  %1755 = vmatpush2.msra.mxu0 %v1464
  %1756 = vmatprep.subr.mxu0 0.0
  %1757 = vmatpush2.msra.mxu0 %v1461
  %1758 = vmatprep.subr.mxu0 0.0
  %1759 = vmatpush2.msra.mxu0 %v1458
  %1760 = vmatprep.subr.mxu0 0.0
  %1761 = vmatpush2.msra.mxu0 %v1455
  %1762 = vmatprep.subr.mxu0 0.0
  %1763 = vmatpush2.msra.mxu0 %v1452
  %1764 = vmatprep.mubr.f32.mxu0 %v1399
  %1765 = vmatmul.mubr.f32.gmra.mxu0 %v1398
  %v1766 = vpop.f32.mrf.mxu0
  %v1767 = vadd.f32 %v1553, %v1766
  %v1768 = vpop.f32.mrf.mxu0
  %1769 = vdwg.mxu0
  %1770 = vmatprep.subr.mxu0 0.0
  %1771 = vmatpush1.msra.mxu0 %v1545
  %1772 = vmatprep.subr.mxu0 0.0
  %1773 = vmatpush1.msra.mxu0 %v1542
  %1774 = vmatprep.subr.mxu0 0.0
  %1775 = vmatpush1.msra.mxu0 %v1539
  %1776 = vmatprep.subr.mxu0 0.0
  %1777 = vmatpush1.msra.mxu0 %v1536
  %1778 = vmatprep.subr.mxu0 0.0
  %1779 = vmatpush1.msra.mxu0 %v1533
  %1780 = vmatprep.subr.mxu0 0.0
  %1781 = vmatpush1.msra.mxu0 %v1530
  %1782 = vmatprep.subr.mxu0 0.0
  %1783 = vmatpush1.msra.mxu0 %v1527
  %1784 = vmatprep.subr.mxu0 0.0
  %1785 = vmatpush1.msra.mxu0 %v1524
  %1786 = vmatprep.subr.mxu0 0.0
  %1787 = vmatpush1.msra.mxu0 %v1521
  %1788 = vmatprep.subr.mxu0 0.0
  %1789 = vmatpush1.msra.mxu0 %v1518
  %1790 = vmatprep.subr.mxu0 0.0
  %1791 = vmatpush1.msra.mxu0 %v1515
  %1792 = vmatprep.subr.mxu0 0.0
  %1793 = vmatpush1.msra.mxu0 %v1512
  %1794 = vmatprep.subr.mxu0 0.0
  %1795 = vmatpush1.msra.mxu0 %v1509
  %1796 = vmatprep.subr.mxu0 0.0
  %1797 = vmatpush1.msra.mxu0 %v1506
  %1798 = vmatprep.subr.mxu0 0.0
  %1799 = vmatpush1.msra.mxu0 %v1503
  %1800 = vmatprep.subr.mxu0 0.0
  %1801 = vmatpush1.msra.mxu0 %v1500
  %1802 = vmatprep.subr.mxu0 0.0
  %1803 = vmatpush2.msra.mxu0 0.0
  %1804 = vmatprep.subr.mxu0 0.0
  %1805 = vmatpush2.msra.mxu0 0.0
  %1806 = vmatprep.subr.mxu0 0.0
  %1807 = vmatpush2.msra.mxu0 0.0
  %1808 = vmatprep.subr.mxu0 0.0
  %1809 = vmatpush2.msra.mxu0 0.0
  %1810 = vmatprep.subr.mxu0 0.0
  %1811 = vmatpush2.msra.mxu0 0.0
  %1812 = vmatprep.subr.mxu0 0.0
  %1813 = vmatpush2.msra.mxu0 0.0
  %1814 = vmatprep.subr.mxu0 0.0
  %1815 = vmatpush2.msra.mxu0 0.0
  %1816 = vmatprep.subr.mxu0 0.0
  %1817 = vmatpush2.msra.mxu0 0.0
  %1818 = vmatprep.subr.mxu0 0.0
  %1819 = vmatpush2.msra.mxu0 0.0
  %1820 = vmatprep.subr.mxu0 0.0
  %1821 = vmatpush2.msra.mxu0 0.0
  %1822 = vmatprep.subr.mxu0 0.0
  %1823 = vmatpush2.msra.mxu0 0.0
  %1824 = vmatprep.subr.mxu0 0.0
  %1825 = vmatpush2.msra.mxu0 0.0
  %1826 = vmatprep.subr.mxu0 0.0
  %1827 = vmatpush2.msra.mxu0 0.0
  %1828 = vmatprep.subr.mxu0 0.0
  %1829 = vmatpush2.msra.mxu0 0.0
  %1830 = vmatprep.subr.mxu0 0.0
  %1831 = vmatpush2.msra.mxu0 0.0
  %1832 = vmatprep.subr.mxu0 0.0
  %1833 = vmatpush2.msra.mxu0 %v1548
  %1834 = vmatprep.mubr.f32.mxu0 %v1556
  %1835 = vmatmul.mubr.f32.gmra.mxu0 %v1400
  %v1836 = vpop.f32.mrf.mxu0
  %v1837 = vadd.f32 %v1767, %v1836
  %v1838 = vpop.f32.mrf.mxu0
  %1839 = vdwg.mxu0
  %v1841 = vlaneseq
  %v1842 = vshrl.u32 %v1841, 7
  %v1843 = vsub.s32 0, %v1842
  %v1844 = vrot.slane %v23, %v1843
  %v1845 = vlaneseq
  %v1846 = vshrl.u32 %v1845, 7
  %v1847 = vsub.s32 1, %v1846
  %v1848 = vrot.slane %v23, %v1847
  %v1849 = vlaneseq
  %v1850 = vshrl.u32 %v1849, 7
  %v1851 = vsub.s32 2, %v1850
  %v1852 = vrot.slane %v23, %v1851
  %v1856 = vmul.f32 %v1696, %v1844
  %v1857 = vmul.f32 %v1698, %v1848
  %v1858 = vmul.f32 %v1837, %v1852
  %v1859 = vadd.f32 %v1856, %v1857
  %v1860 = vadd.f32 %v1859, %v1858
  %1861 = vadd.xlane.f32.xlu0 %v1860
  %v1862 = vpop.xlane.xlu0 %1861
  %v1863 = vrot.slane %v1862, 4
  %v1864 = vadd.f32 %v1862, %v1863
  %v1865 = vmul.f32 %v1864, 0.001953125
  %1867 = vset.pattern.permute.xlu0 0
  %1868 = vperm.xlu0 %1867, %v1865
  %v1869 = vpop.permute.xlu0 %1868
  %v1871 = vsub.f32 %v1696, %v1869
  %v1872 = vsub.f32 %v1698, %v1869
  %v1873 = vsub.f32 %v1837, %v1869
  %v1874 = vmul.f32 %v1871, %v1844
  %v1875 = vmul.f32 %v1872, %v1848
  %v1876 = vmul.f32 %v1873, %v1852
  %v1877 = vmul.f32 %v1874, %v1874
  %v1878 = vmul.f32 %v1875, %v1875
  %v1879 = vmul.f32 %v1876, %v1876
  %v1880 = vadd.f32 %v1877, %v1878
  %v1881 = vadd.f32 %v1880, %v1879
  %1882 = vadd.xlane.f32.xlu0 %v1881
  %v1883 = vpop.xlane.xlu0 %1882
  %v1884 = vrot.slane %v1883, 4
  %v1885 = vadd.f32 %v1883, %v1884
  %v1886 = vmul.f32 %v1885, 0.001953125
  %v1887 = vadd.f32 %v1886, 1e-05
  %v1888 = vrsqrt.pop %v1887
  %1890 = vset.pattern.permute.xlu0 0
  %1891 = vperm.xlu0 %1890, %v1888
  %v1892 = vpop.permute.xlu0 %1891
  %v1894 = vmul.f32 %v1871, %v1892
  %v1895 = vmul.f32 %v1872, %v1892
  %v1896 = vmul.f32 %v1873, %v1892
  %v1897 = vmax.f32 %v1894, 0.0
  %v1898 = vmax.f32 %v1895, 0.0
  %v1899 = vmax.f32 %v1896, 0.0
  %v1900 = vmul.f32 %v1897, %v1844
  %v1901 = vmul.f32 %v1898, %v1848
  %v1902 = vmul.f32 %v1899, %v1852
  %1903 = vst [vmem:[#allocation3] sm:$0xff] 0.0
  %1904 = vst [vmem:[#allocation3 + $0x8] sm:$0xff] 0.0
  %1905 = vst [vmem:[#allocation3 + $0x10] sm:$0xff] 0.0
  %1906 = vst [vmem:[#allocation3 + $0x18] sm:$0xff] 0.0
  %1907 = vst [vmem:[#allocation3 + $0x20] sm:$0xff] 0.0
  %1911 = vrot.lane.b32.xlu0 %v1900, 75
  %v1912 = vpop.permute.xlu0 %1911
  %1913 = vrot.lane.b32.xlu0 %v1901, 75
  %v1914 = vpop.permute.xlu0 %1913
  %1915 = vrot.lane.b32.xlu0 %v1902, 75
  %v1916 = vpop.permute.xlu0 %1915
  %v1917 = vsel %vm635, %v1912, %v1914
  %v1918 = vsel %vm635, %v1914, %v1916
  %vm1923 = vcmask 1048152
  %1924 = vst.msk [vmem:[#allocation3] sm:$0xff] %vm1923, %v1912
  %1925 = vst [vmem:[#allocation3 + $0x8] sm:$0xff] %v1917
  %1926 = vst [vmem:[#allocation3 + $0x10] sm:$0xff] %v1918
  %1927 = vst.msk [vmem:[#allocation3 + $0x18] sm:$0xff] %vm635, %v1916
  %v1928 = vld [vmem:[#allocation3] sm:$0xff]
  %v1929 = vld [vmem:[#allocation3 + $0x8] sm:$0xff]
  %v1930 = vld [vmem:[#allocation3 + $0x10] sm:$0xff]
  %1931 = vst [vmem:[#allocation4] sm:$0xff] %v1928
  %1932 = vst [vmem:[#allocation4 + $0x8] sm:$0xff] %v1929
  %1933 = vst [vmem:[#allocation4 + $0x10] sm:$0xff] %v1930
  %v1934 = vld [vmem:[#allocation3] sm:$0xff]
  %v1935 = vld [vmem:[#allocation3 + $0x8] sm:$0xff]
  %v1936 = vld [vmem:[#allocation3 + $0x10] sm:$0xff]
  %v1937 = vld [vmem:[#allocation3 + $0x18] sm:$0xff]
  %1942 = vrot.lane.b32.xlu0 %v1934, 127
  %v1943 = vpop.permute.xlu0 %1942
  %1944 = vrot.lane.b32.xlu0 %v1935, 127
  %v1945 = vpop.permute.xlu0 %1944
  %1946 = vrot.lane.b32.xlu0 %v1936, 127
  %v1947 = vpop.permute.xlu0 %1946
  %1948 = vrot.lane.b32.xlu0 %v1937, 127
  %v1949 = vpop.permute.xlu0 %1948
  %v1950 = vsel %vm167, %v1943, %v1945
  %v1951 = vsel %vm167, %v1945, %v1947
  %v1952 = vsel %vm167, %v1947, %v1949
  %1956 = vst [vmem:[#allocation4 + $0x18] sm:$0xff] %v1950
  %1957 = vst [vmem:[#allocation4 + $0x20] sm:$0xff] %v1951
  %1958 = vst [vmem:[#allocation4 + $0x28] sm:$0xff] %v1952
  %v1959 = vld [vmem:[#allocation3] sm:$0xff]
  %v1960 = vld [vmem:[#allocation3 + $0x8] sm:$0xff]
  %v1961 = vld [vmem:[#allocation3 + $0x10] sm:$0xff]
  %v1962 = vld [vmem:[#allocation3 + $0x18] sm:$0xff]
  %1967 = vrot.lane.b32.xlu0 %v1959, 126
  %v1968 = vpop.permute.xlu0 %1967
  %1969 = vrot.lane.b32.xlu0 %v1960, 126
  %v1970 = vpop.permute.xlu0 %1969
  %1971 = vrot.lane.b32.xlu0 %v1961, 126
  %v1972 = vpop.permute.xlu0 %1971
  %1973 = vrot.lane.b32.xlu0 %v1962, 126
  %v1974 = vpop.permute.xlu0 %1973
  %v1975 = vsel %vm193, %v1968, %v1970
  %v1976 = vsel %vm193, %v1970, %v1972
  %v1977 = vsel %vm193, %v1972, %v1974
  %1981 = vst [vmem:[#allocation4 + $0x30] sm:$0xff] %v1975
  %1982 = vst [vmem:[#allocation4 + $0x38] sm:$0xff] %v1976
  %1983 = vst [vmem:[#allocation4 + $0x40] sm:$0xff] %v1977
  %v1984 = vld [vmem:[#allocation3] sm:$0xff]
  %v1985 = vld [vmem:[#allocation3 + $0x8] sm:$0xff]
  %v1986 = vld [vmem:[#allocation3 + $0x10] sm:$0xff]
  %v1987 = vld [vmem:[#allocation3 + $0x18] sm:$0xff]
  %1992 = vrot.lane.b32.xlu0 %v1984, 125
  %v1993 = vpop.permute.xlu0 %1992
  %1994 = vrot.lane.b32.xlu0 %v1985, 125
  %v1995 = vpop.permute.xlu0 %1994
  %1996 = vrot.lane.b32.xlu0 %v1986, 125
  %v1997 = vpop.permute.xlu0 %1996
  %1998 = vrot.lane.b32.xlu0 %v1987, 125
  %v1999 = vpop.permute.xlu0 %1998
  %v2000 = vsel %vm219, %v1993, %v1995
  %v2001 = vsel %vm219, %v1995, %v1997
  %v2002 = vsel %vm219, %v1997, %v1999
  %2006 = vst [vmem:[#allocation4 + $0x48] sm:$0xff] %v2000
  %2007 = vst [vmem:[#allocation4 + $0x50] sm:$0xff] %v2001
  %2008 = vst [vmem:[#allocation4 + $0x58] sm:$0xff] %v2002
  %v2009 = vld [vmem:[#allocation3] sm:$0xff]
  %v2010 = vld [vmem:[#allocation3 + $0x8] sm:$0xff]
  %v2011 = vld [vmem:[#allocation3 + $0x10] sm:$0xff]
  %v2012 = vld [vmem:[#allocation3 + $0x18] sm:$0xff]
  %2017 = vrot.lane.b32.xlu0 %v2009, 124
  %v2018 = vpop.permute.xlu0 %2017
  %2019 = vrot.lane.b32.xlu0 %v2010, 124
  %v2020 = vpop.permute.xlu0 %2019
  %2021 = vrot.lane.b32.xlu0 %v2011, 124
  %v2022 = vpop.permute.xlu0 %2021
  %2023 = vrot.lane.b32.xlu0 %v2012, 124
  %v2024 = vpop.permute.xlu0 %2023
  %v2025 = vsel %vm245, %v2018, %v2020
  %v2026 = vsel %vm245, %v2020, %v2022
  %v2027 = vsel %vm245, %v2022, %v2024
  %2031 = vst [vmem:[#allocation4 + $0x60] sm:$0xff] %v2025
  %2032 = vst [vmem:[#allocation4 + $0x68] sm:$0xff] %v2026
  %2033 = vst [vmem:[#allocation4 + $0x70] sm:$0xff] %v2027
  %v2034 = vld [vmem:[#allocation3] sm:$0xff]
  %v2035 = vld [vmem:[#allocation3 + $0x8] sm:$0xff]
  %v2036 = vld [vmem:[#allocation3 + $0x10] sm:$0xff]
  %v2037 = vld [vmem:[#allocation3 + $0x18] sm:$0xff]
  %2042 = vrot.lane.b32.xlu0 %v2034, 123
  %v2043 = vpop.permute.xlu0 %2042
  %2044 = vrot.lane.b32.xlu0 %v2035, 123
  %v2045 = vpop.permute.xlu0 %2044
  %2046 = vrot.lane.b32.xlu0 %v2036, 123
  %v2047 = vpop.permute.xlu0 %2046
  %2048 = vrot.lane.b32.xlu0 %v2037, 123
  %v2049 = vpop.permute.xlu0 %2048
  %v2050 = vsel %vm271, %v2043, %v2045
  %v2051 = vsel %vm271, %v2045, %v2047
  %v2052 = vsel %vm271, %v2047, %v2049
  %2056 = vst [vmem:[#allocation4 + $0x78] sm:$0xff] %v2050
  %2057 = vst [vmem:[#allocation4 + $0x80] sm:$0xff] %v2051
  %2058 = vst [vmem:[#allocation4 + $0x88] sm:$0xff] %v2052
  %v2059 = vld [vmem:[#allocation3] sm:$0xff]
  %v2060 = vld [vmem:[#allocation3 + $0x8] sm:$0xff]
  %v2061 = vld [vmem:[#allocation3 + $0x10] sm:$0xff]
  %v2062 = vld [vmem:[#allocation3 + $0x18] sm:$0xff]
  %2067 = vrot.lane.b32.xlu0 %v2059, 122
  %v2068 = vpop.permute.xlu0 %2067
  %2069 = vrot.lane.b32.xlu0 %v2060, 122
  %v2070 = vpop.permute.xlu0 %2069
  %2071 = vrot.lane.b32.xlu0 %v2061, 122
  %v2072 = vpop.permute.xlu0 %2071
  %2073 = vrot.lane.b32.xlu0 %v2062, 122
  %v2074 = vpop.permute.xlu0 %2073
  %v2075 = vsel %vm297, %v2068, %v2070
  %v2076 = vsel %vm297, %v2070, %v2072
  %v2077 = vsel %vm297, %v2072, %v2074
  %2081 = vst [vmem:[#allocation4 + $0x90] sm:$0xff] %v2075
  %2082 = vst [vmem:[#allocation4 + $0x98] sm:$0xff] %v2076
  %2083 = vst [vmem:[#allocation4 + $0xa0] sm:$0xff] %v2077
  %v2084 = vld [vmem:[#allocation3] sm:$0xff]
  %v2085 = vld [vmem:[#allocation3 + $0x8] sm:$0xff]
  %v2086 = vld [vmem:[#allocation3 + $0x10] sm:$0xff]
  %v2087 = vld [vmem:[#allocation3 + $0x18] sm:$0xff]
  %2092 = vrot.lane.b32.xlu0 %v2084, 104
  %v2093 = vpop.permute.xlu0 %2092
  %2094 = vrot.lane.b32.xlu0 %v2085, 104
  %v2095 = vpop.permute.xlu0 %2094
  %2096 = vrot.lane.b32.xlu0 %v2086, 104
  %v2097 = vpop.permute.xlu0 %2096
  %2098 = vrot.lane.b32.xlu0 %v2087, 104
  %v2099 = vpop.permute.xlu0 %2098
  %v2100 = vsel %vm323, %v2093, %v2095
  %v2101 = vsel %vm323, %v2095, %v2097
  %v2102 = vsel %vm323, %v2097, %v2099
  %2106 = vst [vmem:[#allocation4 + $0xa8] sm:$0xff] %v2100
  %2107 = vst [vmem:[#allocation4 + $0xb0] sm:$0xff] %v2101
  %2108 = vst [vmem:[#allocation4 + $0xb8] sm:$0xff] %v2102
  %v2109 = vld [vmem:[#allocation3] sm:$0xff]
  %v2110 = vld [vmem:[#allocation3 + $0x8] sm:$0xff]
  %v2111 = vld [vmem:[#allocation3 + $0x10] sm:$0xff]
  %v2112 = vld [vmem:[#allocation3 + $0x18] sm:$0xff]
  %2117 = vrot.lane.b32.xlu0 %v2109, 103
  %v2118 = vpop.permute.xlu0 %2117
  %2119 = vrot.lane.b32.xlu0 %v2110, 103
  %v2120 = vpop.permute.xlu0 %2119
  %2121 = vrot.lane.b32.xlu0 %v2111, 103
  %v2122 = vpop.permute.xlu0 %2121
  %2123 = vrot.lane.b32.xlu0 %v2112, 103
  %v2124 = vpop.permute.xlu0 %2123
  %v2125 = vsel %vm349, %v2118, %v2120
  %v2126 = vsel %vm349, %v2120, %v2122
  %v2127 = vsel %vm349, %v2122, %v2124
  %2131 = vst [vmem:[#allocation4 + $0xc0] sm:$0xff] %v2125
  %2132 = vst [vmem:[#allocation4 + $0xc8] sm:$0xff] %v2126
  %2133 = vst [vmem:[#allocation4 + $0xd0] sm:$0xff] %v2127
  %v2134 = vld [vmem:[#allocation3] sm:$0xff]
  %v2135 = vld [vmem:[#allocation3 + $0x8] sm:$0xff]
  %v2136 = vld [vmem:[#allocation3 + $0x10] sm:$0xff]
  %v2137 = vld [vmem:[#allocation3 + $0x18] sm:$0xff]
  %2142 = vrot.lane.b32.xlu0 %v2134, 102
  %v2143 = vpop.permute.xlu0 %2142
  %2144 = vrot.lane.b32.xlu0 %v2135, 102
  %v2145 = vpop.permute.xlu0 %2144
  %2146 = vrot.lane.b32.xlu0 %v2136, 102
  %v2147 = vpop.permute.xlu0 %2146
  %2148 = vrot.lane.b32.xlu0 %v2137, 102
  %v2149 = vpop.permute.xlu0 %2148
  %v2150 = vsel %vm375, %v2143, %v2145
  %v2151 = vsel %vm375, %v2145, %v2147
  %v2152 = vsel %vm375, %v2147, %v2149
  %2156 = vst [vmem:[#allocation4 + $0xd8] sm:$0xff] %v2150
  %2157 = vst [vmem:[#allocation4 + $0xe0] sm:$0xff] %v2151
  %2158 = vst [vmem:[#allocation4 + $0xe8] sm:$0xff] %v2152
  %v2159 = vld [vmem:[#allocation3] sm:$0xff]
  %v2160 = vld [vmem:[#allocation3 + $0x8] sm:$0xff]
  %v2161 = vld [vmem:[#allocation3 + $0x10] sm:$0xff]
  %v2162 = vld [vmem:[#allocation3 + $0x18] sm:$0xff]
  %2167 = vrot.lane.b32.xlu0 %v2159, 101
  %v2168 = vpop.permute.xlu0 %2167
  %2169 = vrot.lane.b32.xlu0 %v2160, 101
  %v2170 = vpop.permute.xlu0 %2169
  %2171 = vrot.lane.b32.xlu0 %v2161, 101
  %v2172 = vpop.permute.xlu0 %2171
  %2173 = vrot.lane.b32.xlu0 %v2162, 101
  %v2174 = vpop.permute.xlu0 %2173
  %v2175 = vsel %vm401, %v2168, %v2170
  %v2176 = vsel %vm401, %v2170, %v2172
  %v2177 = vsel %vm401, %v2172, %v2174
  %2181 = vst [vmem:[#allocation4 + $0xf0] sm:$0xff] %v2175
  %2182 = vst [vmem:[#allocation4 + $0xf8] sm:$0xff] %v2176
  %2183 = vst [vmem:[#allocation4 + $0x100] sm:$0xff] %v2177
  %v2184 = vld [vmem:[#allocation3] sm:$0xff]
  %v2185 = vld [vmem:[#allocation3 + $0x8] sm:$0xff]
  %v2186 = vld [vmem:[#allocation3 + $0x10] sm:$0xff]
  %v2187 = vld [vmem:[#allocation3 + $0x18] sm:$0xff]
  %2192 = vrot.lane.b32.xlu0 %v2184, 100
  %v2193 = vpop.permute.xlu0 %2192
  %2194 = vrot.lane.b32.xlu0 %v2185, 100
  %v2195 = vpop.permute.xlu0 %2194
  %2196 = vrot.lane.b32.xlu0 %v2186, 100
  %v2197 = vpop.permute.xlu0 %2196
  %2198 = vrot.lane.b32.xlu0 %v2187, 100
  %v2199 = vpop.permute.xlu0 %2198
  %v2200 = vsel %vm427, %v2193, %v2195
  %v2201 = vsel %vm427, %v2195, %v2197
  %v2202 = vsel %vm427, %v2197, %v2199
  %2206 = vst [vmem:[#allocation4 + $0x108] sm:$0xff] %v2200
  %2207 = vst [vmem:[#allocation4 + $0x110] sm:$0xff] %v2201
  %2208 = vst [vmem:[#allocation4 + $0x118] sm:$0xff] %v2202
  %v2209 = vld [vmem:[#allocation3] sm:$0xff]
  %v2210 = vld [vmem:[#allocation3 + $0x8] sm:$0xff]
  %v2211 = vld [vmem:[#allocation3 + $0x10] sm:$0xff]
  %v2212 = vld [vmem:[#allocation3 + $0x18] sm:$0xff]
  %2217 = vrot.lane.b32.xlu0 %v2209, 99
  %v2218 = vpop.permute.xlu0 %2217
  %2219 = vrot.lane.b32.xlu0 %v2210, 99
  %v2220 = vpop.permute.xlu0 %2219
  %2221 = vrot.lane.b32.xlu0 %v2211, 99
  %v2222 = vpop.permute.xlu0 %2221
  %2223 = vrot.lane.b32.xlu0 %v2212, 99
  %v2224 = vpop.permute.xlu0 %2223
  %v2225 = vsel %vm453, %v2218, %v2220
  %v2226 = vsel %vm453, %v2220, %v2222
  %v2227 = vsel %vm453, %v2222, %v2224
  %2231 = vst [vmem:[#allocation4 + $0x120] sm:$0xff] %v2225
  %2232 = vst [vmem:[#allocation4 + $0x128] sm:$0xff] %v2226
  %2233 = vst [vmem:[#allocation4 + $0x130] sm:$0xff] %v2227
  %v2234 = vld [vmem:[#allocation3] sm:$0xff]
  %v2235 = vld [vmem:[#allocation3 + $0x8] sm:$0xff]
  %v2236 = vld [vmem:[#allocation3 + $0x10] sm:$0xff]
  %v2237 = vld [vmem:[#allocation3 + $0x18] sm:$0xff]
  %2242 = vrot.lane.b32.xlu0 %v2234, 98
  %v2243 = vpop.permute.xlu0 %2242
  %2244 = vrot.lane.b32.xlu0 %v2235, 98
  %v2245 = vpop.permute.xlu0 %2244
  %2246 = vrot.lane.b32.xlu0 %v2236, 98
  %v2247 = vpop.permute.xlu0 %2246
  %2248 = vrot.lane.b32.xlu0 %v2237, 98
  %v2249 = vpop.permute.xlu0 %2248
  %v2250 = vsel %vm479, %v2243, %v2245
  %v2251 = vsel %vm479, %v2245, %v2247
  %v2252 = vsel %vm479, %v2247, %v2249
  %2256 = vst [vmem:[#allocation4 + $0x138] sm:$0xff] %v2250
  %2257 = vst [vmem:[#allocation4 + $0x140] sm:$0xff] %v2251
  %2258 = vst [vmem:[#allocation4 + $0x148] sm:$0xff] %v2252
  %v2259 = vld [vmem:[#allocation3] sm:$0xff]
  %v2260 = vld [vmem:[#allocation3 + $0x8] sm:$0xff]
  %v2261 = vld [vmem:[#allocation3 + $0x10] sm:$0xff]
  %v2262 = vld [vmem:[#allocation3 + $0x18] sm:$0xff]
  %2267 = vrot.lane.b32.xlu0 %v2259, 80
  %v2268 = vpop.permute.xlu0 %2267
  %2269 = vrot.lane.b32.xlu0 %v2260, 80
  %v2270 = vpop.permute.xlu0 %2269
  %2271 = vrot.lane.b32.xlu0 %v2261, 80
  %v2272 = vpop.permute.xlu0 %2271
  %2273 = vrot.lane.b32.xlu0 %v2262, 80
  %v2274 = vpop.permute.xlu0 %2273
  %v2275 = vsel %vm505, %v2268, %v2270
  %v2276 = vsel %vm505, %v2270, %v2272
  %v2277 = vsel %vm505, %v2272, %v2274
  %2281 = vst [vmem:[#allocation4 + $0x150] sm:$0xff] %v2275
  %2282 = vst [vmem:[#allocation4 + $0x158] sm:$0xff] %v2276
  %2283 = vst [vmem:[#allocation4 + $0x160] sm:$0xff] %v2277
  %v2284 = vld [vmem:[#allocation3] sm:$0xff]
  %v2285 = vld [vmem:[#allocation3 + $0x8] sm:$0xff]
  %v2286 = vld [vmem:[#allocation3 + $0x10] sm:$0xff]
  %v2287 = vld [vmem:[#allocation3 + $0x18] sm:$0xff]
  %2292 = vrot.lane.b32.xlu0 %v2284, 79
  %v2293 = vpop.permute.xlu0 %2292
  %2294 = vrot.lane.b32.xlu0 %v2285, 79
  %v2295 = vpop.permute.xlu0 %2294
  %2296 = vrot.lane.b32.xlu0 %v2286, 79
  %v2297 = vpop.permute.xlu0 %2296
  %2298 = vrot.lane.b32.xlu0 %v2287, 79
  %v2299 = vpop.permute.xlu0 %2298
  %v2300 = vsel %vm531, %v2293, %v2295
  %v2301 = vsel %vm531, %v2295, %v2297
  %v2302 = vsel %vm531, %v2297, %v2299
  %2306 = vst [vmem:[#allocation4 + $0x168] sm:$0xff] %v2300
  %2307 = vst [vmem:[#allocation4 + $0x170] sm:$0xff] %v2301
  %2308 = vst [vmem:[#allocation4 + $0x178] sm:$0xff] %v2302
  %v2309 = vld [vmem:[#allocation3] sm:$0xff]
  %v2310 = vld [vmem:[#allocation3 + $0x8] sm:$0xff]
  %v2311 = vld [vmem:[#allocation3 + $0x10] sm:$0xff]
  %v2312 = vld [vmem:[#allocation3 + $0x18] sm:$0xff]
  %2317 = vrot.lane.b32.xlu0 %v2309, 78
  %v2318 = vpop.permute.xlu0 %2317
  %2319 = vrot.lane.b32.xlu0 %v2310, 78
  %v2320 = vpop.permute.xlu0 %2319
  %2321 = vrot.lane.b32.xlu0 %v2311, 78
  %v2322 = vpop.permute.xlu0 %2321
  %2323 = vrot.lane.b32.xlu0 %v2312, 78
  %v2324 = vpop.permute.xlu0 %2323
  %v2325 = vsel %vm557, %v2318, %v2320
  %v2326 = vsel %vm557, %v2320, %v2322
  %v2327 = vsel %vm557, %v2322, %v2324
  %2331 = vst [vmem:[#allocation4 + $0x180] sm:$0xff] %v2325
  %2332 = vst [vmem:[#allocation4 + $0x188] sm:$0xff] %v2326
  %2333 = vst [vmem:[#allocation4 + $0x190] sm:$0xff] %v2327
  %v2334 = vld [vmem:[#allocation3] sm:$0xff]
  %v2335 = vld [vmem:[#allocation3 + $0x8] sm:$0xff]
  %v2336 = vld [vmem:[#allocation3 + $0x10] sm:$0xff]
  %v2337 = vld [vmem:[#allocation3 + $0x18] sm:$0xff]
  %2342 = vrot.lane.b32.xlu0 %v2334, 77
  %v2343 = vpop.permute.xlu0 %2342
  %2344 = vrot.lane.b32.xlu0 %v2335, 77
  %v2345 = vpop.permute.xlu0 %2344
  %2346 = vrot.lane.b32.xlu0 %v2336, 77
  %v2347 = vpop.permute.xlu0 %2346
  %2348 = vrot.lane.b32.xlu0 %v2337, 77
  %v2349 = vpop.permute.xlu0 %2348
  %v2350 = vsel %vm583, %v2343, %v2345
  %v2351 = vsel %vm583, %v2345, %v2347
  %v2352 = vsel %vm583, %v2347, %v2349
  %2356 = vst [vmem:[#allocation4 + $0x198] sm:$0xff] %v2350
  %2357 = vst [vmem:[#allocation4 + $0x1a0] sm:$0xff] %v2351
  %2358 = vst [vmem:[#allocation4 + $0x1a8] sm:$0xff] %v2352
  %v2359 = vld [vmem:[#allocation3] sm:$0xff]
  %v2360 = vld [vmem:[#allocation3 + $0x8] sm:$0xff]
  %v2361 = vld [vmem:[#allocation3 + $0x10] sm:$0xff]
  %v2362 = vld [vmem:[#allocation3 + $0x18] sm:$0xff]
  %2367 = vrot.lane.b32.xlu0 %v2359, 76
  %v2368 = vpop.permute.xlu0 %2367
  %2369 = vrot.lane.b32.xlu0 %v2360, 76
  %v2370 = vpop.permute.xlu0 %2369
  %2371 = vrot.lane.b32.xlu0 %v2361, 76
  %v2372 = vpop.permute.xlu0 %2371
  %2373 = vrot.lane.b32.xlu0 %v2362, 76
  %v2374 = vpop.permute.xlu0 %2373
  %v2375 = vsel %vm609, %v2368, %v2370
  %v2376 = vsel %vm609, %v2370, %v2372
  %v2377 = vsel %vm609, %v2372, %v2374
  %2381 = vst [vmem:[#allocation4 + $0x1b0] sm:$0xff] %v2375
  %2382 = vst [vmem:[#allocation4 + $0x1b8] sm:$0xff] %v2376
  %2383 = vst [vmem:[#allocation4 + $0x1c0] sm:$0xff] %v2377
  %v2384 = vld [vmem:[#allocation3] sm:$0xff]
  %v2385 = vld [vmem:[#allocation3 + $0x8] sm:$0xff]
  %v2386 = vld [vmem:[#allocation3 + $0x10] sm:$0xff]
  %v2387 = vld [vmem:[#allocation3 + $0x18] sm:$0xff]
  %2392 = vrot.lane.b32.xlu0 %v2384, 75
  %v2393 = vpop.permute.xlu0 %2392
  %2394 = vrot.lane.b32.xlu0 %v2385, 75
  %v2395 = vpop.permute.xlu0 %2394
  %2396 = vrot.lane.b32.xlu0 %v2386, 75
  %v2397 = vpop.permute.xlu0 %2396
  %2398 = vrot.lane.b32.xlu0 %v2387, 75
  %v2399 = vpop.permute.xlu0 %2398
  %v2400 = vsel %vm635, %v2393, %v2395
  %v2401 = vsel %vm635, %v2395, %v2397
  %v2402 = vsel %vm635, %v2397, %v2399
  %2406 = vst [vmem:[#allocation4 + $0x1c8] sm:$0xff] %v2400
  %2407 = vst [vmem:[#allocation4 + $0x1d0] sm:$0xff] %v2401
  %2408 = vst [vmem:[#allocation4 + $0x1d8] sm:$0xff] %v2402
  %v2409 = vld [vmem:[#allocation3] sm:$0xff]
  %v2410 = vld [vmem:[#allocation3 + $0x8] sm:$0xff]
  %v2411 = vld [vmem:[#allocation3 + $0x10] sm:$0xff]
  %v2412 = vld [vmem:[#allocation3 + $0x18] sm:$0xff]
  %2417 = vrot.lane.b32.xlu0 %v2409, 74
  %v2418 = vpop.permute.xlu0 %2417
  %2419 = vrot.lane.b32.xlu0 %v2410, 74
  %v2420 = vpop.permute.xlu0 %2419
  %2421 = vrot.lane.b32.xlu0 %v2411, 74
  %v2422 = vpop.permute.xlu0 %2421
  %2423 = vrot.lane.b32.xlu0 %v2412, 74
  %v2424 = vpop.permute.xlu0 %2423
  %v2425 = vsel %vm661, %v2418, %v2420
  %v2426 = vsel %vm661, %v2420, %v2422
  %v2427 = vsel %vm661, %v2422, %v2424
  %2431 = vst [vmem:[#allocation4 + $0x1e0] sm:$0xff] %v2425
  %2432 = vst [vmem:[#allocation4 + $0x1e8] sm:$0xff] %v2426
  %2433 = vst [vmem:[#allocation4 + $0x1f0] sm:$0xff] %v2427
  %v2434 = vld [vmem:[#allocation3] sm:$0xff]
  %v2435 = vld [vmem:[#allocation3 + $0x8] sm:$0xff]
  %v2436 = vld [vmem:[#allocation3 + $0x10] sm:$0xff]
  %v2437 = vld [vmem:[#allocation3 + $0x18] sm:$0xff]
  %2442 = vrot.lane.b32.xlu0 %v2434, 56
  %v2443 = vpop.permute.xlu0 %2442
  %2444 = vrot.lane.b32.xlu0 %v2435, 56
  %v2445 = vpop.permute.xlu0 %2444
  %2446 = vrot.lane.b32.xlu0 %v2436, 56
  %v2447 = vpop.permute.xlu0 %2446
  %2448 = vrot.lane.b32.xlu0 %v2437, 56
  %v2449 = vpop.permute.xlu0 %2448
  %v2450 = vsel %vm687, %v2443, %v2445
  %v2451 = vsel %vm687, %v2445, %v2447
  %v2452 = vsel %vm687, %v2447, %v2449
  %2456 = vst [vmem:[#allocation4 + $0x1f8] sm:$0xff] %v2450
  %2457 = vst [vmem:[#allocation4 + $0x200] sm:$0xff] %v2451
  %2458 = vst [vmem:[#allocation4 + $0x208] sm:$0xff] %v2452
  %v2459 = vld [vmem:[#allocation3] sm:$0xff]
  %v2460 = vld [vmem:[#allocation3 + $0x8] sm:$0xff]
  %v2461 = vld [vmem:[#allocation3 + $0x10] sm:$0xff]
  %v2462 = vld [vmem:[#allocation3 + $0x18] sm:$0xff]
  %2467 = vrot.lane.b32.xlu0 %v2459, 55
  %v2468 = vpop.permute.xlu0 %2467
  %2469 = vrot.lane.b32.xlu0 %v2460, 55
  %v2470 = vpop.permute.xlu0 %2469
  %2471 = vrot.lane.b32.xlu0 %v2461, 55
  %v2472 = vpop.permute.xlu0 %2471
  %2473 = vrot.lane.b32.xlu0 %v2462, 55
  %v2474 = vpop.permute.xlu0 %2473
  %v2475 = vsel %vm713, %v2468, %v2470
  %v2476 = vsel %vm713, %v2470, %v2472
  %v2477 = vsel %vm713, %v2472, %v2474
  %2481 = vst [vmem:[#allocation4 + $0x210] sm:$0xff] %v2475
  %2482 = vst [vmem:[#allocation4 + $0x218] sm:$0xff] %v2476
  %2483 = vst [vmem:[#allocation4 + $0x220] sm:$0xff] %v2477
  %v2484 = vld [vmem:[#allocation3] sm:$0xff]
  %v2485 = vld [vmem:[#allocation3 + $0x8] sm:$0xff]
  %v2486 = vld [vmem:[#allocation3 + $0x10] sm:$0xff]
  %v2487 = vld [vmem:[#allocation3 + $0x18] sm:$0xff]
  %2492 = vrot.lane.b32.xlu0 %v2484, 54
  %v2493 = vpop.permute.xlu0 %2492
  %2494 = vrot.lane.b32.xlu0 %v2485, 54
  %v2495 = vpop.permute.xlu0 %2494
  %2496 = vrot.lane.b32.xlu0 %v2486, 54
  %v2497 = vpop.permute.xlu0 %2496
  %2498 = vrot.lane.b32.xlu0 %v2487, 54
  %v2499 = vpop.permute.xlu0 %2498
  %v2500 = vsel %vm739, %v2493, %v2495
  %v2501 = vsel %vm739, %v2495, %v2497
  %v2502 = vsel %vm739, %v2497, %v2499
  %2506 = vst [vmem:[#allocation4 + $0x228] sm:$0xff] %v2500
  %2507 = vst [vmem:[#allocation4 + $0x230] sm:$0xff] %v2501
  %2508 = vst [vmem:[#allocation4 + $0x238] sm:$0xff] %v2502
  %v2509 = vld [vmem:[#allocation3] sm:$0xff]
  %v2510 = vld [vmem:[#allocation3 + $0x8] sm:$0xff]
  %v2511 = vld [vmem:[#allocation3 + $0x10] sm:$0xff]
  %v2512 = vld [vmem:[#allocation3 + $0x18] sm:$0xff]
  %2517 = vrot.lane.b32.xlu0 %v2509, 53
  %v2518 = vpop.permute.xlu0 %2517
  %2519 = vrot.lane.b32.xlu0 %v2510, 53
  %v2520 = vpop.permute.xlu0 %2519
  %2521 = vrot.lane.b32.xlu0 %v2511, 53
  %v2522 = vpop.permute.xlu0 %2521
  %2523 = vrot.lane.b32.xlu0 %v2512, 53
  %v2524 = vpop.permute.xlu0 %2523
  %v2525 = vsel %vm765, %v2518, %v2520
  %v2526 = vsel %vm765, %v2520, %v2522
  %v2527 = vsel %vm765, %v2522, %v2524
  %2531 = vst [vmem:[#allocation4 + $0x240] sm:$0xff] %v2525
  %2532 = vst [vmem:[#allocation4 + $0x248] sm:$0xff] %v2526
  %2533 = vst [vmem:[#allocation4 + $0x250] sm:$0xff] %v2527
  %v2534 = vld [vmem:[#allocation3] sm:$0xff]
  %v2535 = vld [vmem:[#allocation3 + $0x8] sm:$0xff]
  %v2536 = vld [vmem:[#allocation3 + $0x10] sm:$0xff]
  %v2537 = vld [vmem:[#allocation3 + $0x18] sm:$0xff]
  %2542 = vrot.lane.b32.xlu0 %v2534, 52
  %v2543 = vpop.permute.xlu0 %2542
  %2544 = vrot.lane.b32.xlu0 %v2535, 52
  %v2545 = vpop.permute.xlu0 %2544
  %2546 = vrot.lane.b32.xlu0 %v2536, 52
  %v2547 = vpop.permute.xlu0 %2546
  %2548 = vrot.lane.b32.xlu0 %v2537, 52
  %v2549 = vpop.permute.xlu0 %2548
  %v2550 = vsel %vm791, %v2543, %v2545
  %v2551 = vsel %vm791, %v2545, %v2547
  %v2552 = vsel %vm791, %v2547, %v2549
  %2556 = vst [vmem:[#allocation4 + $0x258] sm:$0xff] %v2550
  %2557 = vst [vmem:[#allocation4 + $0x260] sm:$0xff] %v2551
  %2558 = vst [vmem:[#allocation4 + $0x268] sm:$0xff] %v2552
  %v2559 = vld [vmem:[#allocation3] sm:$0xff]
  %v2560 = vld [vmem:[#allocation3 + $0x8] sm:$0xff]
  %v2561 = vld [vmem:[#allocation3 + $0x10] sm:$0xff]
  %v2562 = vld [vmem:[#allocation3 + $0x18] sm:$0xff]
  %2567 = vrot.lane.b32.xlu0 %v2559, 51
  %v2568 = vpop.permute.xlu0 %2567
  %2569 = vrot.lane.b32.xlu0 %v2560, 51
  %v2570 = vpop.permute.xlu0 %2569
  %2571 = vrot.lane.b32.xlu0 %v2561, 51
  %v2572 = vpop.permute.xlu0 %2571
  %2573 = vrot.lane.b32.xlu0 %v2562, 51
  %v2574 = vpop.permute.xlu0 %2573
  %v2575 = vsel %vm817, %v2568, %v2570
  %v2576 = vsel %vm817, %v2570, %v2572
  %v2577 = vsel %vm817, %v2572, %v2574
  %2581 = vst [vmem:[#allocation4 + $0x270] sm:$0xff] %v2575
  %2582 = vst [vmem:[#allocation4 + $0x278] sm:$0xff] %v2576
  %2583 = vst [vmem:[#allocation4 + $0x280] sm:$0xff] %v2577
  %v2584 = vld [vmem:[#allocation3] sm:$0xff]
  %v2585 = vld [vmem:[#allocation3 + $0x8] sm:$0xff]
  %v2586 = vld [vmem:[#allocation3 + $0x10] sm:$0xff]
  %v2587 = vld [vmem:[#allocation3 + $0x18] sm:$0xff]
  %2592 = vrot.lane.b32.xlu0 %v2584, 50
  %v2593 = vpop.permute.xlu0 %2592
  %2594 = vrot.lane.b32.xlu0 %v2585, 50
  %v2595 = vpop.permute.xlu0 %2594
  %2596 = vrot.lane.b32.xlu0 %v2586, 50
  %v2597 = vpop.permute.xlu0 %2596
  %2598 = vrot.lane.b32.xlu0 %v2587, 50
  %v2599 = vpop.permute.xlu0 %2598
  %v2600 = vsel %vm843, %v2593, %v2595
  %v2601 = vsel %vm843, %v2595, %v2597
  %v2602 = vsel %vm843, %v2597, %v2599
  %2606 = vst [vmem:[#allocation4 + $0x288] sm:$0xff] %v2600
  %2607 = vst [vmem:[#allocation4 + $0x290] sm:$0xff] %v2601
  %2608 = vst [vmem:[#allocation4 + $0x298] sm:$0xff] %v2602
  %v2609 = vld [vmem:[#allocation3] sm:$0xff]
  %v2610 = vld [vmem:[#allocation3 + $0x8] sm:$0xff]
  %v2611 = vld [vmem:[#allocation3 + $0x10] sm:$0xff]
  %v2612 = vld [vmem:[#allocation3 + $0x18] sm:$0xff]
  %2617 = vrot.lane.b32.xlu0 %v2609, 32
  %v2618 = vpop.permute.xlu0 %2617
  %2619 = vrot.lane.b32.xlu0 %v2610, 32
  %v2620 = vpop.permute.xlu0 %2619
  %2621 = vrot.lane.b32.xlu0 %v2611, 32
  %v2622 = vpop.permute.xlu0 %2621
  %2623 = vrot.lane.b32.xlu0 %v2612, 32
  %v2624 = vpop.permute.xlu0 %2623
  %v2625 = vsel %vm869, %v2618, %v2620
  %v2626 = vsel %vm869, %v2620, %v2622
  %v2627 = vsel %vm869, %v2622, %v2624
  %2631 = vst [vmem:[#allocation4 + $0x2a0] sm:$0xff] %v2625
  %2632 = vst [vmem:[#allocation4 + $0x2a8] sm:$0xff] %v2626
  %2633 = vst [vmem:[#allocation4 + $0x2b0] sm:$0xff] %v2627
  %v2634 = vld [vmem:[#allocation3] sm:$0xff]
  %v2635 = vld [vmem:[#allocation3 + $0x8] sm:$0xff]
  %v2636 = vld [vmem:[#allocation3 + $0x10] sm:$0xff]
  %v2637 = vld [vmem:[#allocation3 + $0x18] sm:$0xff]
  %2642 = vrot.lane.b32.xlu0 %v2634, 31
  %v2643 = vpop.permute.xlu0 %2642
  %2644 = vrot.lane.b32.xlu0 %v2635, 31
  %v2645 = vpop.permute.xlu0 %2644
  %2646 = vrot.lane.b32.xlu0 %v2636, 31
  %v2647 = vpop.permute.xlu0 %2646
  %2648 = vrot.lane.b32.xlu0 %v2637, 31
  %v2649 = vpop.permute.xlu0 %2648
  %v2650 = vsel %vm895, %v2643, %v2645
  %v2651 = vsel %vm895, %v2645, %v2647
  %v2652 = vsel %vm895, %v2647, %v2649
  %2656 = vst [vmem:[#allocation4 + $0x2b8] sm:$0xff] %v2650
  %2657 = vst [vmem:[#allocation4 + $0x2c0] sm:$0xff] %v2651
  %2658 = vst [vmem:[#allocation4 + $0x2c8] sm:$0xff] %v2652
  %v2659 = vld [vmem:[#allocation3] sm:$0xff]
  %v2660 = vld [vmem:[#allocation3 + $0x8] sm:$0xff]
  %v2661 = vld [vmem:[#allocation3 + $0x10] sm:$0xff]
  %v2662 = vld [vmem:[#allocation3 + $0x18] sm:$0xff]
  %2667 = vrot.lane.b32.xlu0 %v2659, 30
  %v2668 = vpop.permute.xlu0 %2667
  %2669 = vrot.lane.b32.xlu0 %v2660, 30
  %v2670 = vpop.permute.xlu0 %2669
  %2671 = vrot.lane.b32.xlu0 %v2661, 30
  %v2672 = vpop.permute.xlu0 %2671
  %2673 = vrot.lane.b32.xlu0 %v2662, 30
  %v2674 = vpop.permute.xlu0 %2673
  %v2675 = vsel %vm921, %v2668, %v2670
  %v2676 = vsel %vm921, %v2670, %v2672
  %v2677 = vsel %vm921, %v2672, %v2674
  %2681 = vst [vmem:[#allocation4 + $0x2d0] sm:$0xff] %v2675
  %2682 = vst [vmem:[#allocation4 + $0x2d8] sm:$0xff] %v2676
  %2683 = vst [vmem:[#allocation4 + $0x2e0] sm:$0xff] %v2677
  %v2684 = vld [vmem:[#allocation3] sm:$0xff]
  %v2685 = vld [vmem:[#allocation3 + $0x8] sm:$0xff]
  %v2686 = vld [vmem:[#allocation3 + $0x10] sm:$0xff]
  %v2687 = vld [vmem:[#allocation3 + $0x18] sm:$0xff]
  %2692 = vrot.lane.b32.xlu0 %v2684, 29
  %v2693 = vpop.permute.xlu0 %2692
  %2694 = vrot.lane.b32.xlu0 %v2685, 29
  %v2695 = vpop.permute.xlu0 %2694
  %2696 = vrot.lane.b32.xlu0 %v2686, 29
  %v2697 = vpop.permute.xlu0 %2696
  %2698 = vrot.lane.b32.xlu0 %v2687, 29
  %v2699 = vpop.permute.xlu0 %2698
  %v2700 = vsel %vm947, %v2693, %v2695
  %v2701 = vsel %vm947, %v2695, %v2697
  %v2702 = vsel %vm947, %v2697, %v2699
  %2706 = vst [vmem:[#allocation4 + $0x2e8] sm:$0xff] %v2700
  %2707 = vst [vmem:[#allocation4 + $0x2f0] sm:$0xff] %v2701
  %2708 = vst [vmem:[#allocation4 + $0x2f8] sm:$0xff] %v2702
  %v2709 = vld [vmem:[#allocation3] sm:$0xff]
  %v2710 = vld [vmem:[#allocation3 + $0x8] sm:$0xff]
  %v2711 = vld [vmem:[#allocation3 + $0x10] sm:$0xff]
  %v2712 = vld [vmem:[#allocation3 + $0x18] sm:$0xff]
  %2717 = vrot.lane.b32.xlu0 %v2709, 28
  %v2718 = vpop.permute.xlu0 %2717
  %2719 = vrot.lane.b32.xlu0 %v2710, 28
  %v2720 = vpop.permute.xlu0 %2719
  %2721 = vrot.lane.b32.xlu0 %v2711, 28
  %v2722 = vpop.permute.xlu0 %2721
  %2723 = vrot.lane.b32.xlu0 %v2712, 28
  %v2724 = vpop.permute.xlu0 %2723
  %v2725 = vsel %vm973, %v2718, %v2720
  %v2726 = vsel %vm973, %v2720, %v2722
  %v2727 = vsel %vm973, %v2722, %v2724
  %2731 = vst [vmem:[#allocation4 + $0x300] sm:$0xff] %v2725
  %2732 = vst [vmem:[#allocation4 + $0x308] sm:$0xff] %v2726
  %2733 = vst [vmem:[#allocation4 + $0x310] sm:$0xff] %v2727
  %v2734 = vld [vmem:[#allocation3] sm:$0xff]
  %v2735 = vld [vmem:[#allocation3 + $0x8] sm:$0xff]
  %v2736 = vld [vmem:[#allocation3 + $0x10] sm:$0xff]
  %v2737 = vld [vmem:[#allocation3 + $0x18] sm:$0xff]
  %2742 = vrot.lane.b32.xlu0 %v2734, 27
  %v2743 = vpop.permute.xlu0 %2742
  %2744 = vrot.lane.b32.xlu0 %v2735, 27
  %v2745 = vpop.permute.xlu0 %2744
  %2746 = vrot.lane.b32.xlu0 %v2736, 27
  %v2747 = vpop.permute.xlu0 %2746
  %2748 = vrot.lane.b32.xlu0 %v2737, 27
  %v2749 = vpop.permute.xlu0 %2748
  %v2750 = vsel %vm999, %v2743, %v2745
  %v2751 = vsel %vm999, %v2745, %v2747
  %v2752 = vsel %vm999, %v2747, %v2749
  %2756 = vst [vmem:[#allocation4 + $0x318] sm:$0xff] %v2750
  %2757 = vst [vmem:[#allocation4 + $0x320] sm:$0xff] %v2751
  %2758 = vst [vmem:[#allocation4 + $0x328] sm:$0xff] %v2752
  %v2759 = vld [vmem:[#allocation3] sm:$0xff]
  %v2760 = vld [vmem:[#allocation3 + $0x8] sm:$0xff]
  %v2761 = vld [vmem:[#allocation3 + $0x10] sm:$0xff]
  %v2762 = vld [vmem:[#allocation3 + $0x18] sm:$0xff]
  %2767 = vrot.lane.b32.xlu0 %v2759, 26
  %v2768 = vpop.permute.xlu0 %2767
  %2769 = vrot.lane.b32.xlu0 %v2760, 26
  %v2770 = vpop.permute.xlu0 %2769
  %2771 = vrot.lane.b32.xlu0 %v2761, 26
  %v2772 = vpop.permute.xlu0 %2771
  %2773 = vrot.lane.b32.xlu0 %v2762, 26
  %v2774 = vpop.permute.xlu0 %2773
  %v2775 = vsel %vm1025, %v2768, %v2770
  %v2776 = vsel %vm1025, %v2770, %v2772
  %v2777 = vsel %vm1025, %v2772, %v2774
  %2781 = vst [vmem:[#allocation4 + $0x330] sm:$0xff] %v2775
  %2782 = vst [vmem:[#allocation4 + $0x338] sm:$0xff] %v2776
  %2783 = vst [vmem:[#allocation4 + $0x340] sm:$0xff] %v2777
  %v2784 = vld [vmem:[#allocation3] sm:$0xff]
  %v2785 = vld [vmem:[#allocation3 + $0x8] sm:$0xff]
  %v2786 = vld [vmem:[#allocation3 + $0x10] sm:$0xff]
  %v2787 = vld [vmem:[#allocation3 + $0x18] sm:$0xff]
  %2792 = vrot.lane.b32.xlu0 %v2784, 8
  %v2793 = vpop.permute.xlu0 %2792
  %2794 = vrot.lane.b32.xlu0 %v2785, 8
  %v2795 = vpop.permute.xlu0 %2794
  %2796 = vrot.lane.b32.xlu0 %v2786, 8
  %v2797 = vpop.permute.xlu0 %2796
  %2798 = vrot.lane.b32.xlu0 %v2787, 8
  %v2799 = vpop.permute.xlu0 %2798
  %v2800 = vsel %vm1051, %v2793, %v2795
  %v2801 = vsel %vm1051, %v2795, %v2797
  %v2802 = vsel %vm1051, %v2797, %v2799
  %2806 = vst [vmem:[#allocation4 + $0x348] sm:$0xff] %v2800
  %2807 = vst [vmem:[#allocation4 + $0x350] sm:$0xff] %v2801
  %2808 = vst [vmem:[#allocation4 + $0x358] sm:$0xff] %v2802
  %v2809 = vld [vmem:[#allocation3] sm:$0xff]
  %v2810 = vld [vmem:[#allocation3 + $0x8] sm:$0xff]
  %v2811 = vld [vmem:[#allocation3 + $0x10] sm:$0xff]
  %v2812 = vld [vmem:[#allocation3 + $0x18] sm:$0xff]
  %2817 = vrot.lane.b32.xlu0 %v2809, 7
  %v2818 = vpop.permute.xlu0 %2817
  %2819 = vrot.lane.b32.xlu0 %v2810, 7
  %v2820 = vpop.permute.xlu0 %2819
  %2821 = vrot.lane.b32.xlu0 %v2811, 7
  %v2822 = vpop.permute.xlu0 %2821
  %2823 = vrot.lane.b32.xlu0 %v2812, 7
  %v2824 = vpop.permute.xlu0 %2823
  %v2825 = vsel %vm1077, %v2818, %v2820
  %v2826 = vsel %vm1077, %v2820, %v2822
  %v2827 = vsel %vm1077, %v2822, %v2824
  %2831 = vst [vmem:[#allocation4 + $0x360] sm:$0xff] %v2825
  %2832 = vst [vmem:[#allocation4 + $0x368] sm:$0xff] %v2826
  %2833 = vst [vmem:[#allocation4 + $0x370] sm:$0xff] %v2827
  %v2834 = vld [vmem:[#allocation3] sm:$0xff]
  %v2835 = vld [vmem:[#allocation3 + $0x8] sm:$0xff]
  %v2836 = vld [vmem:[#allocation3 + $0x10] sm:$0xff]
  %v2837 = vld [vmem:[#allocation3 + $0x18] sm:$0xff]
  %2842 = vrot.lane.b32.xlu0 %v2834, 6
  %v2843 = vpop.permute.xlu0 %2842
  %2844 = vrot.lane.b32.xlu0 %v2835, 6
  %v2845 = vpop.permute.xlu0 %2844
  %2846 = vrot.lane.b32.xlu0 %v2836, 6
  %v2847 = vpop.permute.xlu0 %2846
  %2848 = vrot.lane.b32.xlu0 %v2837, 6
  %v2849 = vpop.permute.xlu0 %2848
  %v2850 = vsel %vm1103, %v2843, %v2845
  %v2851 = vsel %vm1103, %v2845, %v2847
  %v2852 = vsel %vm1103, %v2847, %v2849
  %2856 = vst [vmem:[#allocation4 + $0x378] sm:$0xff] %v2850
  %2857 = vst [vmem:[#allocation4 + $0x380] sm:$0xff] %v2851
  %2858 = vst [vmem:[#allocation4 + $0x388] sm:$0xff] %v2852
  %v2859 = vld [vmem:[#allocation3] sm:$0xff]
  %v2860 = vld [vmem:[#allocation3 + $0x8] sm:$0xff]
  %v2861 = vld [vmem:[#allocation3 + $0x10] sm:$0xff]
  %v2862 = vld [vmem:[#allocation3 + $0x18] sm:$0xff]
  %2867 = vrot.lane.b32.xlu0 %v2859, 5
  %v2868 = vpop.permute.xlu0 %2867
  %2869 = vrot.lane.b32.xlu0 %v2860, 5
  %v2870 = vpop.permute.xlu0 %2869
  %2871 = vrot.lane.b32.xlu0 %v2861, 5
  %v2872 = vpop.permute.xlu0 %2871
  %2873 = vrot.lane.b32.xlu0 %v2862, 5
  %v2874 = vpop.permute.xlu0 %2873
  %v2875 = vsel %vm1129, %v2868, %v2870
  %v2876 = vsel %vm1129, %v2870, %v2872
  %v2877 = vsel %vm1129, %v2872, %v2874
  %2881 = vst [vmem:[#allocation4 + $0x390] sm:$0xff] %v2875
  %2882 = vst [vmem:[#allocation4 + $0x398] sm:$0xff] %v2876
  %2883 = vst [vmem:[#allocation4 + $0x3a0] sm:$0xff] %v2877
  %v2884 = vld [vmem:[#allocation3] sm:$0xff]
  %v2885 = vld [vmem:[#allocation3 + $0x8] sm:$0xff]
  %v2886 = vld [vmem:[#allocation3 + $0x10] sm:$0xff]
  %v2887 = vld [vmem:[#allocation3 + $0x18] sm:$0xff]
  %2892 = vrot.lane.b32.xlu0 %v2884, 4
  %v2893 = vpop.permute.xlu0 %2892
  %2894 = vrot.lane.b32.xlu0 %v2885, 4
  %v2895 = vpop.permute.xlu0 %2894
  %2896 = vrot.lane.b32.xlu0 %v2886, 4
  %v2897 = vpop.permute.xlu0 %2896
  %2898 = vrot.lane.b32.xlu0 %v2887, 4
  %v2899 = vpop.permute.xlu0 %2898
  %v2900 = vsel %vm1155, %v2893, %v2895
  %v2901 = vsel %vm1155, %v2895, %v2897
  %v2902 = vsel %vm1155, %v2897, %v2899
  %2906 = vst [vmem:[#allocation4 + $0x3a8] sm:$0xff] %v2900
  %2907 = vst [vmem:[#allocation4 + $0x3b0] sm:$0xff] %v2901
  %2908 = vst [vmem:[#allocation4 + $0x3b8] sm:$0xff] %v2902
  %v2909 = vld [vmem:[#allocation3] sm:$0xff]
  %v2910 = vld [vmem:[#allocation3 + $0x8] sm:$0xff]
  %v2911 = vld [vmem:[#allocation3 + $0x10] sm:$0xff]
  %v2912 = vld [vmem:[#allocation3 + $0x18] sm:$0xff]
  %2917 = vrot.lane.b32.xlu0 %v2909, 3
  %v2918 = vpop.permute.xlu0 %2917
  %2919 = vrot.lane.b32.xlu0 %v2910, 3
  %v2920 = vpop.permute.xlu0 %2919
  %2921 = vrot.lane.b32.xlu0 %v2911, 3
  %v2922 = vpop.permute.xlu0 %2921
  %2923 = vrot.lane.b32.xlu0 %v2912, 3
  %v2924 = vpop.permute.xlu0 %2923
  %v2925 = vsel %vm87, %v2918, %v2920
  %v2926 = vsel %vm87, %v2920, %v2922
  %v2927 = vsel %vm87, %v2922, %v2924
  %2931 = vst [vmem:[#allocation4 + $0x3c0] sm:$0xff] %v2925
  %2932 = vst [vmem:[#allocation4 + $0x3c8] sm:$0xff] %v2926
  %2933 = vst [vmem:[#allocation4 + $0x3d0] sm:$0xff] %v2927
  %v2934 = vld [vmem:[#allocation3] sm:$0xff]
  %v2935 = vld [vmem:[#allocation3 + $0x8] sm:$0xff]
  %v2936 = vld [vmem:[#allocation3 + $0x10] sm:$0xff]
  %v2937 = vld [vmem:[#allocation3 + $0x18] sm:$0xff]
  %2942 = vrot.lane.b32.xlu0 %v2934, 2
  %v2943 = vpop.permute.xlu0 %2942
  %2944 = vrot.lane.b32.xlu0 %v2935, 2
  %v2945 = vpop.permute.xlu0 %2944
  %2946 = vrot.lane.b32.xlu0 %v2936, 2
  %v2947 = vpop.permute.xlu0 %2946
  %2948 = vrot.lane.b32.xlu0 %v2937, 2
  %v2949 = vpop.permute.xlu0 %2948
  %v2950 = vsel %vm1206, %v2943, %v2945
  %v2951 = vsel %vm1206, %v2945, %v2947
  %v2952 = vsel %vm1206, %v2947, %v2949
  %2956 = vst [vmem:[#allocation4 + $0x3d8] sm:$0xff] %v2950
  %2957 = vst [vmem:[#allocation4 + $0x3e0] sm:$0xff] %v2951
  %2958 = vst [vmem:[#allocation4 + $0x3e8] sm:$0xff] %v2952
  %v2959 = vld [vmem:[#allocation3 + $0x8] sm:$0xff]
  %v2960 = vld [vmem:[#allocation3 + $0x10] sm:$0xff]
  %v2961 = vld [vmem:[#allocation3 + $0x18] sm:$0xff]
  %v2962 = vld [vmem:[#allocation3 + $0x20] sm:$0xff]
  %2967 = vrot.lane.b32.xlu0 %v2959, 112
  %v2968 = vpop.permute.xlu0 %2967
  %2969 = vrot.lane.b32.xlu0 %v2960, 112
  %v2970 = vpop.permute.xlu0 %2969
  %2971 = vrot.lane.b32.xlu0 %v2961, 112
  %v2972 = vpop.permute.xlu0 %2971
  %2973 = vrot.lane.b32.xlu0 %v2962, 112
  %v2974 = vpop.permute.xlu0 %2973
  %v2975 = vsel %vm1232, %v2968, %v2970
  %v2976 = vsel %vm1232, %v2970, %v2972
  %v2977 = vsel %vm1232, %v2972, %v2974
  %2981 = vst [vmem:[#allocation4 + $0x3f0] sm:$0xff] %v2975
  %2982 = vst [vmem:[#allocation4 + $0x3f8] sm:$0xff] %v2976
  %2983 = vst [vmem:[#allocation4 + $0x400] sm:$0xff] %v2977
  %v2984 = vld [vmem:[#allocation3 + $0x8] sm:$0xff]
  %v2985 = vld [vmem:[#allocation3 + $0x10] sm:$0xff]
  %v2986 = vld [vmem:[#allocation3 + $0x18] sm:$0xff]
  %v2987 = vld [vmem:[#allocation3 + $0x20] sm:$0xff]
  %2992 = vrot.lane.b32.xlu0 %v2984, 111
  %v2993 = vpop.permute.xlu0 %2992
  %2994 = vrot.lane.b32.xlu0 %v2985, 111
  %v2995 = vpop.permute.xlu0 %2994
  %2996 = vrot.lane.b32.xlu0 %v2986, 111
  %v2997 = vpop.permute.xlu0 %2996
  %2998 = vrot.lane.b32.xlu0 %v2987, 111
  %v2999 = vpop.permute.xlu0 %2998
  %v3000 = vsel %vm1258, %v2993, %v2995
  %v3001 = vsel %vm1258, %v2995, %v2997
  %v3002 = vsel %vm1258, %v2997, %v2999
  %3006 = vst [vmem:[#allocation4 + $0x408] sm:$0xff] %v3000
  %3007 = vst [vmem:[#allocation4 + $0x410] sm:$0xff] %v3001
  %3008 = vst [vmem:[#allocation4 + $0x418] sm:$0xff] %v3002
  %v3009 = vld [vmem:[#allocation3 + $0x8] sm:$0xff]
  %v3010 = vld [vmem:[#allocation3 + $0x10] sm:$0xff]
  %v3011 = vld [vmem:[#allocation3 + $0x18] sm:$0xff]
  %v3012 = vld [vmem:[#allocation3 + $0x20] sm:$0xff]
  %3017 = vrot.lane.b32.xlu0 %v3009, 110
  %v3018 = vpop.permute.xlu0 %3017
  %3019 = vrot.lane.b32.xlu0 %v3010, 110
  %v3020 = vpop.permute.xlu0 %3019
  %3021 = vrot.lane.b32.xlu0 %v3011, 110
  %v3022 = vpop.permute.xlu0 %3021
  %3023 = vrot.lane.b32.xlu0 %v3012, 110
  %v3024 = vpop.permute.xlu0 %3023
  %v3025 = vsel %vm1284, %v3018, %v3020
  %v3026 = vsel %vm1284, %v3020, %v3022
  %v3027 = vsel %vm1284, %v3022, %v3024
  %3031 = vst [vmem:[#allocation4 + $0x420] sm:$0xff] %v3025
  %3032 = vst [vmem:[#allocation4 + $0x428] sm:$0xff] %v3026
  %3033 = vst [vmem:[#allocation4 + $0x430] sm:$0xff] %v3027
  %v3034 = vld [vmem:[#allocation3 + $0x8] sm:$0xff]
  %v3035 = vld [vmem:[#allocation3 + $0x10] sm:$0xff]
  %v3036 = vld [vmem:[#allocation3 + $0x18] sm:$0xff]
  %v3037 = vld [vmem:[#allocation3 + $0x20] sm:$0xff]
  %3042 = vrot.lane.b32.xlu0 %v3034, 109
  %v3043 = vpop.permute.xlu0 %3042
  %3044 = vrot.lane.b32.xlu0 %v3035, 109
  %v3045 = vpop.permute.xlu0 %3044
  %3046 = vrot.lane.b32.xlu0 %v3036, 109
  %v3047 = vpop.permute.xlu0 %3046
  %3048 = vrot.lane.b32.xlu0 %v3037, 109
  %v3049 = vpop.permute.xlu0 %3048
  %v3050 = vsel %vm1310, %v3043, %v3045
  %v3051 = vsel %vm1310, %v3045, %v3047
  %v3052 = vsel %vm1310, %v3047, %v3049
  %3056 = vst [vmem:[#allocation4 + $0x438] sm:$0xff] %v3050
  %3057 = vst [vmem:[#allocation4 + $0x440] sm:$0xff] %v3051
  %3058 = vst [vmem:[#allocation4 + $0x448] sm:$0xff] %v3052
  %v3059 = vld [vmem:[#allocation3 + $0x8] sm:$0xff]
  %v3060 = vld [vmem:[#allocation3 + $0x10] sm:$0xff]
  %v3061 = vld [vmem:[#allocation3 + $0x18] sm:$0xff]
  %v3062 = vld [vmem:[#allocation3 + $0x20] sm:$0xff]
  %3067 = vrot.lane.b32.xlu0 %v3059, 108
  %v3068 = vpop.permute.xlu0 %3067
  %3069 = vrot.lane.b32.xlu0 %v3060, 108
  %v3070 = vpop.permute.xlu0 %3069
  %3071 = vrot.lane.b32.xlu0 %v3061, 108
  %v3072 = vpop.permute.xlu0 %3071
  %3073 = vrot.lane.b32.xlu0 %v3062, 108
  %v3074 = vpop.permute.xlu0 %3073
  %v3075 = vsel %vm1336, %v3068, %v3070
  %v3076 = vsel %vm1336, %v3070, %v3072
  %v3077 = vsel %vm1336, %v3072, %v3074
  %3081 = vst [vmem:[#allocation4 + $0x450] sm:$0xff] %v3075
  %3082 = vst [vmem:[#allocation4 + $0x458] sm:$0xff] %v3076
  %3083 = vst [vmem:[#allocation4 + $0x460] sm:$0xff] %v3077
  %v3084 = vld [vmem:[#allocation3 + $0x8] sm:$0xff]
  %v3085 = vld [vmem:[#allocation3 + $0x10] sm:$0xff]
  %v3086 = vld [vmem:[#allocation3 + $0x18] sm:$0xff]
  %v3087 = vld [vmem:[#allocation3 + $0x20] sm:$0xff]
  %3092 = vrot.lane.b32.xlu0 %v3084, 107
  %v3093 = vpop.permute.xlu0 %3092
  %3094 = vrot.lane.b32.xlu0 %v3085, 107
  %v3095 = vpop.permute.xlu0 %3094
  %3096 = vrot.lane.b32.xlu0 %v3086, 107
  %v3097 = vpop.permute.xlu0 %3096
  %3098 = vrot.lane.b32.xlu0 %v3087, 107
  %v3099 = vpop.permute.xlu0 %3098
  %v3100 = vsel %vm1362, %v3093, %v3095
  %v3101 = vsel %vm1362, %v3095, %v3097
  %v3102 = vsel %vm1362, %v3097, %v3099
  %3106 = vst [vmem:[#allocation4 + $0x468] sm:$0xff] %v3100
  %3107 = vst [vmem:[#allocation4 + $0x470] sm:$0xff] %v3101
  %3108 = vst [vmem:[#allocation4 + $0x478] sm:$0xff] %v3102
  %v3109 = vld [vmem:[#allocation3 + $0x8] sm:$0xff]
  %v3110 = vld [vmem:[#allocation3 + $0x10] sm:$0xff]
  %v3111 = vld [vmem:[#allocation3 + $0x18] sm:$0xff]
  %v3112 = vld [vmem:[#allocation3 + $0x20] sm:$0xff]
  %3117 = vrot.lane.b32.xlu0 %v3109, 106
  %v3118 = vpop.permute.xlu0 %3117
  %3119 = vrot.lane.b32.xlu0 %v3110, 106
  %v3120 = vpop.permute.xlu0 %3119
  %3121 = vrot.lane.b32.xlu0 %v3111, 106
  %v3122 = vpop.permute.xlu0 %3121
  %3123 = vrot.lane.b32.xlu0 %v3112, 106
  %v3124 = vpop.permute.xlu0 %3123
  %v3125 = vsel %vm1388, %v3118, %v3120
  %v3126 = vsel %vm1388, %v3120, %v3122
  %v3127 = vsel %vm1388, %v3122, %v3124
  %3131 = vst [vmem:[#allocation4 + $0x480] sm:$0xff] %v3125
  %3132 = vst [vmem:[#allocation4 + $0x488] sm:$0xff] %v3126
  %3133 = vst [vmem:[#allocation4 + $0x490] sm:$0xff] %v3127
  %v3134 = vld [vmem:[%s2] sm:$0xff]
  %v3135 = vld [vmem:[%s2 + $0x8] sm:$0xff]
  %v3136 = vld [vmem:[%s2 + $0x10] sm:$0xff]
  %v3137 = vld [vmem:[%s2 + $0x18] sm:$0xff]
  %v3138 = vld [vmem:[#allocation4] sm:$0xff]
  %v3139 = vld [vmem:[#allocation4 + $0x8] sm:$0xff]
  %v3140 = vld [vmem:[#allocation4 + $0x10] sm:$0xff]
  %v3141 = vld [vmem:[#allocation4 + $0x18] sm:$0xff]
  %v3142 = vld [vmem:[#allocation4 + $0x20] sm:$0xff]
  %v3143 = vld [vmem:[#allocation4 + $0x28] sm:$0xff]
  %v3144 = vld [vmem:[#allocation4 + $0x30] sm:$0xff]
  %v3145 = vld [vmem:[#allocation4 + $0x38] sm:$0xff]
  %v3146 = vld [vmem:[#allocation4 + $0x40] sm:$0xff]
  %v3147 = vld [vmem:[#allocation4 + $0x48] sm:$0xff]
  %v3148 = vld [vmem:[#allocation4 + $0x50] sm:$0xff]
  %v3149 = vld [vmem:[#allocation4 + $0x58] sm:$0xff]
  %v3150 = vld [vmem:[#allocation4 + $0x60] sm:$0xff]
  %v3151 = vld [vmem:[#allocation4 + $0x68] sm:$0xff]
  %v3152 = vld [vmem:[#allocation4 + $0x70] sm:$0xff]
  %v3153 = vld [vmem:[#allocation4 + $0x78] sm:$0xff]
  %v3154 = vld [vmem:[#allocation4 + $0x80] sm:$0xff]
  %v3155 = vld [vmem:[#allocation4 + $0x88] sm:$0xff]
  %v3156 = vld [vmem:[#allocation4 + $0x90] sm:$0xff]
  %v3157 = vld [vmem:[#allocation4 + $0x98] sm:$0xff]
  %v3158 = vld [vmem:[#allocation4 + $0xa0] sm:$0xff]
  %v3159 = vld [vmem:[#allocation4 + $0xa8] sm:$0xff]
  %v3160 = vld [vmem:[#allocation4 + $0xb0] sm:$0xff]
  %v3161 = vld [vmem:[#allocation4 + $0xb8] sm:$0xff]
  %v3162 = vld [vmem:[#allocation4 + $0xc0] sm:$0xff]
  %v3163 = vld [vmem:[#allocation4 + $0xc8] sm:$0xff]
  %v3164 = vld [vmem:[#allocation4 + $0xd0] sm:$0xff]
  %v3165 = vld [vmem:[#allocation4 + $0xd8] sm:$0xff]
  %v3166 = vld [vmem:[#allocation4 + $0xe0] sm:$0xff]
  %v3167 = vld [vmem:[#allocation4 + $0xe8] sm:$0xff]
  %v3168 = vld [vmem:[#allocation4 + $0xf0] sm:$0xff]
  %v3169 = vld [vmem:[#allocation4 + $0xf8] sm:$0xff]
  %v3170 = vld [vmem:[#allocation4 + $0x100] sm:$0xff]
  %v3171 = vld [vmem:[#allocation4 + $0x108] sm:$0xff]
  %v3172 = vld [vmem:[#allocation4 + $0x110] sm:$0xff]
  %v3173 = vld [vmem:[#allocation4 + $0x118] sm:$0xff]
  %v3174 = vld [vmem:[#allocation4 + $0x120] sm:$0xff]
  %v3175 = vld [vmem:[#allocation4 + $0x128] sm:$0xff]
  %v3176 = vld [vmem:[#allocation4 + $0x130] sm:$0xff]
  %v3177 = vld [vmem:[#allocation4 + $0x138] sm:$0xff]
  %v3178 = vld [vmem:[#allocation4 + $0x140] sm:$0xff]
  %v3179 = vld [vmem:[#allocation4 + $0x148] sm:$0xff]
  %v3180 = vld [vmem:[#allocation4 + $0x150] sm:$0xff]
  %v3181 = vld [vmem:[#allocation4 + $0x158] sm:$0xff]
  %v3182 = vld [vmem:[#allocation4 + $0x160] sm:$0xff]
  %v3183 = vld [vmem:[#allocation4 + $0x168] sm:$0xff]
  %v3184 = vld [vmem:[#allocation4 + $0x170] sm:$0xff]
  %v3185 = vld [vmem:[#allocation4 + $0x178] sm:$0xff]
  %v3186 = vld [vmem:[#allocation4 + $0x180] sm:$0xff]
  %v3187 = vld [vmem:[#allocation4 + $0x188] sm:$0xff]
  %v3188 = vld [vmem:[#allocation4 + $0x190] sm:$0xff]
  %v3189 = vld [vmem:[#allocation4 + $0x198] sm:$0xff]
  %v3190 = vld [vmem:[#allocation4 + $0x1a0] sm:$0xff]
  %v3191 = vld [vmem:[#allocation4 + $0x1a8] sm:$0xff]
  %v3192 = vld [vmem:[#allocation4 + $0x1b0] sm:$0xff]
  %v3193 = vld [vmem:[#allocation4 + $0x1b8] sm:$0xff]
  %v3194 = vld [vmem:[#allocation4 + $0x1c0] sm:$0xff]
  %v3195 = vld [vmem:[#allocation4 + $0x1c8] sm:$0xff]
  %v3196 = vld [vmem:[#allocation4 + $0x1d0] sm:$0xff]
  %v3197 = vld [vmem:[#allocation4 + $0x1d8] sm:$0xff]
  %v3198 = vld [vmem:[#allocation4 + $0x1e0] sm:$0xff]
  %v3199 = vld [vmem:[#allocation4 + $0x1e8] sm:$0xff]
  %v3200 = vld [vmem:[#allocation4 + $0x1f0] sm:$0xff]
  %v3201 = vld [vmem:[#allocation4 + $0x1f8] sm:$0xff]
  %v3202 = vld [vmem:[#allocation4 + $0x200] sm:$0xff]
  %v3203 = vld [vmem:[#allocation4 + $0x208] sm:$0xff]
  %v3204 = vld [vmem:[#allocation4 + $0x210] sm:$0xff]
  %v3205 = vld [vmem:[#allocation4 + $0x218] sm:$0xff]
  %v3206 = vld [vmem:[#allocation4 + $0x220] sm:$0xff]
  %v3207 = vld [vmem:[#allocation4 + $0x228] sm:$0xff]
  %v3208 = vld [vmem:[#allocation4 + $0x230] sm:$0xff]
  %v3209 = vld [vmem:[#allocation4 + $0x238] sm:$0xff]
  %v3210 = vld [vmem:[#allocation4 + $0x240] sm:$0xff]
  %v3211 = vld [vmem:[#allocation4 + $0x248] sm:$0xff]
  %v3212 = vld [vmem:[#allocation4 + $0x250] sm:$0xff]
  %v3213 = vld [vmem:[#allocation4 + $0x258] sm:$0xff]
  %v3214 = vld [vmem:[#allocation4 + $0x260] sm:$0xff]
  %v3215 = vld [vmem:[#allocation4 + $0x268] sm:$0xff]
  %v3216 = vld [vmem:[#allocation4 + $0x270] sm:$0xff]
  %v3217 = vld [vmem:[#allocation4 + $0x278] sm:$0xff]
  %v3218 = vld [vmem:[#allocation4 + $0x280] sm:$0xff]
  %v3219 = vld [vmem:[#allocation4 + $0x288] sm:$0xff]
  %v3220 = vld [vmem:[#allocation4 + $0x290] sm:$0xff]
  %v3221 = vld [vmem:[#allocation4 + $0x298] sm:$0xff]
  %v3222 = vld [vmem:[#allocation4 + $0x2a0] sm:$0xff]
  %v3223 = vld [vmem:[#allocation4 + $0x2a8] sm:$0xff]
  %v3224 = vld [vmem:[#allocation4 + $0x2b0] sm:$0xff]
  %v3225 = vld [vmem:[#allocation4 + $0x2b8] sm:$0xff]
  %v3226 = vld [vmem:[#allocation4 + $0x2c0] sm:$0xff]
  %v3227 = vld [vmem:[#allocation4 + $0x2c8] sm:$0xff]
  %v3228 = vld [vmem:[#allocation4 + $0x2d0] sm:$0xff]
  %v3229 = vld [vmem:[#allocation4 + $0x2d8] sm:$0xff]
  %v3230 = vld [vmem:[#allocation4 + $0x2e0] sm:$0xff]
  %v3231 = vld [vmem:[#allocation4 + $0x2e8] sm:$0xff]
  %v3232 = vld [vmem:[#allocation4 + $0x2f0] sm:$0xff]
  %v3233 = vld [vmem:[#allocation4 + $0x2f8] sm:$0xff]
  %v3234 = vld [vmem:[#allocation4 + $0x300] sm:$0xff]
  %v3235 = vld [vmem:[#allocation4 + $0x308] sm:$0xff]
  %v3236 = vld [vmem:[#allocation4 + $0x310] sm:$0xff]
  %v3237 = vld [vmem:[#allocation4 + $0x318] sm:$0xff]
  %v3238 = vld [vmem:[#allocation4 + $0x320] sm:$0xff]
  %v3239 = vld [vmem:[#allocation4 + $0x328] sm:$0xff]
  %v3240 = vld [vmem:[#allocation4 + $0x330] sm:$0xff]
  %v3241 = vld [vmem:[#allocation4 + $0x338] sm:$0xff]
  %v3242 = vld [vmem:[#allocation4 + $0x340] sm:$0xff]
  %v3243 = vld [vmem:[#allocation4 + $0x348] sm:$0xff]
  %v3244 = vld [vmem:[#allocation4 + $0x350] sm:$0xff]
  %v3245 = vld [vmem:[#allocation4 + $0x358] sm:$0xff]
  %v3246 = vld [vmem:[#allocation4 + $0x360] sm:$0xff]
  %v3247 = vld [vmem:[#allocation4 + $0x368] sm:$0xff]
  %v3248 = vld [vmem:[#allocation4 + $0x370] sm:$0xff]
  %v3249 = vld [vmem:[#allocation4 + $0x378] sm:$0xff]
  %v3250 = vld [vmem:[#allocation4 + $0x380] sm:$0xff]
  %v3251 = vld [vmem:[#allocation4 + $0x388] sm:$0xff]
  %v3252 = vld [vmem:[#allocation4 + $0x390] sm:$0xff]
  %v3253 = vld [vmem:[#allocation4 + $0x398] sm:$0xff]
  %v3254 = vld [vmem:[#allocation4 + $0x3a0] sm:$0xff]
  %v3255 = vld [vmem:[#allocation4 + $0x3a8] sm:$0xff]
  %v3256 = vld [vmem:[#allocation4 + $0x3b0] sm:$0xff]
  %v3257 = vld [vmem:[#allocation4 + $0x3b8] sm:$0xff]
  %v3258 = vld [vmem:[#allocation4 + $0x3c0] sm:$0xff]
  %v3259 = vld [vmem:[#allocation4 + $0x3c8] sm:$0xff]
  %v3260 = vld [vmem:[#allocation4 + $0x3d0] sm:$0xff]
  %v3261 = vld [vmem:[#allocation4 + $0x3d8] sm:$0xff]
  %v3262 = vld [vmem:[#allocation4 + $0x3e0] sm:$0xff]
  %v3263 = vld [vmem:[#allocation4 + $0x3e8] sm:$0xff]
  %v3264 = vld [vmem:[#allocation4 + $0x3f0] sm:$0xff]
  %v3265 = vld [vmem:[#allocation4 + $0x3f8] sm:$0xff]
  %v3266 = vld [vmem:[#allocation4 + $0x400] sm:$0xff]
  %v3267 = vld [vmem:[#allocation4 + $0x408] sm:$0xff]
  %v3268 = vld [vmem:[#allocation4 + $0x410] sm:$0xff]
  %v3269 = vld [vmem:[#allocation4 + $0x418] sm:$0xff]
  %v3270 = vld [vmem:[#allocation4 + $0x420] sm:$0xff]
  %v3271 = vld [vmem:[#allocation4 + $0x428] sm:$0xff]
  %v3272 = vld [vmem:[#allocation4 + $0x430] sm:$0xff]
  %v3273 = vld [vmem:[#allocation4 + $0x438] sm:$0xff]
  %v3274 = vld [vmem:[#allocation4 + $0x440] sm:$0xff]
  %v3275 = vld [vmem:[#allocation4 + $0x448] sm:$0xff]
  %v3276 = vld [vmem:[#allocation4 + $0x450] sm:$0xff]
  %v3277 = vld [vmem:[#allocation4 + $0x458] sm:$0xff]
  %v3278 = vld [vmem:[#allocation4 + $0x460] sm:$0xff]
  %v3279 = vld [vmem:[#allocation4 + $0x468] sm:$0xff]
  %v3280 = vld [vmem:[#allocation4 + $0x470] sm:$0xff]
  %v3281 = vld [vmem:[#allocation4 + $0x478] sm:$0xff]
  %v3282 = vld [vmem:[#allocation4 + $0x480] sm:$0xff]
  %v3283 = vld [vmem:[#allocation4 + $0x488] sm:$0xff]
  %v3284 = vld [vmem:[#allocation4 + $0x490] sm:$0xff]
  %v3285 = vld [vmem:[%s4] sm:$0xff]
  %3287 = vset.pattern.permute.xlu0 0
  %3288 = vperm.xlu0 %3287, %v3285
  %v3289 = vpop.permute.xlu0 %3288
  %v3292 = vsel %vm1051, %v3137, 0
  %3294 = vmatprep.subr.mxu0 %v3184
  %3295 = vmatpush1.msra.mxu0 %v3183
  %3296 = vmatprep.subr.mxu0 %v3181
  %3297 = vmatpush1.msra.mxu0 %v3180
  %3298 = vmatprep.subr.mxu0 %v3178
  %3299 = vmatpush1.msra.mxu0 %v3177
  %3300 = vmatprep.subr.mxu0 %v3175
  %3301 = vmatpush1.msra.mxu0 %v3174
  %3302 = vmatprep.subr.mxu0 %v3172
  %3303 = vmatpush1.msra.mxu0 %v3171
  %3304 = vmatprep.subr.mxu0 %v3169
  %3305 = vmatpush1.msra.mxu0 %v3168
  %3306 = vmatprep.subr.mxu0 %v3166
  %3307 = vmatpush1.msra.mxu0 %v3165
  %3308 = vmatprep.subr.mxu0 %v3163
  %3309 = vmatpush1.msra.mxu0 %v3162
  %3310 = vmatprep.subr.mxu0 %v3160
  %3311 = vmatpush1.msra.mxu0 %v3159
  %3312 = vmatprep.subr.mxu0 %v3157
  %3313 = vmatpush1.msra.mxu0 %v3156
  %3314 = vmatprep.subr.mxu0 %v3154
  %3315 = vmatpush1.msra.mxu0 %v3153
  %3316 = vmatprep.subr.mxu0 %v3151
  %3317 = vmatpush1.msra.mxu0 %v3150
  %3318 = vmatprep.subr.mxu0 %v3148
  %3319 = vmatpush1.msra.mxu0 %v3147
  %3320 = vmatprep.subr.mxu0 %v3145
  %3321 = vmatpush1.msra.mxu0 %v3144
  %3322 = vmatprep.subr.mxu0 %v3142
  %3323 = vmatpush1.msra.mxu0 %v3141
  %3324 = vmatprep.subr.mxu0 %v3139
  %3325 = vmatpush1.msra.mxu0 %v3138
  %3326 = vmatprep.subr.mxu0 %v3232
  %3327 = vmatpush2.msra.mxu0 %v3231
  %3328 = vmatprep.subr.mxu0 %v3229
  %3329 = vmatpush2.msra.mxu0 %v3228
  %3330 = vmatprep.subr.mxu0 %v3226
  %3331 = vmatpush2.msra.mxu0 %v3225
  %3332 = vmatprep.subr.mxu0 %v3223
  %3333 = vmatpush2.msra.mxu0 %v3222
  %3334 = vmatprep.subr.mxu0 %v3220
  %3335 = vmatpush2.msra.mxu0 %v3219
  %3336 = vmatprep.subr.mxu0 %v3217
  %3337 = vmatpush2.msra.mxu0 %v3216
  %3338 = vmatprep.subr.mxu0 %v3214
  %3339 = vmatpush2.msra.mxu0 %v3213
  %3340 = vmatprep.subr.mxu0 %v3211
  %3341 = vmatpush2.msra.mxu0 %v3210
  %3342 = vmatprep.subr.mxu0 %v3208
  %3343 = vmatpush2.msra.mxu0 %v3207
  %3344 = vmatprep.subr.mxu0 %v3205
  %3345 = vmatpush2.msra.mxu0 %v3204
  %3346 = vmatprep.subr.mxu0 %v3202
  %3347 = vmatpush2.msra.mxu0 %v3201
  %3348 = vmatprep.subr.mxu0 %v3199
  %3349 = vmatpush2.msra.mxu0 %v3198
  %3350 = vmatprep.subr.mxu0 %v3196
  %3351 = vmatpush2.msra.mxu0 %v3195
  %3352 = vmatprep.subr.mxu0 %v3193
  %3353 = vmatpush2.msra.mxu0 %v3192
  %3354 = vmatprep.subr.mxu0 %v3190
  %3355 = vmatpush2.msra.mxu0 %v3189
  %3356 = vmatprep.subr.mxu0 %v3187
  %3357 = vmatpush2.msra.mxu0 %v3186
  %3358 = vmatprep.mubr.f32.mxu0 %v3135
  %3359 = vmatmul.mubr.f32.gmra.mxu0 %v3134
  %v3360 = vpop.f32.mrf.mxu0
  %v3361 = vadd.f32 %v3289, %v3360
  %v3362 = vpop.f32.mrf.mxu0
  %v3363 = vadd.f32 %v3289, %v3362
  %3364 = vdwg.mxu0
  %3365 = vmatprep.subr.mxu0 %v3280
  %3366 = vmatpush1.msra.mxu0 %v3279
  %3367 = vmatprep.subr.mxu0 %v3277
  %3368 = vmatpush1.msra.mxu0 %v3276
  %3369 = vmatprep.subr.mxu0 %v3274
  %3370 = vmatpush1.msra.mxu0 %v3273
  %3371 = vmatprep.subr.mxu0 %v3271
  %3372 = vmatpush1.msra.mxu0 %v3270
  %3373 = vmatprep.subr.mxu0 %v3268
  %3374 = vmatpush1.msra.mxu0 %v3267
  %3375 = vmatprep.subr.mxu0 %v3265
  %3376 = vmatpush1.msra.mxu0 %v3264
  %3377 = vmatprep.subr.mxu0 %v3262
  %3378 = vmatpush1.msra.mxu0 %v3261
  %3379 = vmatprep.subr.mxu0 %v3259
  %3380 = vmatpush1.msra.mxu0 %v3258
  %3381 = vmatprep.subr.mxu0 %v3256
  %3382 = vmatpush1.msra.mxu0 %v3255
  %3383 = vmatprep.subr.mxu0 %v3253
  %3384 = vmatpush1.msra.mxu0 %v3252
  %3385 = vmatprep.subr.mxu0 %v3250
  %3386 = vmatpush1.msra.mxu0 %v3249
  %3387 = vmatprep.subr.mxu0 %v3247
  %3388 = vmatpush1.msra.mxu0 %v3246
  %3389 = vmatprep.subr.mxu0 %v3244
  %3390 = vmatpush1.msra.mxu0 %v3243
  %3391 = vmatprep.subr.mxu0 %v3241
  %3392 = vmatpush1.msra.mxu0 %v3240
  %3393 = vmatprep.subr.mxu0 %v3238
  %3394 = vmatpush1.msra.mxu0 %v3237
  %3395 = vmatprep.subr.mxu0 %v3235
  %3396 = vmatpush1.msra.mxu0 %v3234
  %3397 = vmatprep.subr.mxu0 0.0
  %3398 = vmatpush2.msra.mxu0 0.0
  %3399 = vmatprep.subr.mxu0 0.0
  %3400 = vmatpush2.msra.mxu0 0.0
  %3401 = vmatprep.subr.mxu0 0.0
  %3402 = vmatpush2.msra.mxu0 0.0
  %3403 = vmatprep.subr.mxu0 0.0
  %3404 = vmatpush2.msra.mxu0 0.0
  %3405 = vmatprep.subr.mxu0 0.0
  %3406 = vmatpush2.msra.mxu0 0.0
  %3407 = vmatprep.subr.mxu0 0.0
  %3408 = vmatpush2.msra.mxu0 0.0
  %3409 = vmatprep.subr.mxu0 0.0
  %3410 = vmatpush2.msra.mxu0 0.0
  %3411 = vmatprep.subr.mxu0 0.0
  %3412 = vmatpush2.msra.mxu0 0.0
  %3413 = vmatprep.subr.mxu0 0.0
  %3414 = vmatpush2.msra.mxu0 0.0
  %3415 = vmatprep.subr.mxu0 0.0
  %3416 = vmatpush2.msra.mxu0 0.0
  %3417 = vmatprep.subr.mxu0 0.0
  %3418 = vmatpush2.msra.mxu0 0.0
  %3419 = vmatprep.subr.mxu0 0.0
  %3420 = vmatpush2.msra.mxu0 0.0
  %3421 = vmatprep.subr.mxu0 0.0
  %3422 = vmatpush2.msra.mxu0 0.0
  %3423 = vmatprep.subr.mxu0 0.0
  %3424 = vmatpush2.msra.mxu0 0.0
  %3425 = vmatprep.subr.mxu0 0.0
  %3426 = vmatpush2.msra.mxu0 0.0
  %3427 = vmatprep.subr.mxu0 %v3283
  %3428 = vmatpush2.msra.mxu0 %v3282
  %3429 = vmatprep.mubr.f32.mxu0 %v3292
  %3430 = vmatmul.mubr.f32.gmra.mxu0 %v3136
  %v3431 = vpop.f32.mrf.mxu0
  %v3432 = vadd.f32 %v3361, %v3431
  %v3433 = vpop.f32.mrf.mxu0
  %v3434 = vadd.f32 %v3363, %v3433
  %3435 = vdwg.mxu0
  %3436 = vmatprep.subr.mxu0 0.0
  %3437 = vmatpush1.msra.mxu0 %v3185
  %3438 = vmatprep.subr.mxu0 0.0
  %3439 = vmatpush1.msra.mxu0 %v3182
  %3440 = vmatprep.subr.mxu0 0.0
  %3441 = vmatpush1.msra.mxu0 %v3179
  %3442 = vmatprep.subr.mxu0 0.0
  %3443 = vmatpush1.msra.mxu0 %v3176
  %3444 = vmatprep.subr.mxu0 0.0
  %3445 = vmatpush1.msra.mxu0 %v3173
  %3446 = vmatprep.subr.mxu0 0.0
  %3447 = vmatpush1.msra.mxu0 %v3170
  %3448 = vmatprep.subr.mxu0 0.0
  %3449 = vmatpush1.msra.mxu0 %v3167
  %3450 = vmatprep.subr.mxu0 0.0
  %3451 = vmatpush1.msra.mxu0 %v3164
  %3452 = vmatprep.subr.mxu0 0.0
  %3453 = vmatpush1.msra.mxu0 %v3161
  %3454 = vmatprep.subr.mxu0 0.0
  %3455 = vmatpush1.msra.mxu0 %v3158
  %3456 = vmatprep.subr.mxu0 0.0
  %3457 = vmatpush1.msra.mxu0 %v3155
  %3458 = vmatprep.subr.mxu0 0.0
  %3459 = vmatpush1.msra.mxu0 %v3152
  %3460 = vmatprep.subr.mxu0 0.0
  %3461 = vmatpush1.msra.mxu0 %v3149
  %3462 = vmatprep.subr.mxu0 0.0
  %3463 = vmatpush1.msra.mxu0 %v3146
  %3464 = vmatprep.subr.mxu0 0.0
  %3465 = vmatpush1.msra.mxu0 %v3143
  %3466 = vmatprep.subr.mxu0 0.0
  %3467 = vmatpush1.msra.mxu0 %v3140
  %3468 = vmatprep.subr.mxu0 0.0
  %3469 = vmatpush2.msra.mxu0 %v3233
  %3470 = vmatprep.subr.mxu0 0.0
  %3471 = vmatpush2.msra.mxu0 %v3230
  %3472 = vmatprep.subr.mxu0 0.0
  %3473 = vmatpush2.msra.mxu0 %v3227
  %3474 = vmatprep.subr.mxu0 0.0
  %3475 = vmatpush2.msra.mxu0 %v3224
  %3476 = vmatprep.subr.mxu0 0.0
  %3477 = vmatpush2.msra.mxu0 %v3221
  %3478 = vmatprep.subr.mxu0 0.0
  %3479 = vmatpush2.msra.mxu0 %v3218
  %3480 = vmatprep.subr.mxu0 0.0
  %3481 = vmatpush2.msra.mxu0 %v3215
  %3482 = vmatprep.subr.mxu0 0.0
  %3483 = vmatpush2.msra.mxu0 %v3212
  %3484 = vmatprep.subr.mxu0 0.0
  %3485 = vmatpush2.msra.mxu0 %v3209
  %3486 = vmatprep.subr.mxu0 0.0
  %3487 = vmatpush2.msra.mxu0 %v3206
  %3488 = vmatprep.subr.mxu0 0.0
  %3489 = vmatpush2.msra.mxu0 %v3203
  %3490 = vmatprep.subr.mxu0 0.0
  %3491 = vmatpush2.msra.mxu0 %v3200
  %3492 = vmatprep.subr.mxu0 0.0
  %3493 = vmatpush2.msra.mxu0 %v3197
  %3494 = vmatprep.subr.mxu0 0.0
  %3495 = vmatpush2.msra.mxu0 %v3194
  %3496 = vmatprep.subr.mxu0 0.0
  %3497 = vmatpush2.msra.mxu0 %v3191
  %3498 = vmatprep.subr.mxu0 0.0
  %3499 = vmatpush2.msra.mxu0 %v3188
  %3500 = vmatprep.mubr.f32.mxu0 %v3135
  %3501 = vmatmul.mubr.f32.gmra.mxu0 %v3134
  %v3502 = vpop.f32.mrf.mxu0
  %v3503 = vadd.f32 %v3289, %v3502
  %v3504 = vpop.f32.mrf.mxu0
  %3505 = vdwg.mxu0
  %3506 = vmatprep.subr.mxu0 0.0
  %3507 = vmatpush1.msra.mxu0 %v3281
  %3508 = vmatprep.subr.mxu0 0.0
  %3509 = vmatpush1.msra.mxu0 %v3278
  %3510 = vmatprep.subr.mxu0 0.0
  %3511 = vmatpush1.msra.mxu0 %v3275
  %3512 = vmatprep.subr.mxu0 0.0
  %3513 = vmatpush1.msra.mxu0 %v3272
  %3514 = vmatprep.subr.mxu0 0.0
  %3515 = vmatpush1.msra.mxu0 %v3269
  %3516 = vmatprep.subr.mxu0 0.0
  %3517 = vmatpush1.msra.mxu0 %v3266
  %3518 = vmatprep.subr.mxu0 0.0
  %3519 = vmatpush1.msra.mxu0 %v3263
  %3520 = vmatprep.subr.mxu0 0.0
  %3521 = vmatpush1.msra.mxu0 %v3260
  %3522 = vmatprep.subr.mxu0 0.0
  %3523 = vmatpush1.msra.mxu0 %v3257
  %3524 = vmatprep.subr.mxu0 0.0
  %3525 = vmatpush1.msra.mxu0 %v3254
  %3526 = vmatprep.subr.mxu0 0.0
  %3527 = vmatpush1.msra.mxu0 %v3251
  %3528 = vmatprep.subr.mxu0 0.0
  %3529 = vmatpush1.msra.mxu0 %v3248
  %3530 = vmatprep.subr.mxu0 0.0
  %3531 = vmatpush1.msra.mxu0 %v3245
  %3532 = vmatprep.subr.mxu0 0.0
  %3533 = vmatpush1.msra.mxu0 %v3242
  %3534 = vmatprep.subr.mxu0 0.0
  %3535 = vmatpush1.msra.mxu0 %v3239
  %3536 = vmatprep.subr.mxu0 0.0
  %3537 = vmatpush1.msra.mxu0 %v3236
  %3538 = vmatprep.subr.mxu0 0.0
  %3539 = vmatpush2.msra.mxu0 0.0
  %3540 = vmatprep.subr.mxu0 0.0
  %3541 = vmatpush2.msra.mxu0 0.0
  %3542 = vmatprep.subr.mxu0 0.0
  %3543 = vmatpush2.msra.mxu0 0.0
  %3544 = vmatprep.subr.mxu0 0.0
  %3545 = vmatpush2.msra.mxu0 0.0
  %3546 = vmatprep.subr.mxu0 0.0
  %3547 = vmatpush2.msra.mxu0 0.0
  %3548 = vmatprep.subr.mxu0 0.0
  %3549 = vmatpush2.msra.mxu0 0.0
  %3550 = vmatprep.subr.mxu0 0.0
  %3551 = vmatpush2.msra.mxu0 0.0
  %3552 = vmatprep.subr.mxu0 0.0
  %3553 = vmatpush2.msra.mxu0 0.0
  %3554 = vmatprep.subr.mxu0 0.0
  %3555 = vmatpush2.msra.mxu0 0.0
  %3556 = vmatprep.subr.mxu0 0.0
  %3557 = vmatpush2.msra.mxu0 0.0
  %3558 = vmatprep.subr.mxu0 0.0
  %3559 = vmatpush2.msra.mxu0 0.0
  %3560 = vmatprep.subr.mxu0 0.0
  %3561 = vmatpush2.msra.mxu0 0.0
  %3562 = vmatprep.subr.mxu0 0.0
  %3563 = vmatpush2.msra.mxu0 0.0
  %3564 = vmatprep.subr.mxu0 0.0
  %3565 = vmatpush2.msra.mxu0 0.0
  %3566 = vmatprep.subr.mxu0 0.0
  %3567 = vmatpush2.msra.mxu0 0.0
  %3568 = vmatprep.subr.mxu0 0.0
  %3569 = vmatpush2.msra.mxu0 %v3284
  %3570 = vmatprep.mubr.f32.mxu0 %v3292
  %3571 = vmatmul.mubr.f32.gmra.mxu0 %v3136
  %v3572 = vpop.f32.mrf.mxu0
  %v3573 = vadd.f32 %v3503, %v3572
  %v3574 = vpop.f32.mrf.mxu0
  %3575 = vdwg.mxu0
  %v3576 = vmul.f32 %v3432, %v1844
  %v3577 = vmul.f32 %v3434, %v1848
  %v3578 = vmul.f32 %v3573, %v1852
  %v3579 = vadd.f32 %v3576, %v3577
  %v3580 = vadd.f32 %v3579, %v3578
  %3581 = vadd.xlane.f32.xlu0 %v3580
  %v3582 = vpop.xlane.xlu0 %3581
  %v3583 = vrot.slane %v3582, 4
  %v3584 = vadd.f32 %v3582, %v3583
  %v3585 = vmul.f32 %v3584, 0.001953125
  %3587 = vset.pattern.permute.xlu0 0
  %3588 = vperm.xlu0 %3587, %v3585
  %v3589 = vpop.permute.xlu0 %3588
  %v3591 = vsub.f32 %v3432, %v3589
  %v3592 = vsub.f32 %v3434, %v3589
  %v3593 = vsub.f32 %v3573, %v3589
  %v3594 = vmul.f32 %v3591, %v1844
  %v3595 = vmul.f32 %v3592, %v1848
  %v3596 = vmul.f32 %v3593, %v1852
  %v3597 = vmul.f32 %v3594, %v3594
  %v3598 = vmul.f32 %v3595, %v3595
  %v3599 = vmul.f32 %v3596, %v3596
  %v3600 = vadd.f32 %v3597, %v3598
  %v3601 = vadd.f32 %v3600, %v3599
  %3602 = vadd.xlane.f32.xlu0 %v3601
  %v3603 = vpop.xlane.xlu0 %3602
  %v3604 = vrot.slane %v3603, 4
  %v3605 = vadd.f32 %v3603, %v3604
  %v3606 = vmul.f32 %v3605, 0.001953125
  %v3607 = vadd.f32 %v3606, 1e-05
  %v3608 = vrsqrt.pop %v3607
  %3610 = vset.pattern.permute.xlu0 0
  %3611 = vperm.xlu0 %3610, %v3608
  %v3612 = vpop.permute.xlu0 %3611
  %v3614 = vmul.f32 %v3591, %v3612
  %v3615 = vmul.f32 %v3592, %v3612
  %v3616 = vmul.f32 %v3593, %v3612
  %v3617 = vld [vmem:[#allocation2] sm:$0xff]
  %v3618 = vld [vmem:[#allocation2 + $0x8] sm:$0xff]
  %v3619 = vld [vmem:[#allocation2 + $0x10] sm:$0xff]
  %v3620 = vld [vmem:[#allocation2 + $0x18] sm:$0xff]
  %v3621 = vmul.f32 %v3614, 0.1
  %v3622 = vmul.f32 %v3615, 0.1
  %v3623 = vmul.f32 %v3616, 0.1
  %3628 = vrot.lane.b32.xlu0 %v3617, 53
  %v3629 = vpop.permute.xlu0 %3628
  %3630 = vrot.lane.b32.xlu0 %v3618, 53
  %v3631 = vpop.permute.xlu0 %3630
  %3632 = vrot.lane.b32.xlu0 %v3619, 53
  %v3633 = vpop.permute.xlu0 %3632
  %3634 = vrot.lane.b32.xlu0 %v3620, 53
  %v3635 = vpop.permute.xlu0 %3634
  %v3636 = vsel %vm765, %v3629, %v3631
  %v3637 = vsel %vm765, %v3631, %v3633
  %v3638 = vsel %vm765, %v3633, %v3635
  %v3642 = vadd.f32 %v3621, %v3636
  %v3643 = vadd.f32 %v3622, %v3637
  %v3644 = vadd.f32 %v3623, %v3638
  %3645 = vst [vmem:[%s6] sm:$0xff] %v3642
  %3646 = vst [vmem:[%s6 + $0x8] sm:$0xff] %v3643
  %3647 = vst [vmem:[%s6 + $0x10] sm:$0xff] %v3644
  // Predicated region
  $region26: #{rot_res_block.1} parent=0 // pred_check
    _
  $region27: #{rot_res_block.1} parent=0 // pred_check_branch
    %3649 = sbr.rel (0) target = $region29
  $region28: #{rot_res_block.1} parent=0 // pred_region
    _
  $region29: #{rot_res_block.1} parent=0 // pred_fallthru
    _
  // Predicated region
  $region30: #{rot_res_block.1} parent=0 // pred_check
    _
  $region31: #{rot_res_block.1} parent=0 // pred_check_branch
    %3651 = sbr.rel (0) target = $region33
  $region32: #{rot_res_block.1} parent=0 // pred_region
    _
  $region33: #{rot_res_block.1} parent=0 // pred_fallthru
    _

</llo_original>
